<compile_context>
chip_gen: v5e
topology: v5e:2x2
jax: 0.10.0
libtpu: 0.0.40
codegen_flags: <defaults>
</compile_context>

<pallas_src>
import jax
import jax.numpy as jnp
import numpy as np
from jax.experimental import pallas as pl
from jax.experimental.pallas import tpu as pltpu

NEG_SLOPE = 0.01          # PyTorch F.leaky_relu default
CH = 64                   # real channel count
CP = 128                  # lane-padded channel count


# ---------------------------------------------------------------------------
# Fused kernel: whole forward pass for one image per grid step.
# Layout: activations are (CP, P) = (channels-on-sublanes, positions-on-lanes).
# ---------------------------------------------------------------------------
def _encode_kernel(x_ref, wup_ref, bup_ref, W_ref, B_ref, G_ref, BETA_ref,
                   o_ref):
    # ---- stage 0: 1x1 conv, Cin=1  ->  VPU broadcast + bias + leaky_relu ----
    xr = x_ref[0] * (1.0 / 255.0)                  # (1, P0)   pixels on lanes
    h = xr * wup_ref[...] + bup_ref[...]           # (CP, P0)  broadcast mul
    h = jnp.where(h > 0, h, NEG_SLOPE * h)         # leaky_relu (no GDN here)

    # ---- 4 downsample stages: conv2x2/s2 + bias + leaky_relu + GDN ----------
    # Pixel order was chosen so tap t of every stage is the contiguous lane
    # slice [t*Pn, (t+1)*Pn)  ->  4 plain matmuls, no in-kernel shuffling.
    for l in range(4):
        pn = h.shape[1] // 4
        z = jnp.dot(W_ref[l, 0], h[:, 0:pn],
                    preferred_element_type=jnp.float32)
        for t in range(1, 4):
            z = z + jnp.dot(W_ref[l, t], h[:, t * pn:(t + 1) * pn],
                            preferred_element_type=jnp.float32)
        z = z + B_ref[l]                           # (CP, Pn) + (CP, 1)
        z = jnp.where(z > 0, z, NEG_SLOPE * z)     # leaky_relu
        denom = jnp.dot(G_ref[l], z * z,
                        preferred_element_type=jnp.float32) + BETA_ref[l]
        h = z * jax.lax.rsqrt(denom)               # GDN

    o_ref[0] = h                                   # (CP, P_out): already NCHW


# ---------------------------------------------------------------------------
# Pixel permutation: recursive parity-major order.  perm[s] = row-major flat
# index of the pixel placed at position s.  At every 2x downsample level the
# 4 (kh,kw) taps become 4 contiguous, equal-length blocks.
# ---------------------------------------------------------------------------
def _sigma_perm(H, W):
    if H == 1 and W == 1:
        return np.zeros((1,), dtype=np.int32)
    sub = _sigma_perm(H // 2, W // 2)
    a, b = sub // (W // 2), sub % (W // 2)
    blocks = [(2 * a + kh) * W + (2 * b + kw)
              for kh in (0, 1) for kw in (0, 1)]
    return np.concatenate(blocks).astype(np.int32)


# ---------------------------------------------------------------------------
# One-time weight packing: pad channels to 128, transpose conv taps to
# (cout, cin), keep GDN gamma as-is (denom = gamma @ z^2 in transposed layout).
# ---------------------------------------------------------------------------
def prepare_kernel_params(params, ch=CH, cp=CP):
    wup = jnp.zeros((cp, 1), jnp.float32).at[:ch, 0].set(params["w_up"])
    bup = jnp.zeros((cp, 1), jnp.float32).at[:ch, 0].set(params["b_up"])
    W = jnp.zeros((4, 4, cp, cp), jnp.float32)
    B = jnp.zeros((4, cp, 1), jnp.float32)
    G = jnp.zeros((4, cp, cp), jnp.float32)
    BETA = jnp.ones((4, cp, 1), jnp.float32)       # pad beta = 1 -> rsqrt safe
    for l in range(4):
        w_taps = params[f"w_dn{l}"].reshape(4, ch, ch)      # (tap, cin, cout)
        W = W.at[l, :, :ch, :ch].set(jnp.transpose(w_taps, (0, 2, 1)))
        B = B.at[l, :ch, 0].set(params[f"b_dn{l}"])
        G = G.at[l, :ch, :ch].set(params[f"gamma{l}"])
        BETA = BETA.at[l, :ch, 0].set(params[f"beta{l}"])
    return {"wup": wup, "bup": bup, "W": W, "B": B, "G": G, "BETA": BETA}


# ---------------------------------------------------------------------------
# Forward wrapper: one pallas_call for the whole net, grid over batch.
# ---------------------------------------------------------------------------
def encode_net_forward(x_nchw, kp):
    N, cin, H, W = x_nchw.shape
    assert cin == 1 and H % 16 == 0 and W % 16 == 0
    P0 = H * W
    assert P0 % 256 == 0
    Hf, Wf = H // 16, W // 16
    P_out = Hf * Wf

    # Tiny (4 KB/image) input permutation done once in the wrapper; all big
    # intermediate layout work happens inside the kernel in VMEM.
    perm = jnp.asarray(_sigma_perm(H, W).astype(np.int32))
    x = x_nchw.astype(jnp.float32).reshape(N, P0)
    x_sig = jnp.take(x, perm, axis=1).reshape(N, 1, P0)

    out = pl.pallas_call(
        _encode_kernel,
        out_shape=jax.ShapeDtypeStruct((N, CP, P_out), jnp.float32),
        grid_spec=pltpu.PrefetchScalarGridSpec(
            num_scalar_prefetch=0,
            grid=(N,),
            in_specs=[
                pl.BlockSpec((1, 1, P0), lambda n: (n, 0, 0)),       # pixels
                pl.BlockSpec((CP, 1), lambda n: (0, 0)),             # w_up col
                pl.BlockSpec((CP, 1), lambda n: (0, 0)),             # b_up col
                pl.BlockSpec((4, 4, CP, CP), lambda n: (0, 0, 0, 0)),  # conv W
                pl.BlockSpec((4, CP, 1), lambda n: (0, 0, 0)),         # bias
                pl.BlockSpec((4, CP, CP), lambda n: (0, 0, 0)),        # gamma
                pl.BlockSpec((4, CP, 1), lambda n: (0, 0, 0)),         # beta
            ],
            out_specs=pl.BlockSpec((1, CP, P_out), lambda n: (n, 0, 0)),
        ),
        compiler_params=pltpu.CompilerParams(
            dimension_semantics=("parallel",),       # 2 steps -> both v7x TCs
            vmem_limit_bytes=32 * 1024 * 1024,       # safe on v5e/v6e/v7x
        ),
    )(x_sig, kp["wup"], kp["bup"], kp["W"], kp["B"], kp["G"], kp["BETA"])

    # Un-permute the (tiny) final spatial positions back to row-major, drop
    # channel padding; channels-on-sublanes is already NCHW order.
    inv = jnp.asarray(np.argsort(_sigma_perm(Hf, Wf)).astype(np.int32))
    y = jnp.take(out[:, :CH, :], inv, axis=2)
    return y.reshape(N, CH, Hf, Wf) * 255.0


# ---------------------------------------------------------------------------
# Pure-JAX reference (independent row-major space-to-depth path).
# ---------------------------------------------------------------------------
def _leaky(x):
    return jnp.where(x > 0, x, NEG_SLOPE * x)


def encode_net_reference(x_nchw, params):
    x = x_nchw.astype(jnp.float32) * (1.0 / 255.0)
    x = jnp.transpose(x, (0, 2, 3, 1))                      # NHWC, C=1
    h = _leaky(x * params["w_up"][None, None, None, :]
               + params["b_up"][None, None, None, :])
    for l in range(4):
        N, H, W, C = h.shape
        p = (h.reshape(N, H // 2, 2, W // 2, 2, C)
               .transpose(0, 1, 3, 2, 4, 5)
               .reshape(N * (H // 2) * (W // 2), 4 * C))
        z = _leaky(jnp.dot(p, params[f"w_dn{l}"],
                           precision=jax.lax.Precision.HIGHEST)
                   + params[f"b_dn{l}"][None, :])
        denom = (jnp.dot(z * z, params[f"gamma{l}"].T,
                         precision=jax.lax.Precision.HIGHEST)
                 + params[f"beta{l}"][None, :])
        h = (z * jax.lax.rsqrt(denom)).reshape(N, H // 2, W // 2, C)
    return jnp.transpose(h, (0, 3, 1, 2)) * 255.0


# ---------------------------------------------------------------------------
# Deterministic synthetic parameters (no checkpoint).
# ---------------------------------------------------------------------------
def make_params(key, ch=CH):
    ks = jax.random.split(key, 2 + 4 * 4)
    p = {"w_up": jax.random.normal(ks[0], (ch,), jnp.float32) * 0.5,
         "b_up": jax.random.normal(ks[1], (ch,), jnp.float32) * 0.1}
    i = 2
    for l in range(4):
        p[f"w_dn{l}"] = (jax.random.normal(ks[i], (4 * ch, ch), jnp.float32)
                         * (1.0 / np.sqrt(4.0 * ch)))
        p[f"b_dn{l}"] = jax.random.normal(ks[i + 1], (ch,), jnp.float32) * 0.1
        p[f"gamma{l}"] = (0.1 * jnp.eye(ch, dtype=jnp.float32)
                          + 0.01 * jnp.abs(jax.random.normal(
                              ks[i + 2], (ch, ch), jnp.float32)))
        p[f"beta{l}"] = (jnp.ones((ch,), jnp.float32)
                         + 0.01 * jnp.abs(jax.random.normal(
                             ks[i + 3], (ch,), jnp.float32)))
        i += 4
    return p


if __name__ == "__main__":
    key = jax.random.PRNGKey(0)
    k_in, k_par = jax.random.split(key)

    # (N=2, C=1, H=32, W=32): 4 stride-2 downsamples -> (2, 64, 2, 2)
    x = jax.random.uniform(k_in, (2, 1, 32, 32), jnp.float32,
                           minval=0.0, maxval=255.0)
    params = make_params(k_par)
    kparams = prepare_kernel_params(params)      # one-time weight packing

    fwd = jax.jit(encode_net_forward)
    out = jax.block_until_ready(fwd(x, kparams))
    assert out.shape == (2, 64, 2, 2), out.shape

    ref = encode_net_reference(x, params)
    max_err = float(jnp.max(jnp.abs(out - ref)))
    assert jnp.allclose(out, ref, atol=5e-3, rtol=5e-3), max_err

    print("KERNEL_OK")
</pallas_src>

<mosaic_0001>
module attributes {stable_mosaic.version = 11 : i64} {
  func.func @_encode_kernel(%arg0: i32, %arg1: memref<1x1x1024xf32, #tpu.memory_space<vmem>>, %arg2: memref<128x1xf32, #tpu.memory_space<vmem>>, %arg3: memref<128x1xf32, #tpu.memory_space<vmem>>, %arg4: memref<4x4x128x128xf32, #tpu.memory_space<vmem>>, %arg5: memref<4x128x1xf32, #tpu.memory_space<vmem>>, %arg6: memref<4x128x128xf32, #tpu.memory_space<vmem>>, %arg7: memref<4x128x1xf32, #tpu.memory_space<vmem>>, %arg8: memref<1x128x4xf32, #tpu.memory_space<vmem>>) attributes {dimension_semantics = [#tpu.dimension_semantics<parallel>], iteration_bounds = array<i64: 2>, scalar_prefetch = 0 : i64, scratch_operands = 0 : i64, tpu.core_type = #tpu.core_type<tc>, window_params = [{transform_indices = @transform_0, window_bounds = array<i64: 1, 1, 1024>}, {pipeline_mode = #tpu.pipeline_mode<synchronous>, transform_indices = @transform_1, window_bounds = array<i64: 128, 1>}, {pipeline_mode = #tpu.pipeline_mode<synchronous>, transform_indices = @transform_2, window_bounds = array<i64: 128, 1>}, {pipeline_mode = #tpu.pipeline_mode<synchronous>, transform_indices = @transform_3, window_bounds = array<i64: 4, 4, 128, 128>}, {pipeline_mode = #tpu.pipeline_mode<synchronous>, transform_indices = @transform_4, window_bounds = array<i64: 4, 128, 1>}, {pipeline_mode = #tpu.pipeline_mode<synchronous>, transform_indices = @transform_5, window_bounds = array<i64: 4, 128, 128>}, {pipeline_mode = #tpu.pipeline_mode<synchronous>, transform_indices = @transform_6, window_bounds = array<i64: 4, 128, 1>}, {transform_indices = @transform_7, window_bounds = array<i64: 1, 128, 4>}]} {
    %c0 = arith.constant 0 : index
    %c0_0 = arith.constant 0 : index
    %c0_1 = arith.constant 0 : index
    %0 = vector.load %arg1[%c0, %c0_0, %c0_1] : memref<1x1x1024xf32, #tpu.memory_space<vmem>>, vector<1x1x1024xf32>
    %1 = vector.shape_cast %0 : vector<1x1x1024xf32> to vector<1x1024xf32>
    %cst = arith.constant 0.00392156886 : f32
    %2 = vector.broadcast %cst : f32 to vector<1x1024xf32>
    %3 = arith.mulf %1, %2 : vector<1x1024xf32>
    %c0_2 = arith.constant 0 : index
    %c0_3 = arith.constant 0 : index
    %4 = vector.load %arg2[%c0_2, %c0_3] : memref<128x1xf32, #tpu.memory_space<vmem>>, vector<128x1xf32>
    %5 = vector.broadcast %3 : vector<1x1024xf32> to vector<128x1024xf32>
    %6 = vector.broadcast %4 : vector<128x1xf32> to vector<128x1024xf32>
    %7 = arith.mulf %5, %6 : vector<128x1024xf32>
    %c0_4 = arith.constant 0 : index
    %c0_5 = arith.constant 0 : index
    %8 = vector.load %arg3[%c0_4, %c0_5] : memref<128x1xf32, #tpu.memory_space<vmem>>, vector<128x1xf32>
    %9 = vector.broadcast %8 : vector<128x1xf32> to vector<128x1024xf32>
    %10 = arith.addf %7, %9 : vector<128x1024xf32>
    %cst_6 = arith.constant 0.000000e+00 : f32
    %11 = vector.broadcast %cst_6 : f32 to vector<128x1024xf32>
    %12 = arith.cmpf ogt, %10, %11 : vector<128x1024xf32>
    %cst_7 = arith.constant 0.00999999977 : f32
    %13 = vector.broadcast %cst_7 : f32 to vector<128x1024xf32>
    %14 = arith.mulf %13, %10 : vector<128x1024xf32>
    %15 = arith.select %12, %10, %14 : vector<128x1024xi1>, vector<128x1024xf32>
    %c0_8 = arith.constant 0 : index
    %c0_9 = arith.constant 0 : index
    %c0_10 = arith.constant 0 : index
    %c0_11 = arith.constant 0 : index
    %16 = vector.load %arg4[%c0_8, %c0_9, %c0_10, %c0_11] : memref<4x4x128x128xf32, #tpu.memory_space<vmem>>, vector<1x1x128x128xf32>
    %17 = vector.shape_cast %16 : vector<1x1x128x128xf32> to vector<128x128xf32>
    %18 = vector.extract_strided_slice %15 {offsets = [0, 0], sizes = [128, 256], strides = [1, 1]} : vector<128x1024xf32> to vector<128x256xf32>
    %cst_12 = arith.constant dense<0.000000e+00> : vector<128x256xf32>
    %19 = tpu.matmul %17, %18, %cst_12 {dimension_numbers = #tpu.dot_dimension_numbers<[1], [0], [0], [1], [0, 0, 1, 1], [], []>} : vector<128x128xf32>, vector<128x256xf32>, vector<128x256xf32> -> vector<128x256xf32>
    %c0_13 = arith.constant 0 : index
    %c1 = arith.constant 1 : index
    %c0_14 = arith.constant 0 : index
    %c0_15 = arith.constant 0 : index
    %20 = vector.load %arg4[%c0_13, %c1, %c0_14, %c0_15] : memref<4x4x128x128xf32, #tpu.memory_space<vmem>>, vector<1x1x128x128xf32>
    %21 = vector.shape_cast %20 : vector<1x1x128x128xf32> to vector<128x128xf32>
    %22 = vector.extract_strided_slice %15 {offsets = [0, 256], sizes = [128, 256], strides = [1, 1]} : vector<128x1024xf32> to vector<128x256xf32>
    %cst_16 = arith.constant dense<0.000000e+00> : vector<128x256xf32>
    %23 = tpu.matmul %21, %22, %cst_16 {dimension_numbers = #tpu.dot_dimension_numbers<[1], [0], [0], [1], [0, 0, 1, 1], [], []>} : vector<128x128xf32>, vector<128x256xf32>, vector<128x256xf32> -> vector<128x256xf32>
    %24 = arith.addf %19, %23 : vector<128x256xf32>
    %c0_17 = arith.constant 0 : index
    %c2 = arith.constant 2 : index
    %c0_18 = arith.constant 0 : index
    %c0_19 = arith.constant 0 : index
    %25 = vector.load %arg4[%c0_17, %c2, %c0_18, %c0_19] : memref<4x4x128x128xf32, #tpu.memory_space<vmem>>, vector<1x1x128x128xf32>
    %26 = vector.shape_cast %25 : vector<1x1x128x128xf32> to vector<128x128xf32>
    %27 = vector.extract_strided_slice %15 {offsets = [0, 512], sizes = [128, 256], strides = [1, 1]} : vector<128x1024xf32> to vector<128x256xf32>
    %cst_20 = arith.constant dense<0.000000e+00> : vector<128x256xf32>
    %28 = tpu.matmul %26, %27, %cst_20 {dimension_numbers = #tpu.dot_dimension_numbers<[1], [0], [0], [1], [0, 0, 1, 1], [], []>} : vector<128x128xf32>, vector<128x256xf32>, vector<128x256xf32> -> vector<128x256xf32>
    %29 = arith.addf %24, %28 : vector<128x256xf32>
    %c0_21 = arith.constant 0 : index
    %c3 = arith.constant 3 : index
    %c0_22 = arith.constant 0 : index
    %c0_23 = arith.constant 0 : index
    %30 = vector.load %arg4[%c0_21, %c3, %c0_22, %c0_23] : memref<4x4x128x128xf32, #tpu.memory_space<vmem>>, vector<1x1x128x128xf32>
    %31 = vector.shape_cast %30 : vector<1x1x128x128xf32> to vector<128x128xf32>
    %32 = vector.extract_strided_slice %15 {offsets = [0, 768], sizes = [128, 256], strides = [1, 1]} : vector<128x1024xf32> to vector<128x256xf32>
    %cst_24 = arith.constant dense<0.000000e+00> : vector<128x256xf32>
    %33 = tpu.matmul %31, %32, %cst_24 {dimension_numbers = #tpu.dot_dimension_numbers<[1], [0], [0], [1], [0, 0, 1, 1], [], []>} : vector<128x128xf32>, vector<128x256xf32>, vector<128x256xf32> -> vector<128x256xf32>
    %34 = arith.addf %29, %33 : vector<128x256xf32>
    %c0_25 = arith.constant 0 : index
    %c0_26 = arith.constant 0 : index
    %c0_27 = arith.constant 0 : index
    %35 = vector.load %arg5[%c0_25, %c0_26, %c0_27] : memref<4x128x1xf32, #tpu.memory_space<vmem>>, vector<1x128x1xf32>
    %36 = vector.shape_cast %35 : vector<1x128x1xf32> to vector<128x1xf32>
    %37 = vector.broadcast %36 : vector<128x1xf32> to vector<128x256xf32>
    %38 = arith.addf %34, %37 : vector<128x256xf32>
    %cst_28 = arith.constant 0.000000e+00 : f32
    %39 = vector.broadcast %cst_28 : f32 to vector<128x256xf32>
    %40 = arith.cmpf ogt, %38, %39 : vector<128x256xf32>
    %cst_29 = arith.constant 0.00999999977 : f32
    %41 = vector.broadcast %cst_29 : f32 to vector<128x256xf32>
    %42 = arith.mulf %41, %38 : vector<128x256xf32>
    %43 = arith.select %40, %38, %42 : vector<128x256xi1>, vector<128x256xf32>
    %c0_30 = arith.constant 0 : index
    %c0_31 = arith.constant 0 : index
    %c0_32 = arith.constant 0 : index
    %44 = vector.load %arg6[%c0_30, %c0_31, %c0_32] : memref<4x128x128xf32, #tpu.memory_space<vmem>>, vector<1x128x128xf32>
    %45 = vector.shape_cast %44 : vector<1x128x128xf32> to vector<128x128xf32>
    %46 = arith.mulf %43, %43 : vector<128x256xf32>
    %cst_33 = arith.constant dense<0.000000e+00> : vector<128x256xf32>
    %47 = tpu.matmul %45, %46, %cst_33 {dimension_numbers = #tpu.dot_dimension_numbers<[1], [0], [0], [1], [0, 0, 1, 1], [], []>} : vector<128x128xf32>, vector<128x256xf32>, vector<128x256xf32> -> vector<128x256xf32>
    %c0_34 = arith.constant 0 : index
    %c0_35 = arith.constant 0 : index
    %c0_36 = arith.constant 0 : index
    %48 = vector.load %arg7[%c0_34, %c0_35, %c0_36] : memref<4x128x1xf32, #tpu.memory_space<vmem>>, vector<1x128x1xf32>
    %49 = vector.shape_cast %48 : vector<1x128x1xf32> to vector<128x1xf32>
    %50 = vector.broadcast %49 : vector<128x1xf32> to vector<128x256xf32>
    %51 = arith.addf %47, %50 : vector<128x256xf32>
    %52 = math.rsqrt %51 : vector<128x256xf32>
    %53 = arith.mulf %43, %52 : vector<128x256xf32>
    %c1_37 = arith.constant 1 : index
    %c0_38 = arith.constant 0 : index
    %c0_39 = arith.constant 0 : index
    %c0_40 = arith.constant 0 : index
    %54 = vector.load %arg4[%c1_37, %c0_38, %c0_39, %c0_40] : memref<4x4x128x128xf32, #tpu.memory_space<vmem>>, vector<1x1x128x128xf32>
    %55 = vector.shape_cast %54 : vector<1x1x128x128xf32> to vector<128x128xf32>
    %56 = vector.extract_strided_slice %53 {offsets = [0, 0], sizes = [128, 64], strides = [1, 1]} : vector<128x256xf32> to vector<128x64xf32>
    %cst_41 = arith.constant dense<0.000000e+00> : vector<128x64xf32>
    %57 = tpu.matmul %55, %56, %cst_41 {dimension_numbers = #tpu.dot_dimension_numbers<[1], [0], [0], [1], [0, 0, 1, 1], [], []>} : vector<128x128xf32>, vector<128x64xf32>, vector<128x64xf32> -> vector<128x64xf32>
    %c1_42 = arith.constant 1 : index
    %c1_43 = arith.constant 1 : index
    %c0_44 = arith.constant 0 : index
    %c0_45 = arith.constant 0 : index
    %58 = vector.load %arg4[%c1_42, %c1_43, %c0_44, %c0_45] : memref<4x4x128x128xf32, #tpu.memory_space<vmem>>, vector<1x1x128x128xf32>
    %59 = vector.shape_cast %58 : vector<1x1x128x128xf32> to vector<128x128xf32>
    %60 = vector.extract_strided_slice %53 {offsets = [0, 64], sizes = [128, 64], strides = [1, 1]} : vector<128x256xf32> to vector<128x64xf32>
    %cst_46 = arith.constant dense<0.000000e+00> : vector<128x64xf32>
    %61 = tpu.matmul %59, %60, %cst_46 {dimension_numbers = #tpu.dot_dimension_numbers<[1], [0], [0], [1], [0, 0, 1, 1], [], []>} : vector<128x128xf32>, vector<128x64xf32>, vector<128x64xf32> -> vector<128x64xf32>
    %62 = arith.addf %57, %61 : vector<128x64xf32>
    %c1_47 = arith.constant 1 : index
    %c2_48 = arith.constant 2 : index
    %c0_49 = arith.constant 0 : index
    %c0_50 = arith.constant 0 : index
    %63 = vector.load %arg4[%c1_47, %c2_48, %c0_49, %c0_50] : memref<4x4x128x128xf32, #tpu.memory_space<vmem>>, vector<1x1x128x128xf32>
    %64 = vector.shape_cast %63 : vector<1x1x128x128xf32> to vector<128x128xf32>
    %65 = vector.extract_strided_slice %53 {offsets = [0, 128], sizes = [128, 64], strides = [1, 1]} : vector<128x256xf32> to vector<128x64xf32>
    %cst_51 = arith.constant dense<0.000000e+00> : vector<128x64xf32>
    %66 = tpu.matmul %64, %65, %cst_51 {dimension_numbers = #tpu.dot_dimension_numbers<[1], [0], [0], [1], [0, 0, 1, 1], [], []>} : vector<128x128xf32>, vector<128x64xf32>, vector<128x64xf32> -> vector<128x64xf32>
    %67 = arith.addf %62, %66 : vector<128x64xf32>
    %c1_52 = arith.constant 1 : index
    %c3_53 = arith.constant 3 : index
    %c0_54 = arith.constant 0 : index
    %c0_55 = arith.constant 0 : index
    %68 = vector.load %arg4[%c1_52, %c3_53, %c0_54, %c0_55] : memref<4x4x128x128xf32, #tpu.memory_space<vmem>>, vector<1x1x128x128xf32>
    %69 = vector.shape_cast %68 : vector<1x1x128x128xf32> to vector<128x128xf32>
    %70 = vector.extract_strided_slice %53 {offsets = [0, 192], sizes = [128, 64], strides = [1, 1]} : vector<128x256xf32> to vector<128x64xf32>
    %cst_56 = arith.constant dense<0.000000e+00> : vector<128x64xf32>
    %71 = tpu.matmul %69, %70, %cst_56 {dimension_numbers = #tpu.dot_dimension_numbers<[1], [0], [0], [1], [0, 0, 1, 1], [], []>} : vector<128x128xf32>, vector<128x64xf32>, vector<128x64xf32> -> vector<128x64xf32>
    %72 = arith.addf %67, %71 : vector<128x64xf32>
    %c1_57 = arith.constant 1 : index
    %c0_58 = arith.constant 0 : index
    %c0_59 = arith.constant 0 : index
    %73 = vector.load %arg5[%c1_57, %c0_58, %c0_59] : memref<4x128x1xf32, #tpu.memory_space<vmem>>, vector<1x128x1xf32>
    %74 = vector.shape_cast %73 : vector<1x128x1xf32> to vector<128x1xf32>
    %75 = vector.broadcast %74 : vector<128x1xf32> to vector<128x64xf32>
    %76 = arith.addf %72, %75 : vector<128x64xf32>
    %cst_60 = arith.constant 0.000000e+00 : f32
    %77 = vector.broadcast %cst_60 : f32 to vector<128x64xf32>
    %78 = arith.cmpf ogt, %76, %77 : vector<128x64xf32>
    %cst_61 = arith.constant 0.00999999977 : f32
    %79 = vector.broadcast %cst_61 : f32 to vector<128x64xf32>
    %80 = arith.mulf %79, %76 : vector<128x64xf32>
    %81 = arith.select %78, %76, %80 : vector<128x64xi1>, vector<128x64xf32>
    %c1_62 = arith.constant 1 : index
    %c0_63 = arith.constant 0 : index
    %c0_64 = arith.constant 0 : index
    %82 = vector.load %arg6[%c1_62, %c0_63, %c0_64] : memref<4x128x128xf32, #tpu.memory_space<vmem>>, vector<1x128x128xf32>
    %83 = vector.shape_cast %82 : vector<1x128x128xf32> to vector<128x128xf32>
    %84 = arith.mulf %81, %81 : vector<128x64xf32>
    %cst_65 = arith.constant dense<0.000000e+00> : vector<128x64xf32>
    %85 = tpu.matmul %83, %84, %cst_65 {dimension_numbers = #tpu.dot_dimension_numbers<[1], [0], [0], [1], [0, 0, 1, 1], [], []>} : vector<128x128xf32>, vector<128x64xf32>, vector<128x64xf32> -> vector<128x64xf32>
    %c1_66 = arith.constant 1 : index
    %c0_67 = arith.constant 0 : index
    %c0_68 = arith.constant 0 : index
    %86 = vector.load %arg7[%c1_66, %c0_67, %c0_68] : memref<4x128x1xf32, #tpu.memory_space<vmem>>, vector<1x128x1xf32>
    %87 = vector.shape_cast %86 : vector<1x128x1xf32> to vector<128x1xf32>
    %88 = vector.broadcast %87 : vector<128x1xf32> to vector<128x64xf32>
    %89 = arith.addf %85, %88 : vector<128x64xf32>
    %90 = math.rsqrt %89 : vector<128x64xf32>
    %91 = arith.mulf %81, %90 : vector<128x64xf32>
    %c2_69 = arith.constant 2 : index
    %c0_70 = arith.constant 0 : index
    %c0_71 = arith.constant 0 : index
    %c0_72 = arith.constant 0 : index
    %92 = vector.load %arg4[%c2_69, %c0_70, %c0_71, %c0_72] : memref<4x4x128x128xf32, #tpu.memory_space<vmem>>, vector<1x1x128x128xf32>
    %93 = vector.shape_cast %92 : vector<1x1x128x128xf32> to vector<128x128xf32>
    %94 = vector.extract_strided_slice %91 {offsets = [0, 0], sizes = [128, 16], strides = [1, 1]} : vector<128x64xf32> to vector<128x16xf32>
    %cst_73 = arith.constant dense<0.000000e+00> : vector<128x16xf32>
    %95 = tpu.matmul %93, %94, %cst_73 {dimension_numbers = #tpu.dot_dimension_numbers<[1], [0], [0], [1], [0, 0, 1, 1], [], []>} : vector<128x128xf32>, vector<128x16xf32>, vector<128x16xf32> -> vector<128x16xf32>
    %c2_74 = arith.constant 2 : index
    %c1_75 = arith.constant 1 : index
    %c0_76 = arith.constant 0 : index
    %c0_77 = arith.constant 0 : index
    %96 = vector.load %arg4[%c2_74, %c1_75, %c0_76, %c0_77] : memref<4x4x128x128xf32, #tpu.memory_space<vmem>>, vector<1x1x128x128xf32>
    %97 = vector.shape_cast %96 : vector<1x1x128x128xf32> to vector<128x128xf32>
    %98 = vector.extract_strided_slice %91 {offsets = [0, 16], sizes = [128, 16], strides = [1, 1]} : vector<128x64xf32> to vector<128x16xf32>
    %cst_78 = arith.constant dense<0.000000e+00> : vector<128x16xf32>
    %99 = tpu.matmul %97, %98, %cst_78 {dimension_numbers = #tpu.dot_dimension_numbers<[1], [0], [0], [1], [0, 0, 1, 1], [], []>} : vector<128x128xf32>, vector<128x16xf32>, vector<128x16xf32> -> vector<128x16xf32>
    %100 = arith.addf %95, %99 : vector<128x16xf32>
    %c2_79 = arith.constant 2 : index
    %c2_80 = arith.constant 2 : index
    %c0_81 = arith.constant 0 : index
    %c0_82 = arith.constant 0 : index
    %101 = vector.load %arg4[%c2_79, %c2_80, %c0_81, %c0_82] : memref<4x4x128x128xf32, #tpu.memory_space<vmem>>, vector<1x1x128x128xf32>
    %102 = vector.shape_cast %101 : vector<1x1x128x128xf32> to vector<128x128xf32>
    %103 = vector.extract_strided_slice %91 {offsets = [0, 32], sizes = [128, 16], strides = [1, 1]} : vector<128x64xf32> to vector<128x16xf32>
    %cst_83 = arith.constant dense<0.000000e+00> : vector<128x16xf32>
    %104 = tpu.matmul %102, %103, %cst_83 {dimension_numbers = #tpu.dot_dimension_numbers<[1], [0], [0], [1], [0, 0, 1, 1], [], []>} : vector<128x128xf32>, vector<128x16xf32>, vector<128x16xf32> -> vector<128x16xf32>
    %105 = arith.addf %100, %104 : vector<128x16xf32>
    %c2_84 = arith.constant 2 : index
    %c3_85 = arith.constant 3 : index
    %c0_86 = arith.constant 0 : index
    %c0_87 = arith.constant 0 : index
    %106 = vector.load %arg4[%c2_84, %c3_85, %c0_86, %c0_87] : memref<4x4x128x128xf32, #tpu.memory_space<vmem>>, vector<1x1x128x128xf32>
    %107 = vector.shape_cast %106 : vector<1x1x128x128xf32> to vector<128x128xf32>
    %108 = vector.extract_strided_slice %91 {offsets = [0, 48], sizes = [128, 16], strides = [1, 1]} : vector<128x64xf32> to vector<128x16xf32>
    %cst_88 = arith.constant dense<0.000000e+00> : vector<128x16xf32>
    %109 = tpu.matmul %107, %108, %cst_88 {dimension_numbers = #tpu.dot_dimension_numbers<[1], [0], [0], [1], [0, 0, 1, 1], [], []>} : vector<128x128xf32>, vector<128x16xf32>, vector<128x16xf32> -> vector<128x16xf32>
    %110 = arith.addf %105, %109 : vector<128x16xf32>
    %c2_89 = arith.constant 2 : index
    %c0_90 = arith.constant 0 : index
    %c0_91 = arith.constant 0 : index
    %111 = vector.load %arg5[%c2_89, %c0_90, %c0_91] : memref<4x128x1xf32, #tpu.memory_space<vmem>>, vector<1x128x1xf32>
    %112 = vector.shape_cast %111 : vector<1x128x1xf32> to vector<128x1xf32>
    %113 = vector.broadcast %112 : vector<128x1xf32> to vector<128x16xf32>
    %114 = arith.addf %110, %113 : vector<128x16xf32>
    %cst_92 = arith.constant 0.000000e+00 : f32
    %115 = vector.broadcast %cst_92 : f32 to vector<128x16xf32>
    %116 = arith.cmpf ogt, %114, %115 : vector<128x16xf32>
    %cst_93 = arith.constant 0.00999999977 : f32
    %117 = vector.broadcast %cst_93 : f32 to vector<128x16xf32>
    %118 = arith.mulf %117, %114 : vector<128x16xf32>
    %119 = arith.select %116, %114, %118 : vector<128x16xi1>, vector<128x16xf32>
    %c2_94 = arith.constant 2 : index
    %c0_95 = arith.constant 0 : index
    %c0_96 = arith.constant 0 : index
    %120 = vector.load %arg6[%c2_94, %c0_95, %c0_96] : memref<4x128x128xf32, #tpu.memory_space<vmem>>, vector<1x128x128xf32>
    %121 = vector.shape_cast %120 : vector<1x128x128xf32> to vector<128x128xf32>
    %122 = arith.mulf %119, %119 : vector<128x16xf32>
    %cst_97 = arith.constant dense<0.000000e+00> : vector<128x16xf32>
    %123 = tpu.matmul %121, %122, %cst_97 {dimension_numbers = #tpu.dot_dimension_numbers<[1], [0], [0], [1], [0, 0, 1, 1], [], []>} : vector<128x128xf32>, vector<128x16xf32>, vector<128x16xf32> -> vector<128x16xf32>
    %c2_98 = arith.constant 2 : index
    %c0_99 = arith.constant 0 : index
    %c0_100 = arith.constant 0 : index
    %124 = vector.load %arg7[%c2_98, %c0_99, %c0_100] : memref<4x128x1xf32, #tpu.memory_space<vmem>>, vector<1x128x1xf32>
    %125 = vector.shape_cast %124 : vector<1x128x1xf32> to vector<128x1xf32>
    %126 = vector.broadcast %125 : vector<128x1xf32> to vector<128x16xf32>
    %127 = arith.addf %123, %126 : vector<128x16xf32>
    %128 = math.rsqrt %127 : vector<128x16xf32>
    %129 = arith.mulf %119, %128 : vector<128x16xf32>
    %c3_101 = arith.constant 3 : index
    %c0_102 = arith.constant 0 : index
    %c0_103 = arith.constant 0 : index
    %c0_104 = arith.constant 0 : index
    %130 = vector.load %arg4[%c3_101, %c0_102, %c0_103, %c0_104] : memref<4x4x128x128xf32, #tpu.memory_space<vmem>>, vector<1x1x128x128xf32>
    %131 = vector.shape_cast %130 : vector<1x1x128x128xf32> to vector<128x128xf32>
    %132 = vector.extract_strided_slice %129 {offsets = [0, 0], sizes = [128, 4], strides = [1, 1]} : vector<128x16xf32> to vector<128x4xf32>
    %cst_105 = arith.constant dense<0.000000e+00> : vector<128x4xf32>
    %133 = tpu.matmul %131, %132, %cst_105 {dimension_numbers = #tpu.dot_dimension_numbers<[1], [0], [0], [1], [0, 0, 1, 1], [], []>} : vector<128x128xf32>, vector<128x4xf32>, vector<128x4xf32> -> vector<128x4xf32>
    %c3_106 = arith.constant 3 : index
    %c1_107 = arith.constant 1 : index
    %c0_108 = arith.constant 0 : index
    %c0_109 = arith.constant 0 : index
    %134 = vector.load %arg4[%c3_106, %c1_107, %c0_108, %c0_109] : memref<4x4x128x128xf32, #tpu.memory_space<vmem>>, vector<1x1x128x128xf32>
    %135 = vector.shape_cast %134 : vector<1x1x128x128xf32> to vector<128x128xf32>
    %136 = vector.extract_strided_slice %129 {offsets = [0, 4], sizes = [128, 4], strides = [1, 1]} : vector<128x16xf32> to vector<128x4xf32>
    %cst_110 = arith.constant dense<0.000000e+00> : vector<128x4xf32>
    %137 = tpu.matmul %135, %136, %cst_110 {dimension_numbers = #tpu.dot_dimension_numbers<[1], [0], [0], [1], [0, 0, 1, 1], [], []>} : vector<128x128xf32>, vector<128x4xf32>, vector<128x4xf32> -> vector<128x4xf32>
    %138 = arith.addf %133, %137 : vector<128x4xf32>
    %c3_111 = arith.constant 3 : index
    %c2_112 = arith.constant 2 : index
    %c0_113 = arith.constant 0 : index
    %c0_114 = arith.constant 0 : index
    %139 = vector.load %arg4[%c3_111, %c2_112, %c0_113, %c0_114] : memref<4x4x128x128xf32, #tpu.memory_space<vmem>>, vector<1x1x128x128xf32>
    %140 = vector.shape_cast %139 : vector<1x1x128x128xf32> to vector<128x128xf32>
    %141 = vector.extract_strided_slice %129 {offsets = [0, 8], sizes = [128, 4], strides = [1, 1]} : vector<128x16xf32> to vector<128x4xf32>
    %cst_115 = arith.constant dense<0.000000e+00> : vector<128x4xf32>
    %142 = tpu.matmul %140, %141, %cst_115 {dimension_numbers = #tpu.dot_dimension_numbers<[1], [0], [0], [1], [0, 0, 1, 1], [], []>} : vector<128x128xf32>, vector<128x4xf32>, vector<128x4xf32> -> vector<128x4xf32>
    %143 = arith.addf %138, %142 : vector<128x4xf32>
    %c3_116 = arith.constant 3 : index
    %c3_117 = arith.constant 3 : index
    %c0_118 = arith.constant 0 : index
    %c0_119 = arith.constant 0 : index
    %144 = vector.load %arg4[%c3_116, %c3_117, %c0_118, %c0_119] : memref<4x4x128x128xf32, #tpu.memory_space<vmem>>, vector<1x1x128x128xf32>
    %145 = vector.shape_cast %144 : vector<1x1x128x128xf32> to vector<128x128xf32>
    %146 = vector.extract_strided_slice %129 {offsets = [0, 12], sizes = [128, 4], strides = [1, 1]} : vector<128x16xf32> to vector<128x4xf32>
    %cst_120 = arith.constant dense<0.000000e+00> : vector<128x4xf32>
    %147 = tpu.matmul %145, %146, %cst_120 {dimension_numbers = #tpu.dot_dimension_numbers<[1], [0], [0], [1], [0, 0, 1, 1], [], []>} : vector<128x128xf32>, vector<128x4xf32>, vector<128x4xf32> -> vector<128x4xf32>
    %148 = arith.addf %143, %147 : vector<128x4xf32>
    %c3_121 = arith.constant 3 : index
    %c0_122 = arith.constant 0 : index
    %c0_123 = arith.constant 0 : index
    %149 = vector.load %arg5[%c3_121, %c0_122, %c0_123] : memref<4x128x1xf32, #tpu.memory_space<vmem>>, vector<1x128x1xf32>
    %150 = vector.shape_cast %149 : vector<1x128x1xf32> to vector<128x1xf32>
    %151 = vector.broadcast %150 : vector<128x1xf32> to vector<128x4xf32>
    %152 = arith.addf %148, %151 : vector<128x4xf32>
    %cst_124 = arith.constant 0.000000e+00 : f32
    %153 = vector.broadcast %cst_124 : f32 to vector<128x4xf32>
    %154 = arith.cmpf ogt, %152, %153 : vector<128x4xf32>
    %cst_125 = arith.constant 0.00999999977 : f32
    %155 = vector.broadcast %cst_125 : f32 to vector<128x4xf32>
    %156 = arith.mulf %155, %152 : vector<128x4xf32>
    %157 = arith.select %154, %152, %156 : vector<128x4xi1>, vector<128x4xf32>
    %c3_126 = arith.constant 3 : index
    %c0_127 = arith.constant 0 : index
    %c0_128 = arith.constant 0 : index
    %158 = vector.load %arg6[%c3_126, %c0_127, %c0_128] : memref<4x128x128xf32, #tpu.memory_space<vmem>>, vector<1x128x128xf32>
    %159 = vector.shape_cast %158 : vector<1x128x128xf32> to vector<128x128xf32>
    %160 = arith.mulf %157, %157 : vector<128x4xf32>
    %cst_129 = arith.constant dense<0.000000e+00> : vector<128x4xf32>
    %161 = tpu.matmul %159, %160, %cst_129 {dimension_numbers = #tpu.dot_dimension_numbers<[1], [0], [0], [1], [0, 0, 1, 1], [], []>} : vector<128x128xf32>, vector<128x4xf32>, vector<128x4xf32> -> vector<128x4xf32>
    %c3_130 = arith.constant 3 : index
    %c0_131 = arith.constant 0 : index
    %c0_132 = arith.constant 0 : index
    %162 = vector.load %arg7[%c3_130, %c0_131, %c0_132] : memref<4x128x1xf32, #tpu.memory_space<vmem>>, vector<1x128x1xf32>
    %163 = vector.shape_cast %162 : vector<1x128x1xf32> to vector<128x1xf32>
    %164 = vector.broadcast %163 : vector<128x1xf32> to vector<128x4xf32>
    %165 = arith.addf %161, %164 : vector<128x4xf32>
    %166 = math.rsqrt %165 : vector<128x4xf32>
    %167 = arith.mulf %157, %166 : vector<128x4xf32>
    %c0_133 = arith.constant 0 : index
    %c0_134 = arith.constant 0 : index
    %c0_135 = arith.constant 0 : index
    %168 = vector.load %arg8[%c0_133, %c0_134, %c0_135] : memref<1x128x4xf32, #tpu.memory_space<vmem>>, vector<1x128x4xf32>
    %169 = vector.shape_cast %168 : vector<1x128x4xf32> to vector<128x4xf32>
    %170 = vector.shape_cast %167 : vector<128x4xf32> to vector<1x128x4xf32>
    tpu.vector_store %arg8[%c0_133, %c0_134, %c0_135], %170 {strides = array<i32>} : memref<1x128x4xf32, #tpu.memory_space<vmem>>, vector<1x128x4xf32>,
    return
  }
  func.func @transform_0(%arg0: i32) -> (i32, i32, i32) {
    %c0_i32 = arith.constant 0 : i32
    %c0_i32_0 = arith.constant 0 : i32
    %c0_i32_1 = arith.constant 0 : i32
    return %arg0, %c0_i32, %c0_i32_0 : i32, i32, i32
  }
  func.func @transform_1(%arg0: i32) -> (i32, i32) {
    %c0_i32 = arith.constant 0 : i32
    %c0_i32_0 = arith.constant 0 : i32
    %c0_i32_1 = arith.constant 0 : i32
    return %c0_i32, %c0_i32_0 : i32, i32
  }
  func.func @transform_2(%arg0: i32) -> (i32, i32) {
    %c0_i32 = arith.constant 0 : i32
    %c0_i32_0 = arith.constant 0 : i32
    %c0_i32_1 = arith.constant 0 : i32
    return %c0_i32, %c0_i32_0 : i32, i32
  }
  func.func @transform_3(%arg0: i32) -> (i32, i32, i32, i32) {
    %c0_i32 = arith.constant 0 : i32
    %c0_i32_0 = arith.constant 0 : i32
    %c0_i32_1 = arith.constant 0 : i32
    %c0_i32_2 = arith.constant 0 : i32
    %c0_i32_3 = arith.constant 0 : i32
    return %c0_i32, %c0_i32_0, %c0_i32_1, %c0_i32_2 : i32, i32, i32, i32
  }
  func.func @transform_4(%arg0: i32) -> (i32, i32, i32) {
    %c0_i32 = arith.constant 0 : i32
    %c0_i32_0 = arith.constant 0 : i32
    %c0_i32_1 = arith.constant 0 : i32
    %c0_i32_2 = arith.constant 0 : i32
    return %c0_i32, %c0_i32_0, %c0_i32_1 : i32, i32, i32
  }
  func.func @transform_5(%arg0: i32) -> (i32, i32, i32) {
    %c0_i32 = arith.constant 0 : i32
    %c0_i32_0 = arith.constant 0 : i32
    %c0_i32_1 = arith.constant 0 : i32
    %c0_i32_2 = arith.constant 0 : i32
    return %c0_i32, %c0_i32_0, %c0_i32_1 : i32, i32, i32
  }
  func.func @transform_6(%arg0: i32) -> (i32, i32, i32) {
    %c0_i32 = arith.constant 0 : i32
    %c0_i32_0 = arith.constant 0 : i32
    %c0_i32_1 = arith.constant 0 : i32
    %c0_i32_2 = arith.constant 0 : i32
    return %c0_i32, %c0_i32_0, %c0_i32_1 : i32, i32, i32
  }
  func.func @transform_7(%arg0: i32) -> (i32, i32, i32) {
    %c0_i32 = arith.constant 0 : i32
    %c0_i32_0 = arith.constant 0 : i32
    %c0_i32_1 = arith.constant 0 : i32
    return %arg0, %c0_i32, %c0_i32_0 : i32, i32, i32
  }
}

</mosaic_0001>

<llo_original>
// kernel: encode_net_forward.1
$region0: #{encode_net_forward.1}
  #allocation0 [shape = 'u32[]', space=smem, size = 0x4, offset = 0x4, fixed_abs, tag = 'smem constant byte address 0x4 - core index']
  #allocation1 [shape = 'u32[72,128]{1,0:T(1,128)}', space=vmem, size = 0x9000, scoped, tag = 'internal scratch']
  %s0 = inlined_call_operand.vmem [shape: f32[2,1,1024], index: 0, kind: input, shape index: {}]
  %s1 = inlined_call_operand.vmem [shape: f32[128,1], index: 1, kind: input, shape index: {}]
  %s2 = inlined_call_operand.vmem [shape: f32[128,1], index: 2, kind: input, shape index: {}]
  %s3 = inlined_call_operand.vmem [shape: f32[4,4,128,128], index: 3, kind: input, shape index: {}]
  %s4 = inlined_call_operand.vmem [shape: f32[4,128,1], index: 4, kind: input, shape index: {}]
  %s5 = inlined_call_operand.vmem [shape: f32[4,128,128], index: 5, kind: input, shape index: {}]
  %s6 = inlined_call_operand.vmem [shape: f32[4,128,1], index: 6, kind: input, shape index: {}]
  %s7 = inlined_call_operand.vmem [shape: f32[2,128,4], index: 7, kind: output, shape index: {}]
  %s8 = sld [smem:[#allocation0]]
  $region61: #{encode_net_forward.1} parent=0
    _
  %s10 = ssub.s32 1, %s8
  %s11 = scalar_select 0, %s10, %s8
  loop: start=0, step=1, limit=4
  $region2: #{encode_net_forward.1} parent=0 // loop_pre_header
    _
  $region3: #{encode_net_forward.1} parent=0 // loop_header
    %s13 = sphi 0, %s17
    %p14 = scmp.ge.s32.totalorder %s13, 4
    %s23 = sphi 0, %s25
    %s26 = sphi 0, %s23
    %s27 = sphi 0, %s26
    %s43 = sphi 0, %s27
    %s47 = sphi 0, %s47
    %s49 = sphi 0, %s47
    %s50 = sphi 0, %s49
    %s64 = sphi 0, %s50
    %s68 = sphi 0, %s68
    %s70 = sphi 0, %s68
    %s71 = sphi 0, %s70
    %s85 = sphi 0, %s71
    %s89 = sphi 0, %s89
    %s91 = sphi 0, %s89
    %s92 = sphi 0, %s91
    %s106 = sphi 0, %s92
    %s110 = sphi 0, %s110
    %s112 = sphi 0, %s110
    %s113 = sphi 0, %s112
    %s127 = sphi 0, %s113
    %s131 = sphi 0, %s131
    %s133 = sphi 0, %s131
    %s134 = sphi 0, %s133
    %s148 = sphi 0, %s134
    %s152 = sphi 0, %s152
    %s154 = sphi 0, %s152
    %s155 = sphi 0, %s154
    %s169 = sphi 0, %s155
    %s175 = sphi 0, %s177
    %s178 = sphi 0, %s175
    %s179 = sphi 0, %s178
    %s195 = sphi 0, %s179
  $region4: #{encode_net_forward.1} parent=0 // loop_header_branch
    %16 = sbr.rel (%p14) target = $region8
  $region5: #{encode_net_forward.1} parent=0 // loop_body
    %s18 = ssub.s32 %s13, 1
    %s19 = ssub.s32 %s13, 2
    %s20 = sadd.s32 %s13, 1
    %s21 = ssub.s32 %s13, %s20
    %p22 = scmp.eq.s32.totalorder %s21, 0
    %s24 = sadd.s32 %s23, 1
    %s25 = scalar_select %p22, %s23, %s24
    %p28 = pneg %p22
    %p29 = scmp.eq.s32.totalorder %s13, 1
    %p30 = por %p28, %p29
    %p31 = scmp.ne.s32.totalorder %s23, %s26
    %p32 = scmp.eq.s32.totalorder %s13, 0
    %p33 = por %p31, %p32
    %p34 = scmp.ne.s32.totalorder %s23, %s26
    %p35 = scmp.eq.s32.totalorder %s18, 1
    %p36 = por %p34, %p35
    %p37 = scmp.ne.s32.totalorder %s26, %s27
    %p38 = scmp.eq.s32.totalorder %s18, 0
    %p39 = por %p37, %p38
    %p40 = scmp.ne.s32.totalorder %s26, %s27
    %p41 = scmp.eq.s32.totalorder %s19, 1
    %p42 = por %p40, %p41
    %p44 = scmp.ne.s32.totalorder %s27, %s43
    %p45 = scmp.eq.s32.totalorder %s19, 0
    %p46 = por %p44, %p45
    %s48 = sadd.s32 %s47, 1
    %p51 = scmp.eq.s32.totalorder %s13, 1
    %p52 = scmp.ne.s32.totalorder %s47, %s49
    %p53 = scmp.eq.s32.totalorder %s13, 0
    %p54 = por %p52, %p53
    %p55 = scmp.ne.s32.totalorder %s47, %s49
    %p56 = scmp.eq.s32.totalorder %s18, 1
    %p57 = por %p55, %p56
    %p58 = scmp.ne.s32.totalorder %s49, %s50
    %p59 = scmp.eq.s32.totalorder %s18, 0
    %p60 = por %p58, %p59
    %p61 = scmp.ne.s32.totalorder %s49, %s50
    %p62 = scmp.eq.s32.totalorder %s19, 1
    %p63 = por %p61, %p62
    %p65 = scmp.ne.s32.totalorder %s50, %s64
    %p66 = scmp.eq.s32.totalorder %s19, 0
    %p67 = por %p65, %p66
    %s69 = sadd.s32 %s68, 1
    %p72 = scmp.eq.s32.totalorder %s13, 1
    %p73 = scmp.ne.s32.totalorder %s68, %s70
    %p74 = scmp.eq.s32.totalorder %s13, 0
    %p75 = por %p73, %p74
    %p76 = scmp.ne.s32.totalorder %s68, %s70
    %p77 = scmp.eq.s32.totalorder %s18, 1
    %p78 = por %p76, %p77
    %p79 = scmp.ne.s32.totalorder %s70, %s71
    %p80 = scmp.eq.s32.totalorder %s18, 0
    %p81 = por %p79, %p80
    %p82 = scmp.ne.s32.totalorder %s70, %s71
    %p83 = scmp.eq.s32.totalorder %s19, 1
    %p84 = por %p82, %p83
    %p86 = scmp.ne.s32.totalorder %s71, %s85
    %p87 = scmp.eq.s32.totalorder %s19, 0
    %p88 = por %p86, %p87
    %s90 = sadd.s32 %s89, 1
    %p93 = scmp.eq.s32.totalorder %s13, 1
    %p94 = scmp.ne.s32.totalorder %s89, %s91
    %p95 = scmp.eq.s32.totalorder %s13, 0
    %p96 = por %p94, %p95
    %p97 = scmp.ne.s32.totalorder %s89, %s91
    %p98 = scmp.eq.s32.totalorder %s18, 1
    %p99 = por %p97, %p98
    %p100 = scmp.ne.s32.totalorder %s91, %s92
    %p101 = scmp.eq.s32.totalorder %s18, 0
    %p102 = por %p100, %p101
    %p103 = scmp.ne.s32.totalorder %s91, %s92
    %p104 = scmp.eq.s32.totalorder %s19, 1
    %p105 = por %p103, %p104
    %p107 = scmp.ne.s32.totalorder %s92, %s106
    %p108 = scmp.eq.s32.totalorder %s19, 0
    %p109 = por %p107, %p108
    %s111 = sadd.s32 %s110, 1
    %p114 = scmp.eq.s32.totalorder %s13, 1
    %p115 = scmp.ne.s32.totalorder %s110, %s112
    %p116 = scmp.eq.s32.totalorder %s13, 0
    %p117 = por %p115, %p116
    %p118 = scmp.ne.s32.totalorder %s110, %s112
    %p119 = scmp.eq.s32.totalorder %s18, 1
    %p120 = por %p118, %p119
    %p121 = scmp.ne.s32.totalorder %s112, %s113
    %p122 = scmp.eq.s32.totalorder %s18, 0
    %p123 = por %p121, %p122
    %p124 = scmp.ne.s32.totalorder %s112, %s113
    %p125 = scmp.eq.s32.totalorder %s19, 1
    %p126 = por %p124, %p125
    %p128 = scmp.ne.s32.totalorder %s113, %s127
    %p129 = scmp.eq.s32.totalorder %s19, 0
    %p130 = por %p128, %p129
    %s132 = sadd.s32 %s131, 1
    %p135 = scmp.eq.s32.totalorder %s13, 1
    %p136 = scmp.ne.s32.totalorder %s131, %s133
    %p137 = scmp.eq.s32.totalorder %s13, 0
    %p138 = por %p136, %p137
    %p139 = scmp.ne.s32.totalorder %s131, %s133
    %p140 = scmp.eq.s32.totalorder %s18, 1
    %p141 = por %p139, %p140
    %p142 = scmp.ne.s32.totalorder %s133, %s134
    %p143 = scmp.eq.s32.totalorder %s18, 0
    %p144 = por %p142, %p143
    %p145 = scmp.ne.s32.totalorder %s133, %s134
    %p146 = scmp.eq.s32.totalorder %s19, 1
    %p147 = por %p145, %p146
    %p149 = scmp.ne.s32.totalorder %s134, %s148
    %p150 = scmp.eq.s32.totalorder %s19, 0
    %p151 = por %p149, %p150
    %s153 = sadd.s32 %s152, 1
    %p156 = scmp.eq.s32.totalorder %s13, 1
    %p157 = scmp.ne.s32.totalorder %s152, %s154
    %p158 = scmp.eq.s32.totalorder %s13, 0
    %p159 = por %p157, %p158
    %p160 = scmp.ne.s32.totalorder %s152, %s154
    %p161 = scmp.eq.s32.totalorder %s18, 1
    %p162 = por %p160, %p161
    %p163 = scmp.ne.s32.totalorder %s154, %s155
    %p164 = scmp.eq.s32.totalorder %s18, 0
    %p165 = por %p163, %p164
    %p166 = scmp.ne.s32.totalorder %s154, %s155
    %p167 = scmp.eq.s32.totalorder %s19, 1
    %p168 = por %p166, %p167
    %p170 = scmp.ne.s32.totalorder %s155, %s169
    %p171 = scmp.eq.s32.totalorder %s19, 0
    %p172 = por %p170, %p171
    %s173 = ssub.s32 %s13, %s20
    %p174 = scmp.eq.s32.totalorder %s173, 0
    %s176 = sadd.s32 %s175, 1
    %s177 = scalar_select %p174, %s175, %s176
    %p180 = pneg %p174
    %p181 = scmp.eq.s32.totalorder %s13, 1
    %p182 = por %p180, %p181
    %p183 = scmp.ne.s32.totalorder %s175, %s178
    %p184 = scmp.eq.s32.totalorder %s13, 0
    %p185 = por %p183, %p184
    %p186 = scmp.ne.s32.totalorder %s175, %s178
    %p187 = scmp.eq.s32.totalorder %s18, 1
    %p188 = por %p186, %p187
    %p189 = scmp.ne.s32.totalorder %s178, %s179
    %p190 = scmp.eq.s32.totalorder %s18, 0
    %p191 = por %p189, %p190
    %p192 = scmp.ne.s32.totalorder %s178, %s179
    %p193 = scmp.eq.s32.totalorder %s19, 1
    %p194 = por %p192, %p193
    %p196 = scmp.ne.s32.totalorder %s179, %s195
    %p197 = scmp.eq.s32.totalorder %s19, 0
    %p198 = por %p196, %p197
    %p199 = scmp.le.s32.totalorder 1, %s13
    %p200 = scmp.lt.s32.totalorder %s13, 3
    %p201 = pnand %p199, %p200
    %p202 = pneg %p201
    // Predicated region
    $region9: #{encode_net_forward.1} parent=5 // pred_check
      _
    $region10: #{encode_net_forward.1} parent=5 // pred_check_branch
      %204 = sbr.rel (%p201) target = $region12
    $region11: #{encode_net_forward.1} parent=5 // pred_region
      %s205 = ssub.s32 %s13, 1
      // Predicated region
      $region13: #{encode_net_forward.1} parent=11 // pred_check
        %p206 = pneg %p60
      $region14: #{encode_net_forward.1} parent=11 // pred_check_branch
        %208 = sbr.rel (%p206) target = $region16
      $region15: #{encode_net_forward.1} parent=11 // pred_region
        _
      $region16: #{encode_net_forward.1} parent=11 // pred_fallthru
        _
      // Predicated region
      $region17: #{encode_net_forward.1} parent=11 // pred_check
        %p209 = pneg %p81
      $region18: #{encode_net_forward.1} parent=11 // pred_check_branch
        %211 = sbr.rel (%p209) target = $region20
      $region19: #{encode_net_forward.1} parent=11 // pred_region
        _
      $region20: #{encode_net_forward.1} parent=11 // pred_fallthru
        _
      // Predicated region
      $region21: #{encode_net_forward.1} parent=11 // pred_check
        %p212 = pneg %p102
      $region22: #{encode_net_forward.1} parent=11 // pred_check_branch
        %214 = sbr.rel (%p212) target = $region24
      $region23: #{encode_net_forward.1} parent=11 // pred_region
        _
      $region24: #{encode_net_forward.1} parent=11 // pred_fallthru
        _
      // Predicated region
      $region25: #{encode_net_forward.1} parent=11 // pred_check
        %p215 = pneg %p123
      $region26: #{encode_net_forward.1} parent=11 // pred_check_branch
        %217 = sbr.rel (%p215) target = $region28
      $region27: #{encode_net_forward.1} parent=11 // pred_region
        _
      $region28: #{encode_net_forward.1} parent=11 // pred_fallthru
        _
      // Predicated region
      $region29: #{encode_net_forward.1} parent=11 // pred_check
        %p218 = pneg %p144
      $region30: #{encode_net_forward.1} parent=11 // pred_check_branch
        %220 = sbr.rel (%p218) target = $region32
      $region31: #{encode_net_forward.1} parent=11 // pred_region
        _
      $region32: #{encode_net_forward.1} parent=11 // pred_fallthru
        _
      // Predicated region
      $region33: #{encode_net_forward.1} parent=11 // pred_check
        %p221 = pneg %p165
      $region34: #{encode_net_forward.1} parent=11 // pred_check_branch
        %223 = sbr.rel (%p221) target = $region36
      $region35: #{encode_net_forward.1} parent=11 // pred_region
        _
      $region36: #{encode_net_forward.1} parent=11 // pred_fallthru
        _
    $region12: #{encode_net_forward.1} parent=5 // pred_fallthru
      _
    %p224 = scmp.lt.s32.totalorder %s13, 2
    // Predicated region
    $region37: #{encode_net_forward.1} parent=5 // pred_check
      %p225 = pneg %p224
    $region38: #{encode_net_forward.1} parent=5 // pred_check_branch
      %227 = sbr.rel (%p225) target = $region40
    $region39: #{encode_net_forward.1} parent=5 // pred_region
      // Predicated region
      $region41: #{encode_net_forward.1} parent=39 // pred_check
        %p228 = pneg %p33
      $region42: #{encode_net_forward.1} parent=39 // pred_check_branch
        %230 = sbr.rel (%p228) target = $region44
      $region43: #{encode_net_forward.1} parent=39 // pred_region
        %p231 = scmp.lt.s32.totalorder %s13, 1
        %s232 = scalar_select %p231, %s13, 1
        %s233 = smul.addr %s232, 8
        %s234 = scalar_lea.vmem %s0, %s233
      $region44: #{encode_net_forward.1} parent=39 // pred_fallthru
        _
    $region40: #{encode_net_forward.1} parent=5 // pred_fallthru
      _
    %p235 = scmp.le.s32.totalorder 1, %s13
    %p236 = scmp.lt.s32.totalorder %s13, 3
    %p237 = pnand %p235, %p236
    %p238 = pneg %p237
    // Predicated region
    $region45: #{encode_net_forward.1} parent=5 // pred_check
      _
    $region46: #{encode_net_forward.1} parent=5 // pred_check_branch
      %240 = sbr.rel (%p237) target = $region48
    $region47: #{encode_net_forward.1} parent=5 // pred_region
      %s241 = ssub.s32 %s13, 1
      %p242 = scmp.lt.s32.totalorder %s18, 1
      %s243 = scalar_select %p242, %s18, 1
      %s244 = smul.addr %s243, 8
      %s245 = scalar_lea.vmem %s0, %s244
      %p246 = pneg %p39
      %p247 = pneg %p36
      %p248 = pneg %p60
      %p249 = pneg %p57
      %p250 = pneg %p81
      %p251 = pneg %p78
      %p252 = pneg %p102
      %p253 = pneg %p99
      %p254 = pneg %p123
      %p255 = pneg %p120
      %p256 = pneg %p144
      %p257 = pneg %p141
      %p258 = pneg %p165
      %p259 = pneg %p162
      %p260 = pneg %p191
      %p261 = pneg %p188
      %p262 = scmp.lt.s32.totalorder %s18, 1
      %s263 = scalar_select %p262, %s18, 1
      %s264 = smul.addr %s263, 16
      %s265 = smul.addr %s264, 8
      %s266 = scalar_lea.vmem %s7, %s265
      %p267 = scmp.lt.s32.totalorder %s18, 1
      %s268 = scalar_select %p267, %s18, 1
      %s269 = smul.addr %s268, 8
      %s270 = scalar_lea.vmem %s0, %s269
      %p271 = scmp.lt.s32.totalorder %s18, 1
      %s272 = scalar_select %p271, %s18, 1
      %s273 = smul.addr %s272, 16
      %s274 = smul.addr %s273, 8
      %s275 = scalar_lea.vmem %s7, %s274
      %v276 = vld [vmem:[%s270] sm:$0xff]
      %v277 = vmul.f32 %v276, 0.003921569
      %v278 = vld [vmem:[%s1] sm:$0xff]
      %v279 = vld [vmem:[%s1 + $0x8] sm:$0xff]
      %v280 = vld [vmem:[%s1 + $0x10] sm:$0xff]
      %v281 = vld [vmem:[%s1 + $0x18] sm:$0xff]
      %v282 = vld [vmem:[%s1 + $0x20] sm:$0xff]
      %v283 = vld [vmem:[%s1 + $0x28] sm:$0xff]
      %v284 = vld [vmem:[%s1 + $0x30] sm:$0xff]
      %v285 = vld [vmem:[%s1 + $0x38] sm:$0xff]
      %v286 = vld [vmem:[%s1 + $0x40] sm:$0xff]
      %v287 = vld [vmem:[%s1 + $0x48] sm:$0xff]
      %v288 = vld [vmem:[%s1 + $0x50] sm:$0xff]
      %v289 = vld [vmem:[%s1 + $0x58] sm:$0xff]
      %v290 = vld [vmem:[%s1 + $0x60] sm:$0xff]
      %v291 = vld [vmem:[%s1 + $0x68] sm:$0xff]
      %v292 = vld [vmem:[%s1 + $0x70] sm:$0xff]
      %v293 = vld [vmem:[%s1 + $0x78] sm:$0xff]
      %v295 = vperm.slane %v277, 0
      %v296 = vperm.slane %v277, 1
      %v297 = vperm.slane %v277, 2
      %v298 = vperm.slane %v277, 3
      %v299 = vperm.slane %v277, 4
      %v300 = vperm.slane %v277, 5
      %v301 = vperm.slane %v277, 6
      %v302 = vperm.slane %v277, 7
      %312 = vset.pattern.permute.xlu0 0
      %313 = vperm.xlu0 %312, %v278
      %v314 = vpop.permute.xlu0 %313
      %317 = vset.pattern.permute.xlu0 0
      %318 = vperm.xlu0 %317, %v279
      %v319 = vpop.permute.xlu0 %318
      %322 = vset.pattern.permute.xlu0 0
      %323 = vperm.xlu0 %322, %v280
      %v324 = vpop.permute.xlu0 %323
      %327 = vset.pattern.permute.xlu0 0
      %328 = vperm.xlu0 %327, %v281
      %v329 = vpop.permute.xlu0 %328
      %332 = vset.pattern.permute.xlu0 0
      %333 = vperm.xlu0 %332, %v282
      %v334 = vpop.permute.xlu0 %333
      %337 = vset.pattern.permute.xlu0 0
      %338 = vperm.xlu0 %337, %v283
      %v339 = vpop.permute.xlu0 %338
      %342 = vset.pattern.permute.xlu0 0
      %343 = vperm.xlu0 %342, %v284
      %v344 = vpop.permute.xlu0 %343
      %347 = vset.pattern.permute.xlu0 0
      %348 = vperm.xlu0 %347, %v285
      %v349 = vpop.permute.xlu0 %348
      %352 = vset.pattern.permute.xlu0 0
      %353 = vperm.xlu0 %352, %v286
      %v354 = vpop.permute.xlu0 %353
      %357 = vset.pattern.permute.xlu0 0
      %358 = vperm.xlu0 %357, %v287
      %v359 = vpop.permute.xlu0 %358
      %362 = vset.pattern.permute.xlu0 0
      %363 = vperm.xlu0 %362, %v288
      %v364 = vpop.permute.xlu0 %363
      %367 = vset.pattern.permute.xlu0 0
      %368 = vperm.xlu0 %367, %v289
      %v369 = vpop.permute.xlu0 %368
      %372 = vset.pattern.permute.xlu0 0
      %373 = vperm.xlu0 %372, %v290
      %v374 = vpop.permute.xlu0 %373
      %377 = vset.pattern.permute.xlu0 0
      %378 = vperm.xlu0 %377, %v291
      %v379 = vpop.permute.xlu0 %378
      %382 = vset.pattern.permute.xlu0 0
      %383 = vperm.xlu0 %382, %v292
      %v384 = vpop.permute.xlu0 %383
      %387 = vset.pattern.permute.xlu0 0
      %388 = vperm.xlu0 %387, %v293
      %v389 = vpop.permute.xlu0 %388
      %v391 = vmul.f32 %v295, %v314
      %v392 = vmul.f32 %v296, %v314
      %v393 = vmul.f32 %v297, %v314
      %v394 = vmul.f32 %v298, %v314
      %v395 = vmul.f32 %v299, %v314
      %v396 = vmul.f32 %v300, %v314
      %v397 = vmul.f32 %v301, %v314
      %v398 = vmul.f32 %v302, %v314
      %v399 = vmul.f32 %v295, %v319
      %v400 = vmul.f32 %v296, %v319
      %v401 = vmul.f32 %v297, %v319
      %v402 = vmul.f32 %v298, %v319
      %v403 = vmul.f32 %v299, %v319
      %v404 = vmul.f32 %v300, %v319
      %v405 = vmul.f32 %v301, %v319
      %v406 = vmul.f32 %v302, %v319
      %v407 = vmul.f32 %v295, %v324
      %v408 = vmul.f32 %v296, %v324
      %v409 = vmul.f32 %v297, %v324
      %v410 = vmul.f32 %v298, %v324
      %v411 = vmul.f32 %v299, %v324
      %v412 = vmul.f32 %v300, %v324
      %v413 = vmul.f32 %v301, %v324
      %v414 = vmul.f32 %v302, %v324
      %v415 = vmul.f32 %v295, %v329
      %v416 = vmul.f32 %v296, %v329
      %v417 = vmul.f32 %v297, %v329
      %v418 = vmul.f32 %v298, %v329
      %v419 = vmul.f32 %v299, %v329
      %v420 = vmul.f32 %v300, %v329
      %v421 = vmul.f32 %v301, %v329
      %v422 = vmul.f32 %v302, %v329
      %v423 = vmul.f32 %v295, %v334
      %v424 = vmul.f32 %v296, %v334
      %v425 = vmul.f32 %v297, %v334
      %v426 = vmul.f32 %v298, %v334
      %v427 = vmul.f32 %v299, %v334
      %v428 = vmul.f32 %v300, %v334
      %v429 = vmul.f32 %v301, %v334
      %v430 = vmul.f32 %v302, %v334
      %v431 = vmul.f32 %v295, %v339
      %v432 = vmul.f32 %v296, %v339
      %v433 = vmul.f32 %v297, %v339
      %v434 = vmul.f32 %v298, %v339
      %v435 = vmul.f32 %v299, %v339
      %v436 = vmul.f32 %v300, %v339
      %v437 = vmul.f32 %v301, %v339
      %v438 = vmul.f32 %v302, %v339
      %v439 = vmul.f32 %v295, %v344
      %v440 = vmul.f32 %v296, %v344
      %v441 = vmul.f32 %v297, %v344
      %v442 = vmul.f32 %v298, %v344
      %v443 = vmul.f32 %v299, %v344
      %v444 = vmul.f32 %v300, %v344
      %v445 = vmul.f32 %v301, %v344
      %v446 = vmul.f32 %v302, %v344
      %v447 = vmul.f32 %v295, %v349
      %v448 = vmul.f32 %v296, %v349
      %v449 = vmul.f32 %v297, %v349
      %v450 = vmul.f32 %v298, %v349
      %v451 = vmul.f32 %v299, %v349
      %v452 = vmul.f32 %v300, %v349
      %v453 = vmul.f32 %v301, %v349
      %v454 = vmul.f32 %v302, %v349
      %v455 = vmul.f32 %v295, %v354
      %v456 = vmul.f32 %v296, %v354
      %v457 = vmul.f32 %v297, %v354
      %v458 = vmul.f32 %v298, %v354
      %v459 = vmul.f32 %v299, %v354
      %v460 = vmul.f32 %v300, %v354
      %v461 = vmul.f32 %v301, %v354
      %v462 = vmul.f32 %v302, %v354
      %v463 = vmul.f32 %v295, %v359
      %v464 = vmul.f32 %v296, %v359
      %v465 = vmul.f32 %v297, %v359
      %v466 = vmul.f32 %v298, %v359
      %v467 = vmul.f32 %v299, %v359
      %v468 = vmul.f32 %v300, %v359
      %v469 = vmul.f32 %v301, %v359
      %v470 = vmul.f32 %v302, %v359
      %v471 = vmul.f32 %v295, %v364
      %v472 = vmul.f32 %v296, %v364
      %v473 = vmul.f32 %v297, %v364
      %v474 = vmul.f32 %v298, %v364
      %v475 = vmul.f32 %v299, %v364
      %v476 = vmul.f32 %v300, %v364
      %v477 = vmul.f32 %v301, %v364
      %v478 = vmul.f32 %v302, %v364
      %v479 = vmul.f32 %v295, %v369
      %v480 = vmul.f32 %v296, %v369
      %v481 = vmul.f32 %v297, %v369
      %v482 = vmul.f32 %v298, %v369
      %v483 = vmul.f32 %v299, %v369
      %v484 = vmul.f32 %v300, %v369
      %v485 = vmul.f32 %v301, %v369
      %v486 = vmul.f32 %v302, %v369
      %v487 = vmul.f32 %v295, %v374
      %v488 = vmul.f32 %v296, %v374
      %v489 = vmul.f32 %v297, %v374
      %v490 = vmul.f32 %v298, %v374
      %v491 = vmul.f32 %v299, %v374
      %v492 = vmul.f32 %v300, %v374
      %v493 = vmul.f32 %v301, %v374
      %v494 = vmul.f32 %v302, %v374
      %v495 = vmul.f32 %v295, %v379
      %v496 = vmul.f32 %v296, %v379
      %v497 = vmul.f32 %v297, %v379
      %v498 = vmul.f32 %v298, %v379
      %v499 = vmul.f32 %v299, %v379
      %v500 = vmul.f32 %v300, %v379
      %v501 = vmul.f32 %v301, %v379
      %v502 = vmul.f32 %v302, %v379
      %v503 = vmul.f32 %v295, %v384
      %v504 = vmul.f32 %v296, %v384
      %v505 = vmul.f32 %v297, %v384
      %v506 = vmul.f32 %v298, %v384
      %v507 = vmul.f32 %v299, %v384
      %v508 = vmul.f32 %v300, %v384
      %v509 = vmul.f32 %v301, %v384
      %v510 = vmul.f32 %v302, %v384
      %v511 = vmul.f32 %v295, %v389
      %v512 = vmul.f32 %v296, %v389
      %v513 = vmul.f32 %v297, %v389
      %v514 = vmul.f32 %v298, %v389
      %v515 = vmul.f32 %v299, %v389
      %v516 = vmul.f32 %v300, %v389
      %v517 = vmul.f32 %v301, %v389
      %v518 = vmul.f32 %v302, %v389
      %v519 = vld [vmem:[%s2] sm:$0xff]
      %v520 = vld [vmem:[%s2 + $0x8] sm:$0xff]
      %v521 = vld [vmem:[%s2 + $0x10] sm:$0xff]
      %v522 = vld [vmem:[%s2 + $0x18] sm:$0xff]
      %v523 = vld [vmem:[%s2 + $0x20] sm:$0xff]
      %v524 = vld [vmem:[%s2 + $0x28] sm:$0xff]
      %v525 = vld [vmem:[%s2 + $0x30] sm:$0xff]
      %v526 = vld [vmem:[%s2 + $0x38] sm:$0xff]
      %v527 = vld [vmem:[%s2 + $0x40] sm:$0xff]
      %v528 = vld [vmem:[%s2 + $0x48] sm:$0xff]
      %v529 = vld [vmem:[%s2 + $0x50] sm:$0xff]
      %v530 = vld [vmem:[%s2 + $0x58] sm:$0xff]
      %v531 = vld [vmem:[%s2 + $0x60] sm:$0xff]
      %v532 = vld [vmem:[%s2 + $0x68] sm:$0xff]
      %v533 = vld [vmem:[%s2 + $0x70] sm:$0xff]
      %v534 = vld [vmem:[%s2 + $0x78] sm:$0xff]
      %536 = vset.pattern.permute.xlu0 0
      %537 = vperm.xlu0 %536, %v519
      %v538 = vpop.permute.xlu0 %537
      %541 = vset.pattern.permute.xlu0 0
      %542 = vperm.xlu0 %541, %v520
      %v543 = vpop.permute.xlu0 %542
      %546 = vset.pattern.permute.xlu0 0
      %547 = vperm.xlu0 %546, %v521
      %v548 = vpop.permute.xlu0 %547
      %551 = vset.pattern.permute.xlu0 0
      %552 = vperm.xlu0 %551, %v522
      %v553 = vpop.permute.xlu0 %552
      %556 = vset.pattern.permute.xlu0 0
      %557 = vperm.xlu0 %556, %v523
      %v558 = vpop.permute.xlu0 %557
      %561 = vset.pattern.permute.xlu0 0
      %562 = vperm.xlu0 %561, %v524
      %v563 = vpop.permute.xlu0 %562
      %566 = vset.pattern.permute.xlu0 0
      %567 = vperm.xlu0 %566, %v525
      %v568 = vpop.permute.xlu0 %567
      %571 = vset.pattern.permute.xlu0 0
      %572 = vperm.xlu0 %571, %v526
      %v573 = vpop.permute.xlu0 %572
      %576 = vset.pattern.permute.xlu0 0
      %577 = vperm.xlu0 %576, %v527
      %v578 = vpop.permute.xlu0 %577
      %581 = vset.pattern.permute.xlu0 0
      %582 = vperm.xlu0 %581, %v528
      %v583 = vpop.permute.xlu0 %582
      %586 = vset.pattern.permute.xlu0 0
      %587 = vperm.xlu0 %586, %v529
      %v588 = vpop.permute.xlu0 %587
      %591 = vset.pattern.permute.xlu0 0
      %592 = vperm.xlu0 %591, %v530
      %v593 = vpop.permute.xlu0 %592
      %596 = vset.pattern.permute.xlu0 0
      %597 = vperm.xlu0 %596, %v531
      %v598 = vpop.permute.xlu0 %597
      %601 = vset.pattern.permute.xlu0 0
      %602 = vperm.xlu0 %601, %v532
      %v603 = vpop.permute.xlu0 %602
      %606 = vset.pattern.permute.xlu0 0
      %607 = vperm.xlu0 %606, %v533
      %v608 = vpop.permute.xlu0 %607
      %611 = vset.pattern.permute.xlu0 0
      %612 = vperm.xlu0 %611, %v534
      %v613 = vpop.permute.xlu0 %612
      %v615 = vadd.f32 %v391, %v538
      %v616 = vadd.f32 %v392, %v538
      %v617 = vadd.f32 %v393, %v538
      %v618 = vadd.f32 %v394, %v538
      %v619 = vadd.f32 %v395, %v538
      %v620 = vadd.f32 %v396, %v538
      %v621 = vadd.f32 %v397, %v538
      %v622 = vadd.f32 %v398, %v538
      %v623 = vadd.f32 %v399, %v543
      %v624 = vadd.f32 %v400, %v543
      %v625 = vadd.f32 %v401, %v543
      %v626 = vadd.f32 %v402, %v543
      %v627 = vadd.f32 %v403, %v543
      %v628 = vadd.f32 %v404, %v543
      %v629 = vadd.f32 %v405, %v543
      %v630 = vadd.f32 %v406, %v543
      %v631 = vadd.f32 %v407, %v548
      %v632 = vadd.f32 %v408, %v548
      %v633 = vadd.f32 %v409, %v548
      %v634 = vadd.f32 %v410, %v548
      %v635 = vadd.f32 %v411, %v548
      %v636 = vadd.f32 %v412, %v548
      %v637 = vadd.f32 %v413, %v548
      %v638 = vadd.f32 %v414, %v548
      %v639 = vadd.f32 %v415, %v553
      %v640 = vadd.f32 %v416, %v553
      %v641 = vadd.f32 %v417, %v553
      %v642 = vadd.f32 %v418, %v553
      %v643 = vadd.f32 %v419, %v553
      %v644 = vadd.f32 %v420, %v553
      %v645 = vadd.f32 %v421, %v553
      %v646 = vadd.f32 %v422, %v553
      %v647 = vadd.f32 %v423, %v558
      %v648 = vadd.f32 %v424, %v558
      %v649 = vadd.f32 %v425, %v558
      %v650 = vadd.f32 %v426, %v558
      %v651 = vadd.f32 %v427, %v558
      %v652 = vadd.f32 %v428, %v558
      %v653 = vadd.f32 %v429, %v558
      %v654 = vadd.f32 %v430, %v558
      %v655 = vadd.f32 %v431, %v563
      %v656 = vadd.f32 %v432, %v563
      %v657 = vadd.f32 %v433, %v563
      %v658 = vadd.f32 %v434, %v563
      %v659 = vadd.f32 %v435, %v563
      %v660 = vadd.f32 %v436, %v563
      %v661 = vadd.f32 %v437, %v563
      %v662 = vadd.f32 %v438, %v563
      %v663 = vadd.f32 %v439, %v568
      %v664 = vadd.f32 %v440, %v568
      %v665 = vadd.f32 %v441, %v568
      %v666 = vadd.f32 %v442, %v568
      %v667 = vadd.f32 %v443, %v568
      %v668 = vadd.f32 %v444, %v568
      %v669 = vadd.f32 %v445, %v568
      %v670 = vadd.f32 %v446, %v568
      %v671 = vadd.f32 %v447, %v573
      %v672 = vadd.f32 %v448, %v573
      %v673 = vadd.f32 %v449, %v573
      %v674 = vadd.f32 %v450, %v573
      %v675 = vadd.f32 %v451, %v573
      %v676 = vadd.f32 %v452, %v573
      %v677 = vadd.f32 %v453, %v573
      %v678 = vadd.f32 %v454, %v573
      %v679 = vadd.f32 %v455, %v578
      %v680 = vadd.f32 %v456, %v578
      %v681 = vadd.f32 %v457, %v578
      %v682 = vadd.f32 %v458, %v578
      %v683 = vadd.f32 %v459, %v578
      %v684 = vadd.f32 %v460, %v578
      %v685 = vadd.f32 %v461, %v578
      %v686 = vadd.f32 %v462, %v578
      %v687 = vadd.f32 %v463, %v583
      %v688 = vadd.f32 %v464, %v583
      %v689 = vadd.f32 %v465, %v583
      %v690 = vadd.f32 %v466, %v583
      %v691 = vadd.f32 %v467, %v583
      %v692 = vadd.f32 %v468, %v583
      %v693 = vadd.f32 %v469, %v583
      %v694 = vadd.f32 %v470, %v583
      %v695 = vadd.f32 %v471, %v588
      %v696 = vadd.f32 %v472, %v588
      %v697 = vadd.f32 %v473, %v588
      %v698 = vadd.f32 %v474, %v588
      %v699 = vadd.f32 %v475, %v588
      %v700 = vadd.f32 %v476, %v588
      %v701 = vadd.f32 %v477, %v588
      %v702 = vadd.f32 %v478, %v588
      %v703 = vadd.f32 %v479, %v593
      %v704 = vadd.f32 %v480, %v593
      %v705 = vadd.f32 %v481, %v593
      %v706 = vadd.f32 %v482, %v593
      %v707 = vadd.f32 %v483, %v593
      %v708 = vadd.f32 %v484, %v593
      %v709 = vadd.f32 %v485, %v593
      %v710 = vadd.f32 %v486, %v593
      %v711 = vadd.f32 %v487, %v598
      %v712 = vadd.f32 %v488, %v598
      %v713 = vadd.f32 %v489, %v598
      %v714 = vadd.f32 %v490, %v598
      %v715 = vadd.f32 %v491, %v598
      %v716 = vadd.f32 %v492, %v598
      %v717 = vadd.f32 %v493, %v598
      %v718 = vadd.f32 %v494, %v598
      %v719 = vadd.f32 %v495, %v603
      %v720 = vadd.f32 %v496, %v603
      %v721 = vadd.f32 %v497, %v603
      %v722 = vadd.f32 %v498, %v603
      %v723 = vadd.f32 %v499, %v603
      %v724 = vadd.f32 %v500, %v603
      %v725 = vadd.f32 %v501, %v603
      %v726 = vadd.f32 %v502, %v603
      %v727 = vadd.f32 %v503, %v608
      %v728 = vadd.f32 %v504, %v608
      %v729 = vadd.f32 %v505, %v608
      %v730 = vadd.f32 %v506, %v608
      %v731 = vadd.f32 %v507, %v608
      %v732 = vadd.f32 %v508, %v608
      %v733 = vadd.f32 %v509, %v608
      %v734 = vadd.f32 %v510, %v608
      %v735 = vadd.f32 %v511, %v613
      %v736 = vadd.f32 %v512, %v613
      %v737 = vadd.f32 %v513, %v613
      %v738 = vadd.f32 %v514, %v613
      %v739 = vadd.f32 %v515, %v613
      %v740 = vadd.f32 %v516, %v613
      %v741 = vadd.f32 %v517, %v613
      %v742 = vadd.f32 %v518, %v613
      %vm743 = vcmp.gt.f32.partialorder %v615, 0.0
      %vm744 = vcmp.gt.f32.partialorder %v616, 0.0
      %vm745 = vcmp.gt.f32.partialorder %v617, 0.0
      %vm746 = vcmp.gt.f32.partialorder %v618, 0.0
      %vm747 = vcmp.gt.f32.partialorder %v619, 0.0
      %vm748 = vcmp.gt.f32.partialorder %v620, 0.0
      %vm749 = vcmp.gt.f32.partialorder %v621, 0.0
      %vm750 = vcmp.gt.f32.partialorder %v622, 0.0
      %vm751 = vcmp.gt.f32.partialorder %v623, 0.0
      %vm752 = vcmp.gt.f32.partialorder %v624, 0.0
      %vm753 = vcmp.gt.f32.partialorder %v625, 0.0
      %vm754 = vcmp.gt.f32.partialorder %v626, 0.0
      %vm755 = vcmp.gt.f32.partialorder %v627, 0.0
      %vm756 = vcmp.gt.f32.partialorder %v628, 0.0
      %vm757 = vcmp.gt.f32.partialorder %v629, 0.0
      %vm758 = vcmp.gt.f32.partialorder %v630, 0.0
      %vm759 = vcmp.gt.f32.partialorder %v631, 0.0
      %vm760 = vcmp.gt.f32.partialorder %v632, 0.0
      %vm761 = vcmp.gt.f32.partialorder %v633, 0.0
      %vm762 = vcmp.gt.f32.partialorder %v634, 0.0
      %vm763 = vcmp.gt.f32.partialorder %v635, 0.0
      %vm764 = vcmp.gt.f32.partialorder %v636, 0.0
      %vm765 = vcmp.gt.f32.partialorder %v637, 0.0
      %vm766 = vcmp.gt.f32.partialorder %v638, 0.0
      %vm767 = vcmp.gt.f32.partialorder %v639, 0.0
      %vm768 = vcmp.gt.f32.partialorder %v640, 0.0
      %vm769 = vcmp.gt.f32.partialorder %v641, 0.0
      %vm770 = vcmp.gt.f32.partialorder %v642, 0.0
      %vm771 = vcmp.gt.f32.partialorder %v643, 0.0
      %vm772 = vcmp.gt.f32.partialorder %v644, 0.0
      %vm773 = vcmp.gt.f32.partialorder %v645, 0.0
      %vm774 = vcmp.gt.f32.partialorder %v646, 0.0
      %vm775 = vcmp.gt.f32.partialorder %v647, 0.0
      %vm776 = vcmp.gt.f32.partialorder %v648, 0.0
      %vm777 = vcmp.gt.f32.partialorder %v649, 0.0
      %vm778 = vcmp.gt.f32.partialorder %v650, 0.0
      %vm779 = vcmp.gt.f32.partialorder %v651, 0.0
      %vm780 = vcmp.gt.f32.partialorder %v652, 0.0
      %vm781 = vcmp.gt.f32.partialorder %v653, 0.0
      %vm782 = vcmp.gt.f32.partialorder %v654, 0.0
      %vm783 = vcmp.gt.f32.partialorder %v655, 0.0
      %vm784 = vcmp.gt.f32.partialorder %v656, 0.0
      %vm785 = vcmp.gt.f32.partialorder %v657, 0.0
      %vm786 = vcmp.gt.f32.partialorder %v658, 0.0
      %vm787 = vcmp.gt.f32.partialorder %v659, 0.0
      %vm788 = vcmp.gt.f32.partialorder %v660, 0.0
      %vm789 = vcmp.gt.f32.partialorder %v661, 0.0
      %vm790 = vcmp.gt.f32.partialorder %v662, 0.0
      %vm791 = vcmp.gt.f32.partialorder %v663, 0.0
      %vm792 = vcmp.gt.f32.partialorder %v664, 0.0
      %vm793 = vcmp.gt.f32.partialorder %v665, 0.0
      %vm794 = vcmp.gt.f32.partialorder %v666, 0.0
      %vm795 = vcmp.gt.f32.partialorder %v667, 0.0
      %vm796 = vcmp.gt.f32.partialorder %v668, 0.0
      %vm797 = vcmp.gt.f32.partialorder %v669, 0.0
      %vm798 = vcmp.gt.f32.partialorder %v670, 0.0
      %vm799 = vcmp.gt.f32.partialorder %v671, 0.0
      %vm800 = vcmp.gt.f32.partialorder %v672, 0.0
      %vm801 = vcmp.gt.f32.partialorder %v673, 0.0
      %vm802 = vcmp.gt.f32.partialorder %v674, 0.0
      %vm803 = vcmp.gt.f32.partialorder %v675, 0.0
      %vm804 = vcmp.gt.f32.partialorder %v676, 0.0
      %vm805 = vcmp.gt.f32.partialorder %v677, 0.0
      %vm806 = vcmp.gt.f32.partialorder %v678, 0.0
      %vm807 = vcmp.gt.f32.partialorder %v679, 0.0
      %vm808 = vcmp.gt.f32.partialorder %v680, 0.0
      %vm809 = vcmp.gt.f32.partialorder %v681, 0.0
      %vm810 = vcmp.gt.f32.partialorder %v682, 0.0
      %vm811 = vcmp.gt.f32.partialorder %v683, 0.0
      %vm812 = vcmp.gt.f32.partialorder %v684, 0.0
      %vm813 = vcmp.gt.f32.partialorder %v685, 0.0
      %vm814 = vcmp.gt.f32.partialorder %v686, 0.0
      %vm815 = vcmp.gt.f32.partialorder %v687, 0.0
      %vm816 = vcmp.gt.f32.partialorder %v688, 0.0
      %vm817 = vcmp.gt.f32.partialorder %v689, 0.0
      %vm818 = vcmp.gt.f32.partialorder %v690, 0.0
      %vm819 = vcmp.gt.f32.partialorder %v691, 0.0
      %vm820 = vcmp.gt.f32.partialorder %v692, 0.0
      %vm821 = vcmp.gt.f32.partialorder %v693, 0.0
      %vm822 = vcmp.gt.f32.partialorder %v694, 0.0
      %vm823 = vcmp.gt.f32.partialorder %v695, 0.0
      %vm824 = vcmp.gt.f32.partialorder %v696, 0.0
      %vm825 = vcmp.gt.f32.partialorder %v697, 0.0
      %vm826 = vcmp.gt.f32.partialorder %v698, 0.0
      %vm827 = vcmp.gt.f32.partialorder %v699, 0.0
      %vm828 = vcmp.gt.f32.partialorder %v700, 0.0
      %vm829 = vcmp.gt.f32.partialorder %v701, 0.0
      %vm830 = vcmp.gt.f32.partialorder %v702, 0.0
      %vm831 = vcmp.gt.f32.partialorder %v703, 0.0
      %vm832 = vcmp.gt.f32.partialorder %v704, 0.0
      %vm833 = vcmp.gt.f32.partialorder %v705, 0.0
      %vm834 = vcmp.gt.f32.partialorder %v706, 0.0
      %vm835 = vcmp.gt.f32.partialorder %v707, 0.0
      %vm836 = vcmp.gt.f32.partialorder %v708, 0.0
      %vm837 = vcmp.gt.f32.partialorder %v709, 0.0
      %vm838 = vcmp.gt.f32.partialorder %v710, 0.0
      %vm839 = vcmp.gt.f32.partialorder %v711, 0.0
      %vm840 = vcmp.gt.f32.partialorder %v712, 0.0
      %vm841 = vcmp.gt.f32.partialorder %v713, 0.0
      %vm842 = vcmp.gt.f32.partialorder %v714, 0.0
      %vm843 = vcmp.gt.f32.partialorder %v715, 0.0
      %vm844 = vcmp.gt.f32.partialorder %v716, 0.0
      %vm845 = vcmp.gt.f32.partialorder %v717, 0.0
      %vm846 = vcmp.gt.f32.partialorder %v718, 0.0
      %vm847 = vcmp.gt.f32.partialorder %v719, 0.0
      %vm848 = vcmp.gt.f32.partialorder %v720, 0.0
      %vm849 = vcmp.gt.f32.partialorder %v721, 0.0
      %vm850 = vcmp.gt.f32.partialorder %v722, 0.0
      %vm851 = vcmp.gt.f32.partialorder %v723, 0.0
      %vm852 = vcmp.gt.f32.partialorder %v724, 0.0
      %vm853 = vcmp.gt.f32.partialorder %v725, 0.0
      %vm854 = vcmp.gt.f32.partialorder %v726, 0.0
      %vm855 = vcmp.gt.f32.partialorder %v727, 0.0
      %vm856 = vcmp.gt.f32.partialorder %v728, 0.0
      %vm857 = vcmp.gt.f32.partialorder %v729, 0.0
      %vm858 = vcmp.gt.f32.partialorder %v730, 0.0
      %vm859 = vcmp.gt.f32.partialorder %v731, 0.0
      %vm860 = vcmp.gt.f32.partialorder %v732, 0.0
      %vm861 = vcmp.gt.f32.partialorder %v733, 0.0
      %vm862 = vcmp.gt.f32.partialorder %v734, 0.0
      %vm863 = vcmp.gt.f32.partialorder %v735, 0.0
      %vm864 = vcmp.gt.f32.partialorder %v736, 0.0
      %vm865 = vcmp.gt.f32.partialorder %v737, 0.0
      %vm866 = vcmp.gt.f32.partialorder %v738, 0.0
      %vm867 = vcmp.gt.f32.partialorder %v739, 0.0
      %vm868 = vcmp.gt.f32.partialorder %v740, 0.0
      %vm869 = vcmp.gt.f32.partialorder %v741, 0.0
      %vm870 = vcmp.gt.f32.partialorder %v742, 0.0
      %v871 = vmul.f32 %v615, 0.01
      %v872 = vmul.f32 %v616, 0.01
      %v873 = vmul.f32 %v617, 0.01
      %v874 = vmul.f32 %v618, 0.01
      %v875 = vmul.f32 %v619, 0.01
      %v876 = vmul.f32 %v620, 0.01
      %v877 = vmul.f32 %v621, 0.01
      %v878 = vmul.f32 %v622, 0.01
      %v879 = vmul.f32 %v623, 0.01
      %v880 = vmul.f32 %v624, 0.01
      %v881 = vmul.f32 %v625, 0.01
      %v882 = vmul.f32 %v626, 0.01
      %v883 = vmul.f32 %v627, 0.01
      %v884 = vmul.f32 %v628, 0.01
      %v885 = vmul.f32 %v629, 0.01
      %v886 = vmul.f32 %v630, 0.01
      %v887 = vmul.f32 %v631, 0.01
      %v888 = vmul.f32 %v632, 0.01
      %v889 = vmul.f32 %v633, 0.01
      %v890 = vmul.f32 %v634, 0.01
      %v891 = vmul.f32 %v635, 0.01
      %v892 = vmul.f32 %v636, 0.01
      %v893 = vmul.f32 %v637, 0.01
      %v894 = vmul.f32 %v638, 0.01
      %v895 = vmul.f32 %v639, 0.01
      %v896 = vmul.f32 %v640, 0.01
      %v897 = vmul.f32 %v641, 0.01
      %v898 = vmul.f32 %v642, 0.01
      %v899 = vmul.f32 %v643, 0.01
      %v900 = vmul.f32 %v644, 0.01
      %v901 = vmul.f32 %v645, 0.01
      %v902 = vmul.f32 %v646, 0.01
      %v903 = vmul.f32 %v647, 0.01
      %v904 = vmul.f32 %v648, 0.01
      %v905 = vmul.f32 %v649, 0.01
      %v906 = vmul.f32 %v650, 0.01
      %v907 = vmul.f32 %v651, 0.01
      %v908 = vmul.f32 %v652, 0.01
      %v909 = vmul.f32 %v653, 0.01
      %v910 = vmul.f32 %v654, 0.01
      %v911 = vmul.f32 %v655, 0.01
      %v912 = vmul.f32 %v656, 0.01
      %v913 = vmul.f32 %v657, 0.01
      %v914 = vmul.f32 %v658, 0.01
      %v915 = vmul.f32 %v659, 0.01
      %v916 = vmul.f32 %v660, 0.01
      %v917 = vmul.f32 %v661, 0.01
      %v918 = vmul.f32 %v662, 0.01
      %v919 = vmul.f32 %v663, 0.01
      %v920 = vmul.f32 %v664, 0.01
      %v921 = vmul.f32 %v665, 0.01
      %v922 = vmul.f32 %v666, 0.01
      %v923 = vmul.f32 %v667, 0.01
      %v924 = vmul.f32 %v668, 0.01
      %v925 = vmul.f32 %v669, 0.01
      %v926 = vmul.f32 %v670, 0.01
      %v927 = vmul.f32 %v671, 0.01
      %v928 = vmul.f32 %v672, 0.01
      %v929 = vmul.f32 %v673, 0.01
      %v930 = vmul.f32 %v674, 0.01
      %v931 = vmul.f32 %v675, 0.01
      %v932 = vmul.f32 %v676, 0.01
      %v933 = vmul.f32 %v677, 0.01
      %v934 = vmul.f32 %v678, 0.01
      %v935 = vmul.f32 %v679, 0.01
      %v936 = vmul.f32 %v680, 0.01
      %v937 = vmul.f32 %v681, 0.01
      %v938 = vmul.f32 %v682, 0.01
      %v939 = vmul.f32 %v683, 0.01
      %v940 = vmul.f32 %v684, 0.01
      %v941 = vmul.f32 %v685, 0.01
      %v942 = vmul.f32 %v686, 0.01
      %v943 = vmul.f32 %v687, 0.01
      %v944 = vmul.f32 %v688, 0.01
      %v945 = vmul.f32 %v689, 0.01
      %v946 = vmul.f32 %v690, 0.01
      %v947 = vmul.f32 %v691, 0.01
      %v948 = vmul.f32 %v692, 0.01
      %v949 = vmul.f32 %v693, 0.01
      %v950 = vmul.f32 %v694, 0.01
      %v951 = vmul.f32 %v695, 0.01
      %v952 = vmul.f32 %v696, 0.01
      %v953 = vmul.f32 %v697, 0.01
      %v954 = vmul.f32 %v698, 0.01
      %v955 = vmul.f32 %v699, 0.01
      %v956 = vmul.f32 %v700, 0.01
      %v957 = vmul.f32 %v701, 0.01
      %v958 = vmul.f32 %v702, 0.01
      %v959 = vmul.f32 %v703, 0.01
      %v960 = vmul.f32 %v704, 0.01
      %v961 = vmul.f32 %v705, 0.01
      %v962 = vmul.f32 %v706, 0.01
      %v963 = vmul.f32 %v707, 0.01
      %v964 = vmul.f32 %v708, 0.01
      %v965 = vmul.f32 %v709, 0.01
      %v966 = vmul.f32 %v710, 0.01
      %v967 = vmul.f32 %v711, 0.01
      %v968 = vmul.f32 %v712, 0.01
      %v969 = vmul.f32 %v713, 0.01
      %v970 = vmul.f32 %v714, 0.01
      %v971 = vmul.f32 %v715, 0.01
      %v972 = vmul.f32 %v716, 0.01
      %v973 = vmul.f32 %v717, 0.01
      %v974 = vmul.f32 %v718, 0.01
      %v975 = vmul.f32 %v719, 0.01
      %v976 = vmul.f32 %v720, 0.01
      %v977 = vmul.f32 %v721, 0.01
      %v978 = vmul.f32 %v722, 0.01
      %v979 = vmul.f32 %v723, 0.01
      %v980 = vmul.f32 %v724, 0.01
      %v981 = vmul.f32 %v725, 0.01
      %v982 = vmul.f32 %v726, 0.01
      %v983 = vmul.f32 %v727, 0.01
      %v984 = vmul.f32 %v728, 0.01
      %v985 = vmul.f32 %v729, 0.01
      %v986 = vmul.f32 %v730, 0.01
      %v987 = vmul.f32 %v731, 0.01
      %v988 = vmul.f32 %v732, 0.01
      %v989 = vmul.f32 %v733, 0.01
      %v990 = vmul.f32 %v734, 0.01
      %v991 = vmul.f32 %v735, 0.01
      %v992 = vmul.f32 %v736, 0.01
      %v993 = vmul.f32 %v737, 0.01
      %v994 = vmul.f32 %v738, 0.01
      %v995 = vmul.f32 %v739, 0.01
      %v996 = vmul.f32 %v740, 0.01
      %v997 = vmul.f32 %v741, 0.01
      %v998 = vmul.f32 %v742, 0.01
      %v999 = vsel %vm743, %v615, %v871
      %v1000 = vsel %vm744, %v616, %v872
      %v1001 = vsel %vm745, %v617, %v873
      %v1002 = vsel %vm746, %v618, %v874
      %v1003 = vsel %vm747, %v619, %v875
      %v1004 = vsel %vm748, %v620, %v876
      %v1005 = vsel %vm749, %v621, %v877
      %v1006 = vsel %vm750, %v622, %v878
      %v1007 = vsel %vm751, %v623, %v879
      %v1008 = vsel %vm752, %v624, %v880
      %v1009 = vsel %vm753, %v625, %v881
      %v1010 = vsel %vm754, %v626, %v882
      %v1011 = vsel %vm755, %v627, %v883
      %v1012 = vsel %vm756, %v628, %v884
      %v1013 = vsel %vm757, %v629, %v885
      %v1014 = vsel %vm758, %v630, %v886
      %v1015 = vsel %vm759, %v631, %v887
      %v1016 = vsel %vm760, %v632, %v888
      %v1017 = vsel %vm761, %v633, %v889
      %v1018 = vsel %vm762, %v634, %v890
      %v1019 = vsel %vm763, %v635, %v891
      %v1020 = vsel %vm764, %v636, %v892
      %v1021 = vsel %vm765, %v637, %v893
      %v1022 = vsel %vm766, %v638, %v894
      %v1023 = vsel %vm767, %v639, %v895
      %v1024 = vsel %vm768, %v640, %v896
      %v1025 = vsel %vm769, %v641, %v897
      %v1026 = vsel %vm770, %v642, %v898
      %v1027 = vsel %vm771, %v643, %v899
      %v1028 = vsel %vm772, %v644, %v900
      %v1029 = vsel %vm773, %v645, %v901
      %v1030 = vsel %vm774, %v646, %v902
      %v1031 = vsel %vm775, %v647, %v903
      %v1032 = vsel %vm776, %v648, %v904
      %v1033 = vsel %vm777, %v649, %v905
      %v1034 = vsel %vm778, %v650, %v906
      %v1035 = vsel %vm779, %v651, %v907
      %v1036 = vsel %vm780, %v652, %v908
      %v1037 = vsel %vm781, %v653, %v909
      %v1038 = vsel %vm782, %v654, %v910
      %v1039 = vsel %vm783, %v655, %v911
      %v1040 = vsel %vm784, %v656, %v912
      %v1041 = vsel %vm785, %v657, %v913
      %v1042 = vsel %vm786, %v658, %v914
      %v1043 = vsel %vm787, %v659, %v915
      %v1044 = vsel %vm788, %v660, %v916
      %v1045 = vsel %vm789, %v661, %v917
      %v1046 = vsel %vm790, %v662, %v918
      %v1047 = vsel %vm791, %v663, %v919
      %v1048 = vsel %vm792, %v664, %v920
      %v1049 = vsel %vm793, %v665, %v921
      %v1050 = vsel %vm794, %v666, %v922
      %v1051 = vsel %vm795, %v667, %v923
      %v1052 = vsel %vm796, %v668, %v924
      %v1053 = vsel %vm797, %v669, %v925
      %v1054 = vsel %vm798, %v670, %v926
      %v1055 = vsel %vm799, %v671, %v927
      %v1056 = vsel %vm800, %v672, %v928
      %v1057 = vsel %vm801, %v673, %v929
      %v1058 = vsel %vm802, %v674, %v930
      %v1059 = vsel %vm803, %v675, %v931
      %v1060 = vsel %vm804, %v676, %v932
      %v1061 = vsel %vm805, %v677, %v933
      %v1062 = vsel %vm806, %v678, %v934
      %v1063 = vsel %vm807, %v679, %v935
      %v1064 = vsel %vm808, %v680, %v936
      %v1065 = vsel %vm809, %v681, %v937
      %v1066 = vsel %vm810, %v682, %v938
      %v1067 = vsel %vm811, %v683, %v939
      %v1068 = vsel %vm812, %v684, %v940
      %v1069 = vsel %vm813, %v685, %v941
      %v1070 = vsel %vm814, %v686, %v942
      %v1071 = vsel %vm815, %v687, %v943
      %v1072 = vsel %vm816, %v688, %v944
      %v1073 = vsel %vm817, %v689, %v945
      %v1074 = vsel %vm818, %v690, %v946
      %v1075 = vsel %vm819, %v691, %v947
      %v1076 = vsel %vm820, %v692, %v948
      %v1077 = vsel %vm821, %v693, %v949
      %v1078 = vsel %vm822, %v694, %v950
      %v1079 = vsel %vm823, %v695, %v951
      %v1080 = vsel %vm824, %v696, %v952
      %v1081 = vsel %vm825, %v697, %v953
      %v1082 = vsel %vm826, %v698, %v954
      %v1083 = vsel %vm827, %v699, %v955
      %v1084 = vsel %vm828, %v700, %v956
      %v1085 = vsel %vm829, %v701, %v957
      %v1086 = vsel %vm830, %v702, %v958
      %v1087 = vsel %vm831, %v703, %v959
      %v1088 = vsel %vm832, %v704, %v960
      %v1089 = vsel %vm833, %v705, %v961
      %v1090 = vsel %vm834, %v706, %v962
      %v1091 = vsel %vm835, %v707, %v963
      %v1092 = vsel %vm836, %v708, %v964
      %v1093 = vsel %vm837, %v709, %v965
      %v1094 = vsel %vm838, %v710, %v966
      %v1095 = vsel %vm839, %v711, %v967
      %v1096 = vsel %vm840, %v712, %v968
      %v1097 = vsel %vm841, %v713, %v969
      %v1098 = vsel %vm842, %v714, %v970
      %v1099 = vsel %vm843, %v715, %v971
      %v1100 = vsel %vm844, %v716, %v972
      %v1101 = vsel %vm845, %v717, %v973
      %v1102 = vsel %vm846, %v718, %v974
      %v1103 = vsel %vm847, %v719, %v975
      %v1104 = vsel %vm848, %v720, %v976
      %v1105 = vsel %vm849, %v721, %v977
      %v1106 = vsel %vm850, %v722, %v978
      %v1107 = vsel %vm851, %v723, %v979
      %v1108 = vsel %vm852, %v724, %v980
      %v1109 = vsel %vm853, %v725, %v981
      %v1110 = vsel %vm854, %v726, %v982
      %v1111 = vsel %vm855, %v727, %v983
      %v1112 = vsel %vm856, %v728, %v984
      %v1113 = vsel %vm857, %v729, %v985
      %v1114 = vsel %vm858, %v730, %v986
      %v1115 = vsel %vm859, %v731, %v987
      %v1116 = vsel %vm860, %v732, %v988
      %v1117 = vsel %vm861, %v733, %v989
      %v1118 = vsel %vm862, %v734, %v990
      %v1119 = vsel %vm863, %v735, %v991
      %v1120 = vsel %vm864, %v736, %v992
      %v1121 = vsel %vm865, %v737, %v993
      %v1122 = vsel %vm866, %v738, %v994
      %v1123 = vsel %vm867, %v739, %v995
      %v1124 = vsel %vm868, %v740, %v996
      %v1125 = vsel %vm869, %v741, %v997
      %v1126 = vsel %vm870, %v742, %v998
      %v1127 = vld [vmem:[%s3] sm:$0xff]
      %v1128 = vld [vmem:[%s3 + $0x8] sm:$0xff]
      %v1129 = vld [vmem:[%s3 + $0x10] sm:$0xff]
      %v1130 = vld [vmem:[%s3 + $0x18] sm:$0xff]
      %v1131 = vld [vmem:[%s3 + $0x20] sm:$0xff]
      %v1132 = vld [vmem:[%s3 + $0x28] sm:$0xff]
      %v1133 = vld [vmem:[%s3 + $0x30] sm:$0xff]
      %v1134 = vld [vmem:[%s3 + $0x38] sm:$0xff]
      %v1135 = vld [vmem:[%s3 + $0x40] sm:$0xff]
      %v1136 = vld [vmem:[%s3 + $0x48] sm:$0xff]
      %v1137 = vld [vmem:[%s3 + $0x50] sm:$0xff]
      %v1138 = vld [vmem:[%s3 + $0x58] sm:$0xff]
      %v1139 = vld [vmem:[%s3 + $0x60] sm:$0xff]
      %v1140 = vld [vmem:[%s3 + $0x68] sm:$0xff]
      %v1141 = vld [vmem:[%s3 + $0x70] sm:$0xff]
      %v1142 = vld [vmem:[%s3 + $0x78] sm:$0xff]
      %s1143 = scalar_lea.vmem %s3, 128
      %v1144 = vld [vmem:[%s1143] sm:$0xff]
      %v1145 = vld [vmem:[%s1143 + $0x8] sm:$0xff]
      %v1146 = vld [vmem:[%s1143 + $0x10] sm:$0xff]
      %v1147 = vld [vmem:[%s1143 + $0x18] sm:$0xff]
      %v1148 = vld [vmem:[%s1143 + $0x20] sm:$0xff]
      %v1149 = vld [vmem:[%s1143 + $0x28] sm:$0xff]
      %v1150 = vld [vmem:[%s1143 + $0x30] sm:$0xff]
      %v1151 = vld [vmem:[%s1143 + $0x38] sm:$0xff]
      %v1152 = vld [vmem:[%s1143 + $0x40] sm:$0xff]
      %v1153 = vld [vmem:[%s1143 + $0x48] sm:$0xff]
      %v1154 = vld [vmem:[%s1143 + $0x50] sm:$0xff]
      %v1155 = vld [vmem:[%s1143 + $0x58] sm:$0xff]
      %v1156 = vld [vmem:[%s1143 + $0x60] sm:$0xff]
      %v1157 = vld [vmem:[%s1143 + $0x68] sm:$0xff]
      %v1158 = vld [vmem:[%s1143 + $0x70] sm:$0xff]
      %v1159 = vld [vmem:[%s1143 + $0x78] sm:$0xff]
      %1160 = vmatpush.msra.mxu0 %v1121
      %1161 = vmatpush.msra.mxu0 %v1113
      %1162 = vmatpush.msra.mxu0 %v1105
      %1163 = vmatpush.msra.mxu0 %v1097
      %1164 = vmatpush.msra.mxu0 %v1089
      %1165 = vmatpush.msra.mxu0 %v1081
      %1166 = vmatpush.msra.mxu0 %v1073
      %1167 = vmatpush.msra.mxu0 %v1065
      %1168 = vmatpush.msra.mxu0 %v1057
      %1169 = vmatpush.msra.mxu0 %v1049
      %1170 = vmatpush.msra.mxu0 %v1041
      %1171 = vmatpush.msra.mxu0 %v1033
      %1172 = vmatpush.msra.mxu0 %v1025
      %1173 = vmatpush.msra.mxu0 %v1017
      %1174 = vmatpush.msra.mxu0 %v1009
      %1175 = vmatpush.msra.mxu0 %v1001
      %1176 = vmatmul.f32.gmra.mxu0 %v1144
      %v1177 = vpop.f32.mrf.mxu0
      %v1178 = vadd.f32 0.0, %v1177
      %1179 = vmatmul.f32.gmra.mxu0 %v1145
      %v1180 = vpop.f32.mrf.mxu0
      %v1181 = vadd.f32 0.0, %v1180
      %1182 = vmatmul.f32.gmra.mxu0 %v1146
      %v1183 = vpop.f32.mrf.mxu0
      %v1184 = vadd.f32 0.0, %v1183
      %1185 = vmatmul.f32.gmra.mxu0 %v1147
      %v1186 = vpop.f32.mrf.mxu0
      %v1187 = vadd.f32 0.0, %v1186
      %1188 = vmatmul.f32.gmra.mxu0 %v1148
      %v1189 = vpop.f32.mrf.mxu0
      %v1190 = vadd.f32 0.0, %v1189
      %1191 = vmatmul.f32.gmra.mxu0 %v1149
      %v1192 = vpop.f32.mrf.mxu0
      %v1193 = vadd.f32 0.0, %v1192
      %1194 = vmatmul.f32.gmra.mxu0 %v1150
      %v1195 = vpop.f32.mrf.mxu0
      %v1196 = vadd.f32 0.0, %v1195
      %1197 = vmatmul.f32.gmra.mxu0 %v1151
      %v1198 = vpop.f32.mrf.mxu0
      %v1199 = vadd.f32 0.0, %v1198
      %1200 = vmatmul.f32.gmra.mxu0 %v1152
      %v1201 = vpop.f32.mrf.mxu0
      %v1202 = vadd.f32 0.0, %v1201
      %1203 = vmatmul.f32.gmra.mxu0 %v1153
      %v1204 = vpop.f32.mrf.mxu0
      %v1205 = vadd.f32 0.0, %v1204
      %1206 = vmatmul.f32.gmra.mxu0 %v1154
      %v1207 = vpop.f32.mrf.mxu0
      %v1208 = vadd.f32 0.0, %v1207
      %1209 = vmatmul.f32.gmra.mxu0 %v1155
      %v1210 = vpop.f32.mrf.mxu0
      %v1211 = vadd.f32 0.0, %v1210
      %1212 = vmatmul.f32.gmra.mxu0 %v1156
      %v1213 = vpop.f32.mrf.mxu0
      %v1214 = vadd.f32 0.0, %v1213
      %1215 = vmatmul.f32.gmra.mxu0 %v1157
      %v1216 = vpop.f32.mrf.mxu0
      %v1217 = vadd.f32 0.0, %v1216
      %1218 = vmatmul.f32.gmra.mxu0 %v1158
      %v1219 = vpop.f32.mrf.mxu0
      %v1220 = vadd.f32 0.0, %v1219
      %1221 = vmatmul.f32.gmra.mxu0 %v1159
      %v1222 = vpop.f32.mrf.mxu0
      %v1223 = vadd.f32 0.0, %v1222
      %1224 = vdwg.mxu0
      %1225 = vmatpush.msra.mxu0 %v1122
      %1226 = vmatpush.msra.mxu0 %v1114
      %1227 = vmatpush.msra.mxu0 %v1106
      %1228 = vmatpush.msra.mxu0 %v1098
      %1229 = vmatpush.msra.mxu0 %v1090
      %1230 = vmatpush.msra.mxu0 %v1082
      %1231 = vmatpush.msra.mxu0 %v1074
      %1232 = vmatpush.msra.mxu0 %v1066
      %1233 = vmatpush.msra.mxu0 %v1058
      %1234 = vmatpush.msra.mxu0 %v1050
      %1235 = vmatpush.msra.mxu0 %v1042
      %1236 = vmatpush.msra.mxu0 %v1034
      %1237 = vmatpush.msra.mxu0 %v1026
      %1238 = vmatpush.msra.mxu0 %v1018
      %1239 = vmatpush.msra.mxu0 %v1010
      %1240 = vmatpush.msra.mxu0 %v1002
      %1241 = vmatmul.f32.gmra.mxu0 %v1144
      %v1242 = vpop.f32.mrf.mxu0
      %v1243 = vadd.f32 0.0, %v1242
      %1244 = vmatmul.f32.gmra.mxu0 %v1145
      %v1245 = vpop.f32.mrf.mxu0
      %v1246 = vadd.f32 0.0, %v1245
      %1247 = vmatmul.f32.gmra.mxu0 %v1146
      %v1248 = vpop.f32.mrf.mxu0
      %v1249 = vadd.f32 0.0, %v1248
      %1250 = vmatmul.f32.gmra.mxu0 %v1147
      %v1251 = vpop.f32.mrf.mxu0
      %v1252 = vadd.f32 0.0, %v1251
      %1253 = vmatmul.f32.gmra.mxu0 %v1148
      %v1254 = vpop.f32.mrf.mxu0
      %v1255 = vadd.f32 0.0, %v1254
      %1256 = vmatmul.f32.gmra.mxu0 %v1149
      %v1257 = vpop.f32.mrf.mxu0
      %v1258 = vadd.f32 0.0, %v1257
      %1259 = vmatmul.f32.gmra.mxu0 %v1150
      %v1260 = vpop.f32.mrf.mxu0
      %v1261 = vadd.f32 0.0, %v1260
      %1262 = vmatmul.f32.gmra.mxu0 %v1151
      %v1263 = vpop.f32.mrf.mxu0
      %v1264 = vadd.f32 0.0, %v1263
      %1265 = vmatmul.f32.gmra.mxu0 %v1152
      %v1266 = vpop.f32.mrf.mxu0
      %v1267 = vadd.f32 0.0, %v1266
      %1268 = vmatmul.f32.gmra.mxu0 %v1153
      %v1269 = vpop.f32.mrf.mxu0
      %v1270 = vadd.f32 0.0, %v1269
      %1271 = vmatmul.f32.gmra.mxu0 %v1154
      %v1272 = vpop.f32.mrf.mxu0
      %v1273 = vadd.f32 0.0, %v1272
      %1274 = vmatmul.f32.gmra.mxu0 %v1155
      %v1275 = vpop.f32.mrf.mxu0
      %v1276 = vadd.f32 0.0, %v1275
      %1277 = vmatmul.f32.gmra.mxu0 %v1156
      %v1278 = vpop.f32.mrf.mxu0
      %v1279 = vadd.f32 0.0, %v1278
      %1280 = vmatmul.f32.gmra.mxu0 %v1157
      %v1281 = vpop.f32.mrf.mxu0
      %v1282 = vadd.f32 0.0, %v1281
      %1283 = vmatmul.f32.gmra.mxu0 %v1158
      %v1284 = vpop.f32.mrf.mxu0
      %v1285 = vadd.f32 0.0, %v1284
      %1286 = vmatmul.f32.gmra.mxu0 %v1159
      %v1287 = vpop.f32.mrf.mxu0
      %v1288 = vadd.f32 0.0, %v1287
      %1289 = vdwg.mxu0
      %1290 = vmatpush.msra.mxu0 %v1119
      %1291 = vmatpush.msra.mxu0 %v1111
      %1292 = vmatpush.msra.mxu0 %v1103
      %1293 = vmatpush.msra.mxu0 %v1095
      %1294 = vmatpush.msra.mxu0 %v1087
      %1295 = vmatpush.msra.mxu0 %v1079
      %1296 = vmatpush.msra.mxu0 %v1071
      %1297 = vmatpush.msra.mxu0 %v1063
      %1298 = vmatpush.msra.mxu0 %v1055
      %1299 = vmatpush.msra.mxu0 %v1047
      %1300 = vmatpush.msra.mxu0 %v1039
      %1301 = vmatpush.msra.mxu0 %v1031
      %1302 = vmatpush.msra.mxu0 %v1023
      %1303 = vmatpush.msra.mxu0 %v1015
      %1304 = vmatpush.msra.mxu0 %v1007
      %1305 = vmatpush.msra.mxu0 %v999
      %1306 = vmatmul.f32.gmra.mxu0 %v1127
      %v1307 = vpop.f32.mrf.mxu0
      %v1308 = vadd.f32 %v1178, %v1307
      %1309 = vmatmul.f32.gmra.mxu0 %v1128
      %v1310 = vpop.f32.mrf.mxu0
      %v1311 = vadd.f32 %v1181, %v1310
      %1312 = vmatmul.f32.gmra.mxu0 %v1129
      %v1313 = vpop.f32.mrf.mxu0
      %v1314 = vadd.f32 %v1184, %v1313
      %1315 = vmatmul.f32.gmra.mxu0 %v1130
      %v1316 = vpop.f32.mrf.mxu0
      %v1317 = vadd.f32 %v1187, %v1316
      %1318 = vmatmul.f32.gmra.mxu0 %v1131
      %v1319 = vpop.f32.mrf.mxu0
      %v1320 = vadd.f32 %v1190, %v1319
      %1321 = vmatmul.f32.gmra.mxu0 %v1132
      %v1322 = vpop.f32.mrf.mxu0
      %v1323 = vadd.f32 %v1193, %v1322
      %1324 = vmatmul.f32.gmra.mxu0 %v1133
      %v1325 = vpop.f32.mrf.mxu0
      %v1326 = vadd.f32 %v1196, %v1325
      %1327 = vmatmul.f32.gmra.mxu0 %v1134
      %v1328 = vpop.f32.mrf.mxu0
      %v1329 = vadd.f32 %v1199, %v1328
      %1330 = vmatmul.f32.gmra.mxu0 %v1135
      %v1331 = vpop.f32.mrf.mxu0
      %v1332 = vadd.f32 %v1202, %v1331
      %1333 = vmatmul.f32.gmra.mxu0 %v1136
      %v1334 = vpop.f32.mrf.mxu0
      %v1335 = vadd.f32 %v1205, %v1334
      %1336 = vmatmul.f32.gmra.mxu0 %v1137
      %v1337 = vpop.f32.mrf.mxu0
      %v1338 = vadd.f32 %v1208, %v1337
      %1339 = vmatmul.f32.gmra.mxu0 %v1138
      %v1340 = vpop.f32.mrf.mxu0
      %v1341 = vadd.f32 %v1211, %v1340
      %1342 = vmatmul.f32.gmra.mxu0 %v1139
      %v1343 = vpop.f32.mrf.mxu0
      %v1344 = vadd.f32 %v1214, %v1343
      %1345 = vmatmul.f32.gmra.mxu0 %v1140
      %v1346 = vpop.f32.mrf.mxu0
      %v1347 = vadd.f32 %v1217, %v1346
      %1348 = vmatmul.f32.gmra.mxu0 %v1141
      %v1349 = vpop.f32.mrf.mxu0
      %v1350 = vadd.f32 %v1220, %v1349
      %1351 = vmatmul.f32.gmra.mxu0 %v1142
      %v1352 = vpop.f32.mrf.mxu0
      %v1353 = vadd.f32 %v1223, %v1352
      %1354 = vdwg.mxu0
      %1355 = vmatpush.msra.mxu0 %v1120
      %1356 = vmatpush.msra.mxu0 %v1112
      %1357 = vmatpush.msra.mxu0 %v1104
      %1358 = vmatpush.msra.mxu0 %v1096
      %1359 = vmatpush.msra.mxu0 %v1088
      %1360 = vmatpush.msra.mxu0 %v1080
      %1361 = vmatpush.msra.mxu0 %v1072
      %1362 = vmatpush.msra.mxu0 %v1064
      %1363 = vmatpush.msra.mxu0 %v1056
      %1364 = vmatpush.msra.mxu0 %v1048
      %1365 = vmatpush.msra.mxu0 %v1040
      %1366 = vmatpush.msra.mxu0 %v1032
      %1367 = vmatpush.msra.mxu0 %v1024
      %1368 = vmatpush.msra.mxu0 %v1016
      %1369 = vmatpush.msra.mxu0 %v1008
      %1370 = vmatpush.msra.mxu0 %v1000
      %1371 = vmatmul.f32.gmra.mxu0 %v1127
      %v1372 = vpop.f32.mrf.mxu0
      %v1373 = vadd.f32 %v1243, %v1372
      %1374 = vmatmul.f32.gmra.mxu0 %v1128
      %v1375 = vpop.f32.mrf.mxu0
      %v1376 = vadd.f32 %v1246, %v1375
      %1377 = vmatmul.f32.gmra.mxu0 %v1129
      %v1378 = vpop.f32.mrf.mxu0
      %v1379 = vadd.f32 %v1249, %v1378
      %1380 = vmatmul.f32.gmra.mxu0 %v1130
      %v1381 = vpop.f32.mrf.mxu0
      %v1382 = vadd.f32 %v1252, %v1381
      %1383 = vmatmul.f32.gmra.mxu0 %v1131
      %v1384 = vpop.f32.mrf.mxu0
      %v1385 = vadd.f32 %v1255, %v1384
      %1386 = vmatmul.f32.gmra.mxu0 %v1132
      %v1387 = vpop.f32.mrf.mxu0
      %v1388 = vadd.f32 %v1258, %v1387
      %1389 = vmatmul.f32.gmra.mxu0 %v1133
      %v1390 = vpop.f32.mrf.mxu0
      %v1391 = vadd.f32 %v1261, %v1390
      %1392 = vmatmul.f32.gmra.mxu0 %v1134
      %v1393 = vpop.f32.mrf.mxu0
      %v1394 = vadd.f32 %v1264, %v1393
      %1395 = vmatmul.f32.gmra.mxu0 %v1135
      %v1396 = vpop.f32.mrf.mxu0
      %v1397 = vadd.f32 %v1267, %v1396
      %1398 = vmatmul.f32.gmra.mxu0 %v1136
      %v1399 = vpop.f32.mrf.mxu0
      %v1400 = vadd.f32 %v1270, %v1399
      %1401 = vmatmul.f32.gmra.mxu0 %v1137
      %v1402 = vpop.f32.mrf.mxu0
      %v1403 = vadd.f32 %v1273, %v1402
      %1404 = vmatmul.f32.gmra.mxu0 %v1138
      %v1405 = vpop.f32.mrf.mxu0
      %v1406 = vadd.f32 %v1276, %v1405
      %1407 = vmatmul.f32.gmra.mxu0 %v1139
      %v1408 = vpop.f32.mrf.mxu0
      %v1409 = vadd.f32 %v1279, %v1408
      %1410 = vmatmul.f32.gmra.mxu0 %v1140
      %v1411 = vpop.f32.mrf.mxu0
      %v1412 = vadd.f32 %v1282, %v1411
      %1413 = vmatmul.f32.gmra.mxu0 %v1141
      %v1414 = vpop.f32.mrf.mxu0
      %v1415 = vadd.f32 %v1285, %v1414
      %1416 = vmatmul.f32.gmra.mxu0 %v1142
      %v1417 = vpop.f32.mrf.mxu0
      %v1418 = vadd.f32 %v1288, %v1417
      %1419 = vdwg.mxu0
      %s1420 = scalar_lea.vmem %s3, 256
      %v1421 = vld [vmem:[%s1420] sm:$0xff]
      %v1422 = vld [vmem:[%s1420 + $0x8] sm:$0xff]
      %v1423 = vld [vmem:[%s1420 + $0x10] sm:$0xff]
      %v1424 = vld [vmem:[%s1420 + $0x18] sm:$0xff]
      %v1425 = vld [vmem:[%s1420 + $0x20] sm:$0xff]
      %v1426 = vld [vmem:[%s1420 + $0x28] sm:$0xff]
      %v1427 = vld [vmem:[%s1420 + $0x30] sm:$0xff]
      %v1428 = vld [vmem:[%s1420 + $0x38] sm:$0xff]
      %v1429 = vld [vmem:[%s1420 + $0x40] sm:$0xff]
      %v1430 = vld [vmem:[%s1420 + $0x48] sm:$0xff]
      %v1431 = vld [vmem:[%s1420 + $0x50] sm:$0xff]
      %v1432 = vld [vmem:[%s1420 + $0x58] sm:$0xff]
      %v1433 = vld [vmem:[%s1420 + $0x60] sm:$0xff]
      %v1434 = vld [vmem:[%s1420 + $0x68] sm:$0xff]
      %v1435 = vld [vmem:[%s1420 + $0x70] sm:$0xff]
      %v1436 = vld [vmem:[%s1420 + $0x78] sm:$0xff]
      %1437 = vmatpush.msra.mxu0 %v1123
      %1438 = vmatpush.msra.mxu0 %v1115
      %1439 = vmatpush.msra.mxu0 %v1107
      %1440 = vmatpush.msra.mxu0 %v1099
      %1441 = vmatpush.msra.mxu0 %v1091
      %1442 = vmatpush.msra.mxu0 %v1083
      %1443 = vmatpush.msra.mxu0 %v1075
      %1444 = vmatpush.msra.mxu0 %v1067
      %1445 = vmatpush.msra.mxu0 %v1059
      %1446 = vmatpush.msra.mxu0 %v1051
      %1447 = vmatpush.msra.mxu0 %v1043
      %1448 = vmatpush.msra.mxu0 %v1035
      %1449 = vmatpush.msra.mxu0 %v1027
      %1450 = vmatpush.msra.mxu0 %v1019
      %1451 = vmatpush.msra.mxu0 %v1011
      %1452 = vmatpush.msra.mxu0 %v1003
      %1453 = vmatmul.f32.gmra.mxu0 %v1421
      %v1454 = vpop.f32.mrf.mxu0
      %v1455 = vadd.f32 0.0, %v1454
      %1456 = vmatmul.f32.gmra.mxu0 %v1422
      %v1457 = vpop.f32.mrf.mxu0
      %v1458 = vadd.f32 0.0, %v1457
      %1459 = vmatmul.f32.gmra.mxu0 %v1423
      %v1460 = vpop.f32.mrf.mxu0
      %v1461 = vadd.f32 0.0, %v1460
      %1462 = vmatmul.f32.gmra.mxu0 %v1424
      %v1463 = vpop.f32.mrf.mxu0
      %v1464 = vadd.f32 0.0, %v1463
      %1465 = vmatmul.f32.gmra.mxu0 %v1425
      %v1466 = vpop.f32.mrf.mxu0
      %v1467 = vadd.f32 0.0, %v1466
      %1468 = vmatmul.f32.gmra.mxu0 %v1426
      %v1469 = vpop.f32.mrf.mxu0
      %v1470 = vadd.f32 0.0, %v1469
      %1471 = vmatmul.f32.gmra.mxu0 %v1427
      %v1472 = vpop.f32.mrf.mxu0
      %v1473 = vadd.f32 0.0, %v1472
      %1474 = vmatmul.f32.gmra.mxu0 %v1428
      %v1475 = vpop.f32.mrf.mxu0
      %v1476 = vadd.f32 0.0, %v1475
      %1477 = vmatmul.f32.gmra.mxu0 %v1429
      %v1478 = vpop.f32.mrf.mxu0
      %v1479 = vadd.f32 0.0, %v1478
      %1480 = vmatmul.f32.gmra.mxu0 %v1430
      %v1481 = vpop.f32.mrf.mxu0
      %v1482 = vadd.f32 0.0, %v1481
      %1483 = vmatmul.f32.gmra.mxu0 %v1431
      %v1484 = vpop.f32.mrf.mxu0
      %v1485 = vadd.f32 0.0, %v1484
      %1486 = vmatmul.f32.gmra.mxu0 %v1432
      %v1487 = vpop.f32.mrf.mxu0
      %v1488 = vadd.f32 0.0, %v1487
      %1489 = vmatmul.f32.gmra.mxu0 %v1433
      %v1490 = vpop.f32.mrf.mxu0
      %v1491 = vadd.f32 0.0, %v1490
      %1492 = vmatmul.f32.gmra.mxu0 %v1434
      %v1493 = vpop.f32.mrf.mxu0
      %v1494 = vadd.f32 0.0, %v1493
      %1495 = vmatmul.f32.gmra.mxu0 %v1435
      %v1496 = vpop.f32.mrf.mxu0
      %v1497 = vadd.f32 0.0, %v1496
      %1498 = vmatmul.f32.gmra.mxu0 %v1436
      %v1499 = vpop.f32.mrf.mxu0
      %v1500 = vadd.f32 0.0, %v1499
      %1501 = vdwg.mxu0
      %1502 = vmatpush.msra.mxu0 %v1124
      %1503 = vmatpush.msra.mxu0 %v1116
      %1504 = vmatpush.msra.mxu0 %v1108
      %1505 = vmatpush.msra.mxu0 %v1100
      %1506 = vmatpush.msra.mxu0 %v1092
      %1507 = vmatpush.msra.mxu0 %v1084
      %1508 = vmatpush.msra.mxu0 %v1076
      %1509 = vmatpush.msra.mxu0 %v1068
      %1510 = vmatpush.msra.mxu0 %v1060
      %1511 = vmatpush.msra.mxu0 %v1052
      %1512 = vmatpush.msra.mxu0 %v1044
      %1513 = vmatpush.msra.mxu0 %v1036
      %1514 = vmatpush.msra.mxu0 %v1028
      %1515 = vmatpush.msra.mxu0 %v1020
      %1516 = vmatpush.msra.mxu0 %v1012
      %1517 = vmatpush.msra.mxu0 %v1004
      %1518 = vmatmul.f32.gmra.mxu0 %v1421
      %v1519 = vpop.f32.mrf.mxu0
      %v1520 = vadd.f32 0.0, %v1519
      %1521 = vmatmul.f32.gmra.mxu0 %v1422
      %v1522 = vpop.f32.mrf.mxu0
      %v1523 = vadd.f32 0.0, %v1522
      %1524 = vmatmul.f32.gmra.mxu0 %v1423
      %v1525 = vpop.f32.mrf.mxu0
      %v1526 = vadd.f32 0.0, %v1525
      %1527 = vmatmul.f32.gmra.mxu0 %v1424
      %v1528 = vpop.f32.mrf.mxu0
      %v1529 = vadd.f32 0.0, %v1528
      %1530 = vmatmul.f32.gmra.mxu0 %v1425
      %v1531 = vpop.f32.mrf.mxu0
      %v1532 = vadd.f32 0.0, %v1531
      %1533 = vmatmul.f32.gmra.mxu0 %v1426
      %v1534 = vpop.f32.mrf.mxu0
      %v1535 = vadd.f32 0.0, %v1534
      %1536 = vmatmul.f32.gmra.mxu0 %v1427
      %v1537 = vpop.f32.mrf.mxu0
      %v1538 = vadd.f32 0.0, %v1537
      %1539 = vmatmul.f32.gmra.mxu0 %v1428
      %v1540 = vpop.f32.mrf.mxu0
      %v1541 = vadd.f32 0.0, %v1540
      %1542 = vmatmul.f32.gmra.mxu0 %v1429
      %v1543 = vpop.f32.mrf.mxu0
      %v1544 = vadd.f32 0.0, %v1543
      %1545 = vmatmul.f32.gmra.mxu0 %v1430
      %v1546 = vpop.f32.mrf.mxu0
      %v1547 = vadd.f32 0.0, %v1546
      %1548 = vmatmul.f32.gmra.mxu0 %v1431
      %v1549 = vpop.f32.mrf.mxu0
      %v1550 = vadd.f32 0.0, %v1549
      %1551 = vmatmul.f32.gmra.mxu0 %v1432
      %v1552 = vpop.f32.mrf.mxu0
      %v1553 = vadd.f32 0.0, %v1552
      %1554 = vmatmul.f32.gmra.mxu0 %v1433
      %v1555 = vpop.f32.mrf.mxu0
      %v1556 = vadd.f32 0.0, %v1555
      %1557 = vmatmul.f32.gmra.mxu0 %v1434
      %v1558 = vpop.f32.mrf.mxu0
      %v1559 = vadd.f32 0.0, %v1558
      %1560 = vmatmul.f32.gmra.mxu0 %v1435
      %v1561 = vpop.f32.mrf.mxu0
      %v1562 = vadd.f32 0.0, %v1561
      %1563 = vmatmul.f32.gmra.mxu0 %v1436
      %v1564 = vpop.f32.mrf.mxu0
      %v1565 = vadd.f32 0.0, %v1564
      %1566 = vdwg.mxu0
      %v1567 = vadd.f32 %v1308, %v1455
      %v1568 = vadd.f32 %v1373, %v1520
      %v1569 = vadd.f32 %v1311, %v1458
      %v1570 = vadd.f32 %v1376, %v1523
      %v1571 = vadd.f32 %v1314, %v1461
      %v1572 = vadd.f32 %v1379, %v1526
      %v1573 = vadd.f32 %v1317, %v1464
      %v1574 = vadd.f32 %v1382, %v1529
      %v1575 = vadd.f32 %v1320, %v1467
      %v1576 = vadd.f32 %v1385, %v1532
      %v1577 = vadd.f32 %v1323, %v1470
      %v1578 = vadd.f32 %v1388, %v1535
      %v1579 = vadd.f32 %v1326, %v1473
      %v1580 = vadd.f32 %v1391, %v1538
      %v1581 = vadd.f32 %v1329, %v1476
      %v1582 = vadd.f32 %v1394, %v1541
      %v1583 = vadd.f32 %v1332, %v1479
      %v1584 = vadd.f32 %v1397, %v1544
      %v1585 = vadd.f32 %v1335, %v1482
      %v1586 = vadd.f32 %v1400, %v1547
      %v1587 = vadd.f32 %v1338, %v1485
      %v1588 = vadd.f32 %v1403, %v1550
      %v1589 = vadd.f32 %v1341, %v1488
      %v1590 = vadd.f32 %v1406, %v1553
      %v1591 = vadd.f32 %v1344, %v1491
      %v1592 = vadd.f32 %v1409, %v1556
      %v1593 = vadd.f32 %v1347, %v1494
      %v1594 = vadd.f32 %v1412, %v1559
      %v1595 = vadd.f32 %v1350, %v1497
      %v1596 = vadd.f32 %v1415, %v1562
      %v1597 = vadd.f32 %v1353, %v1500
      %v1598 = vadd.f32 %v1418, %v1565
      %s1599 = scalar_lea.vmem %s3, 384
      %v1600 = vld [vmem:[%s1599] sm:$0xff]
      %v1601 = vld [vmem:[%s1599 + $0x8] sm:$0xff]
      %v1602 = vld [vmem:[%s1599 + $0x10] sm:$0xff]
      %v1603 = vld [vmem:[%s1599 + $0x18] sm:$0xff]
      %v1604 = vld [vmem:[%s1599 + $0x20] sm:$0xff]
      %v1605 = vld [vmem:[%s1599 + $0x28] sm:$0xff]
      %v1606 = vld [vmem:[%s1599 + $0x30] sm:$0xff]
      %v1607 = vld [vmem:[%s1599 + $0x38] sm:$0xff]
      %v1608 = vld [vmem:[%s1599 + $0x40] sm:$0xff]
      %v1609 = vld [vmem:[%s1599 + $0x48] sm:$0xff]
      %v1610 = vld [vmem:[%s1599 + $0x50] sm:$0xff]
      %v1611 = vld [vmem:[%s1599 + $0x58] sm:$0xff]
      %v1612 = vld [vmem:[%s1599 + $0x60] sm:$0xff]
      %v1613 = vld [vmem:[%s1599 + $0x68] sm:$0xff]
      %v1614 = vld [vmem:[%s1599 + $0x70] sm:$0xff]
      %v1615 = vld [vmem:[%s1599 + $0x78] sm:$0xff]
      %1616 = vmatpush.msra.mxu0 %v1125
      %1617 = vmatpush.msra.mxu0 %v1117
      %1618 = vmatpush.msra.mxu0 %v1109
      %1619 = vmatpush.msra.mxu0 %v1101
      %1620 = vmatpush.msra.mxu0 %v1093
      %1621 = vmatpush.msra.mxu0 %v1085
      %1622 = vmatpush.msra.mxu0 %v1077
      %1623 = vmatpush.msra.mxu0 %v1069
      %1624 = vmatpush.msra.mxu0 %v1061
      %1625 = vmatpush.msra.mxu0 %v1053
      %1626 = vmatpush.msra.mxu0 %v1045
      %1627 = vmatpush.msra.mxu0 %v1037
      %1628 = vmatpush.msra.mxu0 %v1029
      %1629 = vmatpush.msra.mxu0 %v1021
      %1630 = vmatpush.msra.mxu0 %v1013
      %1631 = vmatpush.msra.mxu0 %v1005
      %1632 = vmatmul.f32.gmra.mxu0 %v1600
      %v1633 = vpop.f32.mrf.mxu0
      %v1634 = vadd.f32 0.0, %v1633
      %1635 = vmatmul.f32.gmra.mxu0 %v1601
      %v1636 = vpop.f32.mrf.mxu0
      %v1637 = vadd.f32 0.0, %v1636
      %1638 = vmatmul.f32.gmra.mxu0 %v1602
      %v1639 = vpop.f32.mrf.mxu0
      %v1640 = vadd.f32 0.0, %v1639
      %1641 = vmatmul.f32.gmra.mxu0 %v1603
      %v1642 = vpop.f32.mrf.mxu0
      %v1643 = vadd.f32 0.0, %v1642
      %1644 = vmatmul.f32.gmra.mxu0 %v1604
      %v1645 = vpop.f32.mrf.mxu0
      %v1646 = vadd.f32 0.0, %v1645
      %1647 = vmatmul.f32.gmra.mxu0 %v1605
      %v1648 = vpop.f32.mrf.mxu0
      %v1649 = vadd.f32 0.0, %v1648
      %1650 = vmatmul.f32.gmra.mxu0 %v1606
      %v1651 = vpop.f32.mrf.mxu0
      %v1652 = vadd.f32 0.0, %v1651
      %1653 = vmatmul.f32.gmra.mxu0 %v1607
      %v1654 = vpop.f32.mrf.mxu0
      %v1655 = vadd.f32 0.0, %v1654
      %1656 = vmatmul.f32.gmra.mxu0 %v1608
      %v1657 = vpop.f32.mrf.mxu0
      %v1658 = vadd.f32 0.0, %v1657
      %1659 = vmatmul.f32.gmra.mxu0 %v1609
      %v1660 = vpop.f32.mrf.mxu0
      %v1661 = vadd.f32 0.0, %v1660
      %1662 = vmatmul.f32.gmra.mxu0 %v1610
      %v1663 = vpop.f32.mrf.mxu0
      %v1664 = vadd.f32 0.0, %v1663
      %1665 = vmatmul.f32.gmra.mxu0 %v1611
      %v1666 = vpop.f32.mrf.mxu0
      %v1667 = vadd.f32 0.0, %v1666
      %1668 = vmatmul.f32.gmra.mxu0 %v1612
      %v1669 = vpop.f32.mrf.mxu0
      %v1670 = vadd.f32 0.0, %v1669
      %1671 = vmatmul.f32.gmra.mxu0 %v1613
      %v1672 = vpop.f32.mrf.mxu0
      %v1673 = vadd.f32 0.0, %v1672
      %1674 = vmatmul.f32.gmra.mxu0 %v1614
      %v1675 = vpop.f32.mrf.mxu0
      %v1676 = vadd.f32 0.0, %v1675
      %1677 = vmatmul.f32.gmra.mxu0 %v1615
      %v1678 = vpop.f32.mrf.mxu0
      %v1679 = vadd.f32 0.0, %v1678
      %1680 = vdwg.mxu0
      %1681 = vmatpush.msra.mxu0 %v1126
      %1682 = vmatpush.msra.mxu0 %v1118
      %1683 = vmatpush.msra.mxu0 %v1110
      %1684 = vmatpush.msra.mxu0 %v1102
      %1685 = vmatpush.msra.mxu0 %v1094
      %1686 = vmatpush.msra.mxu0 %v1086
      %1687 = vmatpush.msra.mxu0 %v1078
      %1688 = vmatpush.msra.mxu0 %v1070
      %1689 = vmatpush.msra.mxu0 %v1062
      %1690 = vmatpush.msra.mxu0 %v1054
      %1691 = vmatpush.msra.mxu0 %v1046
      %1692 = vmatpush.msra.mxu0 %v1038
      %1693 = vmatpush.msra.mxu0 %v1030
      %1694 = vmatpush.msra.mxu0 %v1022
      %1695 = vmatpush.msra.mxu0 %v1014
      %1696 = vmatpush.msra.mxu0 %v1006
      %1697 = vmatmul.f32.gmra.mxu0 %v1600
      %v1698 = vpop.f32.mrf.mxu0
      %v1699 = vadd.f32 0.0, %v1698
      %1700 = vmatmul.f32.gmra.mxu0 %v1601
      %v1701 = vpop.f32.mrf.mxu0
      %v1702 = vadd.f32 0.0, %v1701
      %1703 = vmatmul.f32.gmra.mxu0 %v1602
      %v1704 = vpop.f32.mrf.mxu0
      %v1705 = vadd.f32 0.0, %v1704
      %1706 = vmatmul.f32.gmra.mxu0 %v1603
      %v1707 = vpop.f32.mrf.mxu0
      %v1708 = vadd.f32 0.0, %v1707
      %1709 = vmatmul.f32.gmra.mxu0 %v1604
      %v1710 = vpop.f32.mrf.mxu0
      %v1711 = vadd.f32 0.0, %v1710
      %1712 = vmatmul.f32.gmra.mxu0 %v1605
      %v1713 = vpop.f32.mrf.mxu0
      %v1714 = vadd.f32 0.0, %v1713
      %1715 = vmatmul.f32.gmra.mxu0 %v1606
      %v1716 = vpop.f32.mrf.mxu0
      %v1717 = vadd.f32 0.0, %v1716
      %1718 = vmatmul.f32.gmra.mxu0 %v1607
      %v1719 = vpop.f32.mrf.mxu0
      %v1720 = vadd.f32 0.0, %v1719
      %1721 = vmatmul.f32.gmra.mxu0 %v1608
      %v1722 = vpop.f32.mrf.mxu0
      %v1723 = vadd.f32 0.0, %v1722
      %1724 = vmatmul.f32.gmra.mxu0 %v1609
      %v1725 = vpop.f32.mrf.mxu0
      %v1726 = vadd.f32 0.0, %v1725
      %1727 = vmatmul.f32.gmra.mxu0 %v1610
      %v1728 = vpop.f32.mrf.mxu0
      %v1729 = vadd.f32 0.0, %v1728
      %1730 = vmatmul.f32.gmra.mxu0 %v1611
      %v1731 = vpop.f32.mrf.mxu0
      %v1732 = vadd.f32 0.0, %v1731
      %1733 = vmatmul.f32.gmra.mxu0 %v1612
      %v1734 = vpop.f32.mrf.mxu0
      %v1735 = vadd.f32 0.0, %v1734
      %1736 = vmatmul.f32.gmra.mxu0 %v1613
      %v1737 = vpop.f32.mrf.mxu0
      %v1738 = vadd.f32 0.0, %v1737
      %1739 = vmatmul.f32.gmra.mxu0 %v1614
      %v1740 = vpop.f32.mrf.mxu0
      %v1741 = vadd.f32 0.0, %v1740
      %1742 = vmatmul.f32.gmra.mxu0 %v1615
      %v1743 = vpop.f32.mrf.mxu0
      %v1744 = vadd.f32 0.0, %v1743
      %1745 = vdwg.mxu0
      %v1746 = vadd.f32 %v1567, %v1634
      %v1747 = vadd.f32 %v1568, %v1699
      %v1748 = vadd.f32 %v1569, %v1637
      %v1749 = vadd.f32 %v1570, %v1702
      %v1750 = vadd.f32 %v1571, %v1640
      %v1751 = vadd.f32 %v1572, %v1705
      %v1752 = vadd.f32 %v1573, %v1643
      %v1753 = vadd.f32 %v1574, %v1708
      %v1754 = vadd.f32 %v1575, %v1646
      %v1755 = vadd.f32 %v1576, %v1711
      %v1756 = vadd.f32 %v1577, %v1649
      %v1757 = vadd.f32 %v1578, %v1714
      %v1758 = vadd.f32 %v1579, %v1652
      %v1759 = vadd.f32 %v1580, %v1717
      %v1760 = vadd.f32 %v1581, %v1655
      %v1761 = vadd.f32 %v1582, %v1720
      %v1762 = vadd.f32 %v1583, %v1658
      %v1763 = vadd.f32 %v1584, %v1723
      %v1764 = vadd.f32 %v1585, %v1661
      %v1765 = vadd.f32 %v1586, %v1726
      %v1766 = vadd.f32 %v1587, %v1664
      %v1767 = vadd.f32 %v1588, %v1729
      %v1768 = vadd.f32 %v1589, %v1667
      %v1769 = vadd.f32 %v1590, %v1732
      %v1770 = vadd.f32 %v1591, %v1670
      %v1771 = vadd.f32 %v1592, %v1735
      %v1772 = vadd.f32 %v1593, %v1673
      %v1773 = vadd.f32 %v1594, %v1738
      %v1774 = vadd.f32 %v1595, %v1676
      %v1775 = vadd.f32 %v1596, %v1741
      %v1776 = vadd.f32 %v1597, %v1679
      %v1777 = vadd.f32 %v1598, %v1744
      %v1778 = vld [vmem:[%s4] sm:$0xff]
      %v1779 = vld [vmem:[%s4 + $0x8] sm:$0xff]
      %v1780 = vld [vmem:[%s4 + $0x10] sm:$0xff]
      %v1781 = vld [vmem:[%s4 + $0x18] sm:$0xff]
      %v1782 = vld [vmem:[%s4 + $0x20] sm:$0xff]
      %v1783 = vld [vmem:[%s4 + $0x28] sm:$0xff]
      %v1784 = vld [vmem:[%s4 + $0x30] sm:$0xff]
      %v1785 = vld [vmem:[%s4 + $0x38] sm:$0xff]
      %v1786 = vld [vmem:[%s4 + $0x40] sm:$0xff]
      %v1787 = vld [vmem:[%s4 + $0x48] sm:$0xff]
      %v1788 = vld [vmem:[%s4 + $0x50] sm:$0xff]
      %v1789 = vld [vmem:[%s4 + $0x58] sm:$0xff]
      %v1790 = vld [vmem:[%s4 + $0x60] sm:$0xff]
      %v1791 = vld [vmem:[%s4 + $0x68] sm:$0xff]
      %v1792 = vld [vmem:[%s4 + $0x70] sm:$0xff]
      %v1793 = vld [vmem:[%s4 + $0x78] sm:$0xff]
      %1795 = vset.pattern.permute.xlu0 0
      %1796 = vperm.xlu0 %1795, %v1778
      %v1797 = vpop.permute.xlu0 %1796
      %1800 = vset.pattern.permute.xlu0 0
      %1801 = vperm.xlu0 %1800, %v1779
      %v1802 = vpop.permute.xlu0 %1801
      %1805 = vset.pattern.permute.xlu0 0
      %1806 = vperm.xlu0 %1805, %v1780
      %v1807 = vpop.permute.xlu0 %1806
      %1810 = vset.pattern.permute.xlu0 0
      %1811 = vperm.xlu0 %1810, %v1781
      %v1812 = vpop.permute.xlu0 %1811
      %1815 = vset.pattern.permute.xlu0 0
      %1816 = vperm.xlu0 %1815, %v1782
      %v1817 = vpop.permute.xlu0 %1816
      %1820 = vset.pattern.permute.xlu0 0
      %1821 = vperm.xlu0 %1820, %v1783
      %v1822 = vpop.permute.xlu0 %1821
      %1825 = vset.pattern.permute.xlu0 0
      %1826 = vperm.xlu0 %1825, %v1784
      %v1827 = vpop.permute.xlu0 %1826
      %1830 = vset.pattern.permute.xlu0 0
      %1831 = vperm.xlu0 %1830, %v1785
      %v1832 = vpop.permute.xlu0 %1831
      %1835 = vset.pattern.permute.xlu0 0
      %1836 = vperm.xlu0 %1835, %v1786
      %v1837 = vpop.permute.xlu0 %1836
      %1840 = vset.pattern.permute.xlu0 0
      %1841 = vperm.xlu0 %1840, %v1787
      %v1842 = vpop.permute.xlu0 %1841
      %1845 = vset.pattern.permute.xlu0 0
      %1846 = vperm.xlu0 %1845, %v1788
      %v1847 = vpop.permute.xlu0 %1846
      %1850 = vset.pattern.permute.xlu0 0
      %1851 = vperm.xlu0 %1850, %v1789
      %v1852 = vpop.permute.xlu0 %1851
      %1855 = vset.pattern.permute.xlu0 0
      %1856 = vperm.xlu0 %1855, %v1790
      %v1857 = vpop.permute.xlu0 %1856
      %1860 = vset.pattern.permute.xlu0 0
      %1861 = vperm.xlu0 %1860, %v1791
      %v1862 = vpop.permute.xlu0 %1861
      %1865 = vset.pattern.permute.xlu0 0
      %1866 = vperm.xlu0 %1865, %v1792
      %v1867 = vpop.permute.xlu0 %1866
      %1870 = vset.pattern.permute.xlu0 0
      %1871 = vperm.xlu0 %1870, %v1793
      %v1872 = vpop.permute.xlu0 %1871
      %v1874 = vadd.f32 %v1746, %v1797
      %v1875 = vadd.f32 %v1747, %v1797
      %v1876 = vadd.f32 %v1748, %v1802
      %v1877 = vadd.f32 %v1749, %v1802
      %v1878 = vadd.f32 %v1750, %v1807
      %v1879 = vadd.f32 %v1751, %v1807
      %v1880 = vadd.f32 %v1752, %v1812
      %v1881 = vadd.f32 %v1753, %v1812
      %v1882 = vadd.f32 %v1754, %v1817
      %v1883 = vadd.f32 %v1755, %v1817
      %v1884 = vadd.f32 %v1756, %v1822
      %v1885 = vadd.f32 %v1757, %v1822
      %v1886 = vadd.f32 %v1758, %v1827
      %v1887 = vadd.f32 %v1759, %v1827
      %v1888 = vadd.f32 %v1760, %v1832
      %v1889 = vadd.f32 %v1761, %v1832
      %v1890 = vadd.f32 %v1762, %v1837
      %v1891 = vadd.f32 %v1763, %v1837
      %v1892 = vadd.f32 %v1764, %v1842
      %v1893 = vadd.f32 %v1765, %v1842
      %v1894 = vadd.f32 %v1766, %v1847
      %v1895 = vadd.f32 %v1767, %v1847
      %v1896 = vadd.f32 %v1768, %v1852
      %v1897 = vadd.f32 %v1769, %v1852
      %v1898 = vadd.f32 %v1770, %v1857
      %v1899 = vadd.f32 %v1771, %v1857
      %v1900 = vadd.f32 %v1772, %v1862
      %v1901 = vadd.f32 %v1773, %v1862
      %v1902 = vadd.f32 %v1774, %v1867
      %v1903 = vadd.f32 %v1775, %v1867
      %v1904 = vadd.f32 %v1776, %v1872
      %v1905 = vadd.f32 %v1777, %v1872
      %vm1906 = vcmp.gt.f32.partialorder %v1874, 0.0
      %vm1907 = vcmp.gt.f32.partialorder %v1875, 0.0
      %vm1908 = vcmp.gt.f32.partialorder %v1876, 0.0
      %vm1909 = vcmp.gt.f32.partialorder %v1877, 0.0
      %vm1910 = vcmp.gt.f32.partialorder %v1878, 0.0
      %vm1911 = vcmp.gt.f32.partialorder %v1879, 0.0
      %vm1912 = vcmp.gt.f32.partialorder %v1880, 0.0
      %vm1913 = vcmp.gt.f32.partialorder %v1881, 0.0
      %vm1914 = vcmp.gt.f32.partialorder %v1882, 0.0
      %vm1915 = vcmp.gt.f32.partialorder %v1883, 0.0
      %vm1916 = vcmp.gt.f32.partialorder %v1884, 0.0
      %vm1917 = vcmp.gt.f32.partialorder %v1885, 0.0
      %vm1918 = vcmp.gt.f32.partialorder %v1886, 0.0
      %vm1919 = vcmp.gt.f32.partialorder %v1887, 0.0
      %vm1920 = vcmp.gt.f32.partialorder %v1888, 0.0
      %vm1921 = vcmp.gt.f32.partialorder %v1889, 0.0
      %vm1922 = vcmp.gt.f32.partialorder %v1890, 0.0
      %vm1923 = vcmp.gt.f32.partialorder %v1891, 0.0
      %vm1924 = vcmp.gt.f32.partialorder %v1892, 0.0
      %vm1925 = vcmp.gt.f32.partialorder %v1893, 0.0
      %vm1926 = vcmp.gt.f32.partialorder %v1894, 0.0
      %vm1927 = vcmp.gt.f32.partialorder %v1895, 0.0
      %vm1928 = vcmp.gt.f32.partialorder %v1896, 0.0
      %vm1929 = vcmp.gt.f32.partialorder %v1897, 0.0
      %vm1930 = vcmp.gt.f32.partialorder %v1898, 0.0
      %vm1931 = vcmp.gt.f32.partialorder %v1899, 0.0
      %vm1932 = vcmp.gt.f32.partialorder %v1900, 0.0
      %vm1933 = vcmp.gt.f32.partialorder %v1901, 0.0
      %vm1934 = vcmp.gt.f32.partialorder %v1902, 0.0
      %vm1935 = vcmp.gt.f32.partialorder %v1903, 0.0
      %vm1936 = vcmp.gt.f32.partialorder %v1904, 0.0
      %vm1937 = vcmp.gt.f32.partialorder %v1905, 0.0
      %v1938 = vmul.f32 %v1874, 0.01
      %v1939 = vmul.f32 %v1875, 0.01
      %v1940 = vmul.f32 %v1876, 0.01
      %v1941 = vmul.f32 %v1877, 0.01
      %v1942 = vmul.f32 %v1878, 0.01
      %v1943 = vmul.f32 %v1879, 0.01
      %v1944 = vmul.f32 %v1880, 0.01
      %v1945 = vmul.f32 %v1881, 0.01
      %v1946 = vmul.f32 %v1882, 0.01
      %v1947 = vmul.f32 %v1883, 0.01
      %v1948 = vmul.f32 %v1884, 0.01
      %v1949 = vmul.f32 %v1885, 0.01
      %v1950 = vmul.f32 %v1886, 0.01
      %v1951 = vmul.f32 %v1887, 0.01
      %v1952 = vmul.f32 %v1888, 0.01
      %v1953 = vmul.f32 %v1889, 0.01
      %v1954 = vmul.f32 %v1890, 0.01
      %v1955 = vmul.f32 %v1891, 0.01
      %v1956 = vmul.f32 %v1892, 0.01
      %v1957 = vmul.f32 %v1893, 0.01
      %v1958 = vmul.f32 %v1894, 0.01
      %v1959 = vmul.f32 %v1895, 0.01
      %v1960 = vmul.f32 %v1896, 0.01
      %v1961 = vmul.f32 %v1897, 0.01
      %v1962 = vmul.f32 %v1898, 0.01
      %v1963 = vmul.f32 %v1899, 0.01
      %v1964 = vmul.f32 %v1900, 0.01
      %v1965 = vmul.f32 %v1901, 0.01
      %v1966 = vmul.f32 %v1902, 0.01
      %v1967 = vmul.f32 %v1903, 0.01
      %v1968 = vmul.f32 %v1904, 0.01
      %v1969 = vmul.f32 %v1905, 0.01
      %v1970 = vsel %vm1906, %v1874, %v1938
      %v1971 = vsel %vm1907, %v1875, %v1939
      %v1972 = vsel %vm1908, %v1876, %v1940
      %v1973 = vsel %vm1909, %v1877, %v1941
      %v1974 = vsel %vm1910, %v1878, %v1942
      %v1975 = vsel %vm1911, %v1879, %v1943
      %v1976 = vsel %vm1912, %v1880, %v1944
      %v1977 = vsel %vm1913, %v1881, %v1945
      %v1978 = vsel %vm1914, %v1882, %v1946
      %v1979 = vsel %vm1915, %v1883, %v1947
      %v1980 = vsel %vm1916, %v1884, %v1948
      %v1981 = vsel %vm1917, %v1885, %v1949
      %v1982 = vsel %vm1918, %v1886, %v1950
      %v1983 = vsel %vm1919, %v1887, %v1951
      %v1984 = vsel %vm1920, %v1888, %v1952
      %v1985 = vsel %vm1921, %v1889, %v1953
      %v1986 = vsel %vm1922, %v1890, %v1954
      %v1987 = vsel %vm1923, %v1891, %v1955
      %v1988 = vsel %vm1924, %v1892, %v1956
      %v1989 = vsel %vm1925, %v1893, %v1957
      %v1990 = vsel %vm1926, %v1894, %v1958
      %v1991 = vsel %vm1927, %v1895, %v1959
      %v1992 = vsel %vm1928, %v1896, %v1960
      %v1993 = vsel %vm1929, %v1897, %v1961
      %v1994 = vsel %vm1930, %v1898, %v1962
      %v1995 = vsel %vm1931, %v1899, %v1963
      %v1996 = vsel %vm1932, %v1900, %v1964
      %v1997 = vsel %vm1933, %v1901, %v1965
      %v1998 = vsel %vm1934, %v1902, %v1966
      %v1999 = vsel %vm1935, %v1903, %v1967
      %v2000 = vsel %vm1936, %v1904, %v1968
      %v2001 = vsel %vm1937, %v1905, %v1969
      %v2002 = vld [vmem:[%s5] sm:$0xff]
      %v2003 = vld [vmem:[%s5 + $0x8] sm:$0xff]
      %v2004 = vld [vmem:[%s5 + $0x10] sm:$0xff]
      %v2005 = vld [vmem:[%s5 + $0x18] sm:$0xff]
      %v2006 = vld [vmem:[%s5 + $0x20] sm:$0xff]
      %v2007 = vld [vmem:[%s5 + $0x28] sm:$0xff]
      %v2008 = vld [vmem:[%s5 + $0x30] sm:$0xff]
      %v2009 = vld [vmem:[%s5 + $0x38] sm:$0xff]
      %v2010 = vld [vmem:[%s5 + $0x40] sm:$0xff]
      %v2011 = vld [vmem:[%s5 + $0x48] sm:$0xff]
      %v2012 = vld [vmem:[%s5 + $0x50] sm:$0xff]
      %v2013 = vld [vmem:[%s5 + $0x58] sm:$0xff]
      %v2014 = vld [vmem:[%s5 + $0x60] sm:$0xff]
      %v2015 = vld [vmem:[%s5 + $0x68] sm:$0xff]
      %v2016 = vld [vmem:[%s5 + $0x70] sm:$0xff]
      %v2017 = vld [vmem:[%s5 + $0x78] sm:$0xff]
      %v2018 = vmul.f32 %v1970, %v1970
      %v2019 = vmul.f32 %v1971, %v1971
      %v2020 = vmul.f32 %v1972, %v1972
      %v2021 = vmul.f32 %v1973, %v1973
      %v2022 = vmul.f32 %v1974, %v1974
      %v2023 = vmul.f32 %v1975, %v1975
      %v2024 = vmul.f32 %v1976, %v1976
      %v2025 = vmul.f32 %v1977, %v1977
      %v2026 = vmul.f32 %v1978, %v1978
      %v2027 = vmul.f32 %v1979, %v1979
      %v2028 = vmul.f32 %v1980, %v1980
      %v2029 = vmul.f32 %v1981, %v1981
      %v2030 = vmul.f32 %v1982, %v1982
      %v2031 = vmul.f32 %v1983, %v1983
      %v2032 = vmul.f32 %v1984, %v1984
      %v2033 = vmul.f32 %v1985, %v1985
      %v2034 = vmul.f32 %v1986, %v1986
      %v2035 = vmul.f32 %v1987, %v1987
      %v2036 = vmul.f32 %v1988, %v1988
      %v2037 = vmul.f32 %v1989, %v1989
      %v2038 = vmul.f32 %v1990, %v1990
      %v2039 = vmul.f32 %v1991, %v1991
      %v2040 = vmul.f32 %v1992, %v1992
      %v2041 = vmul.f32 %v1993, %v1993
      %v2042 = vmul.f32 %v1994, %v1994
      %v2043 = vmul.f32 %v1995, %v1995
      %v2044 = vmul.f32 %v1996, %v1996
      %v2045 = vmul.f32 %v1997, %v1997
      %v2046 = vmul.f32 %v1998, %v1998
      %v2047 = vmul.f32 %v1999, %v1999
      %v2048 = vmul.f32 %v2000, %v2000
      %v2049 = vmul.f32 %v2001, %v2001
      %v2050 = vld [vmem:[%s6] sm:$0xff]
      %v2051 = vld [vmem:[%s6 + $0x8] sm:$0xff]
      %v2052 = vld [vmem:[%s6 + $0x10] sm:$0xff]
      %v2053 = vld [vmem:[%s6 + $0x18] sm:$0xff]
      %v2054 = vld [vmem:[%s6 + $0x20] sm:$0xff]
      %v2055 = vld [vmem:[%s6 + $0x28] sm:$0xff]
      %v2056 = vld [vmem:[%s6 + $0x30] sm:$0xff]
      %v2057 = vld [vmem:[%s6 + $0x38] sm:$0xff]
      %v2058 = vld [vmem:[%s6 + $0x40] sm:$0xff]
      %v2059 = vld [vmem:[%s6 + $0x48] sm:$0xff]
      %v2060 = vld [vmem:[%s6 + $0x50] sm:$0xff]
      %v2061 = vld [vmem:[%s6 + $0x58] sm:$0xff]
      %v2062 = vld [vmem:[%s6 + $0x60] sm:$0xff]
      %v2063 = vld [vmem:[%s6 + $0x68] sm:$0xff]
      %v2064 = vld [vmem:[%s6 + $0x70] sm:$0xff]
      %v2065 = vld [vmem:[%s6 + $0x78] sm:$0xff]
      %2067 = vset.pattern.permute.xlu0 0
      %2068 = vperm.xlu0 %2067, %v2050
      %v2069 = vpop.permute.xlu0 %2068
      %2072 = vset.pattern.permute.xlu0 0
      %2073 = vperm.xlu0 %2072, %v2051
      %v2074 = vpop.permute.xlu0 %2073
      %2077 = vset.pattern.permute.xlu0 0
      %2078 = vperm.xlu0 %2077, %v2052
      %v2079 = vpop.permute.xlu0 %2078
      %2082 = vset.pattern.permute.xlu0 0
      %2083 = vperm.xlu0 %2082, %v2053
      %v2084 = vpop.permute.xlu0 %2083
      %2087 = vset.pattern.permute.xlu0 0
      %2088 = vperm.xlu0 %2087, %v2054
      %v2089 = vpop.permute.xlu0 %2088
      %2092 = vset.pattern.permute.xlu0 0
      %2093 = vperm.xlu0 %2092, %v2055
      %v2094 = vpop.permute.xlu0 %2093
      %2097 = vset.pattern.permute.xlu0 0
      %2098 = vperm.xlu0 %2097, %v2056
      %v2099 = vpop.permute.xlu0 %2098
      %2102 = vset.pattern.permute.xlu0 0
      %2103 = vperm.xlu0 %2102, %v2057
      %v2104 = vpop.permute.xlu0 %2103
      %2107 = vset.pattern.permute.xlu0 0
      %2108 = vperm.xlu0 %2107, %v2058
      %v2109 = vpop.permute.xlu0 %2108
      %2112 = vset.pattern.permute.xlu0 0
      %2113 = vperm.xlu0 %2112, %v2059
      %v2114 = vpop.permute.xlu0 %2113
      %2117 = vset.pattern.permute.xlu0 0
      %2118 = vperm.xlu0 %2117, %v2060
      %v2119 = vpop.permute.xlu0 %2118
      %2122 = vset.pattern.permute.xlu0 0
      %2123 = vperm.xlu0 %2122, %v2061
      %v2124 = vpop.permute.xlu0 %2123
      %2127 = vset.pattern.permute.xlu0 0
      %2128 = vperm.xlu0 %2127, %v2062
      %v2129 = vpop.permute.xlu0 %2128
      %2132 = vset.pattern.permute.xlu0 0
      %2133 = vperm.xlu0 %2132, %v2063
      %v2134 = vpop.permute.xlu0 %2133
      %2137 = vset.pattern.permute.xlu0 0
      %2138 = vperm.xlu0 %2137, %v2064
      %v2139 = vpop.permute.xlu0 %2138
      %2142 = vset.pattern.permute.xlu0 0
      %2143 = vperm.xlu0 %2142, %v2065
      %v2144 = vpop.permute.xlu0 %2143
      %2146 = vmatpush.msra.mxu0 %v2048
      %2147 = vmatpush.msra.mxu0 %v2046
      %2148 = vmatpush.msra.mxu0 %v2044
      %2149 = vmatpush.msra.mxu0 %v2042
      %2150 = vmatpush.msra.mxu0 %v2040
      %2151 = vmatpush.msra.mxu0 %v2038
      %2152 = vmatpush.msra.mxu0 %v2036
      %2153 = vmatpush.msra.mxu0 %v2034
      %2154 = vmatpush.msra.mxu0 %v2032
      %2155 = vmatpush.msra.mxu0 %v2030
      %2156 = vmatpush.msra.mxu0 %v2028
      %2157 = vmatpush.msra.mxu0 %v2026
      %2158 = vmatpush.msra.mxu0 %v2024
      %2159 = vmatpush.msra.mxu0 %v2022
      %2160 = vmatpush.msra.mxu0 %v2020
      %2161 = vmatpush.msra.mxu0 %v2018
      %2162 = vmatmul.f32.gmra.mxu0 %v2002
      %v2163 = vpop.f32.mrf.mxu0
      %v2164 = vadd.f32 %v2069, %v2163
      %2165 = vmatmul.f32.gmra.mxu0 %v2003
      %v2166 = vpop.f32.mrf.mxu0
      %v2167 = vadd.f32 %v2074, %v2166
      %2168 = vmatmul.f32.gmra.mxu0 %v2004
      %v2169 = vpop.f32.mrf.mxu0
      %v2170 = vadd.f32 %v2079, %v2169
      %2171 = vmatmul.f32.gmra.mxu0 %v2005
      %v2172 = vpop.f32.mrf.mxu0
      %v2173 = vadd.f32 %v2084, %v2172
      %2174 = vmatmul.f32.gmra.mxu0 %v2006
      %v2175 = vpop.f32.mrf.mxu0
      %v2176 = vadd.f32 %v2089, %v2175
      %2177 = vmatmul.f32.gmra.mxu0 %v2007
      %v2178 = vpop.f32.mrf.mxu0
      %v2179 = vadd.f32 %v2094, %v2178
      %2180 = vmatmul.f32.gmra.mxu0 %v2008
      %v2181 = vpop.f32.mrf.mxu0
      %v2182 = vadd.f32 %v2099, %v2181
      %2183 = vmatmul.f32.gmra.mxu0 %v2009
      %v2184 = vpop.f32.mrf.mxu0
      %v2185 = vadd.f32 %v2104, %v2184
      %2186 = vmatmul.f32.gmra.mxu0 %v2010
      %v2187 = vpop.f32.mrf.mxu0
      %v2188 = vadd.f32 %v2109, %v2187
      %2189 = vmatmul.f32.gmra.mxu0 %v2011
      %v2190 = vpop.f32.mrf.mxu0
      %v2191 = vadd.f32 %v2114, %v2190
      %2192 = vmatmul.f32.gmra.mxu0 %v2012
      %v2193 = vpop.f32.mrf.mxu0
      %v2194 = vadd.f32 %v2119, %v2193
      %2195 = vmatmul.f32.gmra.mxu0 %v2013
      %v2196 = vpop.f32.mrf.mxu0
      %v2197 = vadd.f32 %v2124, %v2196
      %2198 = vmatmul.f32.gmra.mxu0 %v2014
      %v2199 = vpop.f32.mrf.mxu0
      %v2200 = vadd.f32 %v2129, %v2199
      %2201 = vmatmul.f32.gmra.mxu0 %v2015
      %v2202 = vpop.f32.mrf.mxu0
      %v2203 = vadd.f32 %v2134, %v2202
      %2204 = vmatmul.f32.gmra.mxu0 %v2016
      %v2205 = vpop.f32.mrf.mxu0
      %v2206 = vadd.f32 %v2139, %v2205
      %2207 = vmatmul.f32.gmra.mxu0 %v2017
      %v2208 = vpop.f32.mrf.mxu0
      %v2209 = vadd.f32 %v2144, %v2208
      %2210 = vdwg.mxu0
      %2211 = vmatpush.msra.mxu0 %v2049
      %2212 = vmatpush.msra.mxu0 %v2047
      %2213 = vmatpush.msra.mxu0 %v2045
      %2214 = vmatpush.msra.mxu0 %v2043
      %2215 = vmatpush.msra.mxu0 %v2041
      %2216 = vmatpush.msra.mxu0 %v2039
      %2217 = vmatpush.msra.mxu0 %v2037
      %2218 = vmatpush.msra.mxu0 %v2035
      %2219 = vmatpush.msra.mxu0 %v2033
      %2220 = vmatpush.msra.mxu0 %v2031
      %2221 = vmatpush.msra.mxu0 %v2029
      %2222 = vmatpush.msra.mxu0 %v2027
      %2223 = vmatpush.msra.mxu0 %v2025
      %2224 = vmatpush.msra.mxu0 %v2023
      %2225 = vmatpush.msra.mxu0 %v2021
      %2226 = vmatpush.msra.mxu0 %v2019
      %2227 = vmatmul.f32.gmra.mxu0 %v2002
      %v2228 = vpop.f32.mrf.mxu0
      %v2229 = vadd.f32 %v2069, %v2228
      %2230 = vmatmul.f32.gmra.mxu0 %v2003
      %v2231 = vpop.f32.mrf.mxu0
      %v2232 = vadd.f32 %v2074, %v2231
      %2233 = vmatmul.f32.gmra.mxu0 %v2004
      %v2234 = vpop.f32.mrf.mxu0
      %v2235 = vadd.f32 %v2079, %v2234
      %2236 = vmatmul.f32.gmra.mxu0 %v2005
      %v2237 = vpop.f32.mrf.mxu0
      %v2238 = vadd.f32 %v2084, %v2237
      %2239 = vmatmul.f32.gmra.mxu0 %v2006
      %v2240 = vpop.f32.mrf.mxu0
      %v2241 = vadd.f32 %v2089, %v2240
      %2242 = vmatmul.f32.gmra.mxu0 %v2007
      %v2243 = vpop.f32.mrf.mxu0
      %v2244 = vadd.f32 %v2094, %v2243
      %2245 = vmatmul.f32.gmra.mxu0 %v2008
      %v2246 = vpop.f32.mrf.mxu0
      %v2247 = vadd.f32 %v2099, %v2246
      %2248 = vmatmul.f32.gmra.mxu0 %v2009
      %v2249 = vpop.f32.mrf.mxu0
      %v2250 = vadd.f32 %v2104, %v2249
      %2251 = vmatmul.f32.gmra.mxu0 %v2010
      %v2252 = vpop.f32.mrf.mxu0
      %v2253 = vadd.f32 %v2109, %v2252
      %2254 = vmatmul.f32.gmra.mxu0 %v2011
      %v2255 = vpop.f32.mrf.mxu0
      %v2256 = vadd.f32 %v2114, %v2255
      %2257 = vmatmul.f32.gmra.mxu0 %v2012
      %v2258 = vpop.f32.mrf.mxu0
      %v2259 = vadd.f32 %v2119, %v2258
      %2260 = vmatmul.f32.gmra.mxu0 %v2013
      %v2261 = vpop.f32.mrf.mxu0
      %v2262 = vadd.f32 %v2124, %v2261
      %2263 = vmatmul.f32.gmra.mxu0 %v2014
      %v2264 = vpop.f32.mrf.mxu0
      %v2265 = vadd.f32 %v2129, %v2264
      %2266 = vmatmul.f32.gmra.mxu0 %v2015
      %v2267 = vpop.f32.mrf.mxu0
      %v2268 = vadd.f32 %v2134, %v2267
      %2269 = vmatmul.f32.gmra.mxu0 %v2016
      %v2270 = vpop.f32.mrf.mxu0
      %v2271 = vadd.f32 %v2139, %v2270
      %2272 = vmatmul.f32.gmra.mxu0 %v2017
      %v2273 = vpop.f32.mrf.mxu0
      %v2274 = vadd.f32 %v2144, %v2273
      %2275 = vdwg.mxu0
      %v2276 = vrsqrt.pop %v2164
      %v2277 = vmul.f32 %v2276, %v2164
      %v2278 = vmul.f32 %v2277, %v2276
      %v2279 = vmul.f32 0.5, %v2278
      %v2280 = vsub.f32 1.5, %v2279
      %v2281 = vmul.f32 %v2276, %v2280
      %vm2282 = vweird.f32 %v2164
      %vm2283 = vweird.f32 %v2276
      %vm2284 = vmor %vm2282, %vm2283
      %v2285 = vsel %vm2284, %v2276, %v2281
      %v2286 = vrsqrt.pop %v2229
      %v2287 = vmul.f32 %v2286, %v2229
      %v2288 = vmul.f32 %v2287, %v2286
      %v2289 = vmul.f32 0.5, %v2288
      %v2290 = vsub.f32 1.5, %v2289
      %v2291 = vmul.f32 %v2286, %v2290
      %vm2292 = vweird.f32 %v2229
      %vm2293 = vweird.f32 %v2286
      %vm2294 = vmor %vm2292, %vm2293
      %v2295 = vsel %vm2294, %v2286, %v2291
      %v2296 = vrsqrt.pop %v2167
      %v2297 = vmul.f32 %v2296, %v2167
      %v2298 = vmul.f32 %v2297, %v2296
      %v2299 = vmul.f32 0.5, %v2298
      %v2300 = vsub.f32 1.5, %v2299
      %v2301 = vmul.f32 %v2296, %v2300
      %vm2302 = vweird.f32 %v2167
      %vm2303 = vweird.f32 %v2296
      %vm2304 = vmor %vm2302, %vm2303
      %v2305 = vsel %vm2304, %v2296, %v2301
      %v2306 = vrsqrt.pop %v2232
      %v2307 = vmul.f32 %v2306, %v2232
      %v2308 = vmul.f32 %v2307, %v2306
      %v2309 = vmul.f32 0.5, %v2308
      %v2310 = vsub.f32 1.5, %v2309
      %v2311 = vmul.f32 %v2306, %v2310
      %vm2312 = vweird.f32 %v2232
      %vm2313 = vweird.f32 %v2306
      %vm2314 = vmor %vm2312, %vm2313
      %v2315 = vsel %vm2314, %v2306, %v2311
      %v2316 = vrsqrt.pop %v2170
      %v2317 = vmul.f32 %v2316, %v2170
      %v2318 = vmul.f32 %v2317, %v2316
      %v2319 = vmul.f32 0.5, %v2318
      %v2320 = vsub.f32 1.5, %v2319
      %v2321 = vmul.f32 %v2316, %v2320
      %vm2322 = vweird.f32 %v2170
      %vm2323 = vweird.f32 %v2316
      %vm2324 = vmor %vm2322, %vm2323
      %v2325 = vsel %vm2324, %v2316, %v2321
      %v2326 = vrsqrt.pop %v2235
      %v2327 = vmul.f32 %v2326, %v2235
      %v2328 = vmul.f32 %v2327, %v2326
      %v2329 = vmul.f32 0.5, %v2328
      %v2330 = vsub.f32 1.5, %v2329
      %v2331 = vmul.f32 %v2326, %v2330
      %vm2332 = vweird.f32 %v2235
      %vm2333 = vweird.f32 %v2326
      %vm2334 = vmor %vm2332, %vm2333
      %v2335 = vsel %vm2334, %v2326, %v2331
      %v2336 = vrsqrt.pop %v2173
      %v2337 = vmul.f32 %v2336, %v2173
      %v2338 = vmul.f32 %v2337, %v2336
      %v2339 = vmul.f32 0.5, %v2338
      %v2340 = vsub.f32 1.5, %v2339
      %v2341 = vmul.f32 %v2336, %v2340
      %vm2342 = vweird.f32 %v2173
      %vm2343 = vweird.f32 %v2336
      %vm2344 = vmor %vm2342, %vm2343
      %v2345 = vsel %vm2344, %v2336, %v2341
      %v2346 = vrsqrt.pop %v2238
      %v2347 = vmul.f32 %v2346, %v2238
      %v2348 = vmul.f32 %v2347, %v2346
      %v2349 = vmul.f32 0.5, %v2348
      %v2350 = vsub.f32 1.5, %v2349
      %v2351 = vmul.f32 %v2346, %v2350
      %vm2352 = vweird.f32 %v2238
      %vm2353 = vweird.f32 %v2346
      %vm2354 = vmor %vm2352, %vm2353
      %v2355 = vsel %vm2354, %v2346, %v2351
      %v2356 = vrsqrt.pop %v2176
      %v2357 = vmul.f32 %v2356, %v2176
      %v2358 = vmul.f32 %v2357, %v2356
      %v2359 = vmul.f32 0.5, %v2358
      %v2360 = vsub.f32 1.5, %v2359
      %v2361 = vmul.f32 %v2356, %v2360
      %vm2362 = vweird.f32 %v2176
      %vm2363 = vweird.f32 %v2356
      %vm2364 = vmor %vm2362, %vm2363
      %v2365 = vsel %vm2364, %v2356, %v2361
      %v2366 = vrsqrt.pop %v2241
      %v2367 = vmul.f32 %v2366, %v2241
      %v2368 = vmul.f32 %v2367, %v2366
      %v2369 = vmul.f32 0.5, %v2368
      %v2370 = vsub.f32 1.5, %v2369
      %v2371 = vmul.f32 %v2366, %v2370
      %vm2372 = vweird.f32 %v2241
      %vm2373 = vweird.f32 %v2366
      %vm2374 = vmor %vm2372, %vm2373
      %v2375 = vsel %vm2374, %v2366, %v2371
      %v2376 = vrsqrt.pop %v2179
      %v2377 = vmul.f32 %v2376, %v2179
      %v2378 = vmul.f32 %v2377, %v2376
      %v2379 = vmul.f32 0.5, %v2378
      %v2380 = vsub.f32 1.5, %v2379
      %v2381 = vmul.f32 %v2376, %v2380
      %vm2382 = vweird.f32 %v2179
      %vm2383 = vweird.f32 %v2376
      %vm2384 = vmor %vm2382, %vm2383
      %v2385 = vsel %vm2384, %v2376, %v2381
      %v2386 = vrsqrt.pop %v2244
      %v2387 = vmul.f32 %v2386, %v2244
      %v2388 = vmul.f32 %v2387, %v2386
      %v2389 = vmul.f32 0.5, %v2388
      %v2390 = vsub.f32 1.5, %v2389
      %v2391 = vmul.f32 %v2386, %v2390
      %vm2392 = vweird.f32 %v2244
      %vm2393 = vweird.f32 %v2386
      %vm2394 = vmor %vm2392, %vm2393
      %v2395 = vsel %vm2394, %v2386, %v2391
      %v2396 = vrsqrt.pop %v2182
      %v2397 = vmul.f32 %v2396, %v2182
      %v2398 = vmul.f32 %v2397, %v2396
      %v2399 = vmul.f32 0.5, %v2398
      %v2400 = vsub.f32 1.5, %v2399
      %v2401 = vmul.f32 %v2396, %v2400
      %vm2402 = vweird.f32 %v2182
      %vm2403 = vweird.f32 %v2396
      %vm2404 = vmor %vm2402, %vm2403
      %v2405 = vsel %vm2404, %v2396, %v2401
      %v2406 = vrsqrt.pop %v2247
      %v2407 = vmul.f32 %v2406, %v2247
      %v2408 = vmul.f32 %v2407, %v2406
      %v2409 = vmul.f32 0.5, %v2408
      %v2410 = vsub.f32 1.5, %v2409
      %v2411 = vmul.f32 %v2406, %v2410
      %vm2412 = vweird.f32 %v2247
      %vm2413 = vweird.f32 %v2406
      %vm2414 = vmor %vm2412, %vm2413
      %v2415 = vsel %vm2414, %v2406, %v2411
      %v2416 = vrsqrt.pop %v2185
      %v2417 = vmul.f32 %v2416, %v2185
      %v2418 = vmul.f32 %v2417, %v2416
      %v2419 = vmul.f32 0.5, %v2418
      %v2420 = vsub.f32 1.5, %v2419
      %v2421 = vmul.f32 %v2416, %v2420
      %vm2422 = vweird.f32 %v2185
      %vm2423 = vweird.f32 %v2416
      %vm2424 = vmor %vm2422, %vm2423
      %v2425 = vsel %vm2424, %v2416, %v2421
      %v2426 = vrsqrt.pop %v2250
      %v2427 = vmul.f32 %v2426, %v2250
      %v2428 = vmul.f32 %v2427, %v2426
      %v2429 = vmul.f32 0.5, %v2428
      %v2430 = vsub.f32 1.5, %v2429
      %v2431 = vmul.f32 %v2426, %v2430
      %vm2432 = vweird.f32 %v2250
      %vm2433 = vweird.f32 %v2426
      %vm2434 = vmor %vm2432, %vm2433
      %v2435 = vsel %vm2434, %v2426, %v2431
      %v2436 = vrsqrt.pop %v2188
      %v2437 = vmul.f32 %v2436, %v2188
      %v2438 = vmul.f32 %v2437, %v2436
      %v2439 = vmul.f32 0.5, %v2438
      %v2440 = vsub.f32 1.5, %v2439
      %v2441 = vmul.f32 %v2436, %v2440
      %vm2442 = vweird.f32 %v2188
      %vm2443 = vweird.f32 %v2436
      %vm2444 = vmor %vm2442, %vm2443
      %v2445 = vsel %vm2444, %v2436, %v2441
      %v2446 = vrsqrt.pop %v2253
      %v2447 = vmul.f32 %v2446, %v2253
      %v2448 = vmul.f32 %v2447, %v2446
      %v2449 = vmul.f32 0.5, %v2448
      %v2450 = vsub.f32 1.5, %v2449
      %v2451 = vmul.f32 %v2446, %v2450
      %vm2452 = vweird.f32 %v2253
      %vm2453 = vweird.f32 %v2446
      %vm2454 = vmor %vm2452, %vm2453
      %v2455 = vsel %vm2454, %v2446, %v2451
      %v2456 = vrsqrt.pop %v2191
      %v2457 = vmul.f32 %v2456, %v2191
      %v2458 = vmul.f32 %v2457, %v2456
      %v2459 = vmul.f32 0.5, %v2458
      %v2460 = vsub.f32 1.5, %v2459
      %v2461 = vmul.f32 %v2456, %v2460
      %vm2462 = vweird.f32 %v2191
      %vm2463 = vweird.f32 %v2456
      %vm2464 = vmor %vm2462, %vm2463
      %v2465 = vsel %vm2464, %v2456, %v2461
      %v2466 = vrsqrt.pop %v2256
      %v2467 = vmul.f32 %v2466, %v2256
      %v2468 = vmul.f32 %v2467, %v2466
      %v2469 = vmul.f32 0.5, %v2468
      %v2470 = vsub.f32 1.5, %v2469
      %v2471 = vmul.f32 %v2466, %v2470
      %vm2472 = vweird.f32 %v2256
      %vm2473 = vweird.f32 %v2466
      %vm2474 = vmor %vm2472, %vm2473
      %v2475 = vsel %vm2474, %v2466, %v2471
      %v2476 = vrsqrt.pop %v2194
      %v2477 = vmul.f32 %v2476, %v2194
      %v2478 = vmul.f32 %v2477, %v2476
      %v2479 = vmul.f32 0.5, %v2478
      %v2480 = vsub.f32 1.5, %v2479
      %v2481 = vmul.f32 %v2476, %v2480
      %vm2482 = vweird.f32 %v2194
      %vm2483 = vweird.f32 %v2476
      %vm2484 = vmor %vm2482, %vm2483
      %v2485 = vsel %vm2484, %v2476, %v2481
      %v2486 = vrsqrt.pop %v2259
      %v2487 = vmul.f32 %v2486, %v2259
      %v2488 = vmul.f32 %v2487, %v2486
      %v2489 = vmul.f32 0.5, %v2488
      %v2490 = vsub.f32 1.5, %v2489
      %v2491 = vmul.f32 %v2486, %v2490
      %vm2492 = vweird.f32 %v2259
      %vm2493 = vweird.f32 %v2486
      %vm2494 = vmor %vm2492, %vm2493
      %v2495 = vsel %vm2494, %v2486, %v2491
      %v2496 = vrsqrt.pop %v2197
      %v2497 = vmul.f32 %v2496, %v2197
      %v2498 = vmul.f32 %v2497, %v2496
      %v2499 = vmul.f32 0.5, %v2498
      %v2500 = vsub.f32 1.5, %v2499
      %v2501 = vmul.f32 %v2496, %v2500
      %vm2502 = vweird.f32 %v2197
      %vm2503 = vweird.f32 %v2496
      %vm2504 = vmor %vm2502, %vm2503
      %v2505 = vsel %vm2504, %v2496, %v2501
      %v2506 = vrsqrt.pop %v2262
      %v2507 = vmul.f32 %v2506, %v2262
      %v2508 = vmul.f32 %v2507, %v2506
      %v2509 = vmul.f32 0.5, %v2508
      %v2510 = vsub.f32 1.5, %v2509
      %v2511 = vmul.f32 %v2506, %v2510
      %vm2512 = vweird.f32 %v2262
      %vm2513 = vweird.f32 %v2506
      %vm2514 = vmor %vm2512, %vm2513
      %v2515 = vsel %vm2514, %v2506, %v2511
      %v2516 = vrsqrt.pop %v2200
      %v2517 = vmul.f32 %v2516, %v2200
      %v2518 = vmul.f32 %v2517, %v2516
      %v2519 = vmul.f32 0.5, %v2518
      %v2520 = vsub.f32 1.5, %v2519
      %v2521 = vmul.f32 %v2516, %v2520
      %vm2522 = vweird.f32 %v2200
      %vm2523 = vweird.f32 %v2516
      %vm2524 = vmor %vm2522, %vm2523
      %v2525 = vsel %vm2524, %v2516, %v2521
      %v2526 = vrsqrt.pop %v2265
      %v2527 = vmul.f32 %v2526, %v2265
      %v2528 = vmul.f32 %v2527, %v2526
      %v2529 = vmul.f32 0.5, %v2528
      %v2530 = vsub.f32 1.5, %v2529
      %v2531 = vmul.f32 %v2526, %v2530
      %vm2532 = vweird.f32 %v2265
      %vm2533 = vweird.f32 %v2526
      %vm2534 = vmor %vm2532, %vm2533
      %v2535 = vsel %vm2534, %v2526, %v2531
      %v2536 = vrsqrt.pop %v2203
      %v2537 = vmul.f32 %v2536, %v2203
      %v2538 = vmul.f32 %v2537, %v2536
      %v2539 = vmul.f32 0.5, %v2538
      %v2540 = vsub.f32 1.5, %v2539
      %v2541 = vmul.f32 %v2536, %v2540
      %vm2542 = vweird.f32 %v2203
      %vm2543 = vweird.f32 %v2536
      %vm2544 = vmor %vm2542, %vm2543
      %v2545 = vsel %vm2544, %v2536, %v2541
      %v2546 = vrsqrt.pop %v2268
      %v2547 = vmul.f32 %v2546, %v2268
      %v2548 = vmul.f32 %v2547, %v2546
      %v2549 = vmul.f32 0.5, %v2548
      %v2550 = vsub.f32 1.5, %v2549
      %v2551 = vmul.f32 %v2546, %v2550
      %vm2552 = vweird.f32 %v2268
      %vm2553 = vweird.f32 %v2546
      %vm2554 = vmor %vm2552, %vm2553
      %v2555 = vsel %vm2554, %v2546, %v2551
      %v2556 = vrsqrt.pop %v2206
      %v2557 = vmul.f32 %v2556, %v2206
      %v2558 = vmul.f32 %v2557, %v2556
      %v2559 = vmul.f32 0.5, %v2558
      %v2560 = vsub.f32 1.5, %v2559
      %v2561 = vmul.f32 %v2556, %v2560
      %vm2562 = vweird.f32 %v2206
      %vm2563 = vweird.f32 %v2556
      %vm2564 = vmor %vm2562, %vm2563
      %v2565 = vsel %vm2564, %v2556, %v2561
      %v2566 = vrsqrt.pop %v2271
      %v2567 = vmul.f32 %v2566, %v2271
      %v2568 = vmul.f32 %v2567, %v2566
      %v2569 = vmul.f32 0.5, %v2568
      %v2570 = vsub.f32 1.5, %v2569
      %v2571 = vmul.f32 %v2566, %v2570
      %vm2572 = vweird.f32 %v2271
      %vm2573 = vweird.f32 %v2566
      %vm2574 = vmor %vm2572, %vm2573
      %v2575 = vsel %vm2574, %v2566, %v2571
      %v2576 = vrsqrt.pop %v2209
      %v2577 = vmul.f32 %v2576, %v2209
      %v2578 = vmul.f32 %v2577, %v2576
      %v2579 = vmul.f32 0.5, %v2578
      %v2580 = vsub.f32 1.5, %v2579
      %v2581 = vmul.f32 %v2576, %v2580
      %vm2582 = vweird.f32 %v2209
      %vm2583 = vweird.f32 %v2576
      %vm2584 = vmor %vm2582, %vm2583
      %v2585 = vsel %vm2584, %v2576, %v2581
      %v2586 = vrsqrt.pop %v2274
      %v2587 = vmul.f32 %v2586, %v2274
      %v2588 = vmul.f32 %v2587, %v2586
      %v2589 = vmul.f32 0.5, %v2588
      %v2590 = vsub.f32 1.5, %v2589
      %v2591 = vmul.f32 %v2586, %v2590
      %vm2592 = vweird.f32 %v2274
      %vm2593 = vweird.f32 %v2586
      %vm2594 = vmor %vm2592, %vm2593
      %v2595 = vsel %vm2594, %v2586, %v2591
      %v2596 = vmul.f32 %v1970, %v2285
      %v2597 = vmul.f32 %v1971, %v2295
      %v2598 = vmul.f32 %v1972, %v2305
      %v2599 = vmul.f32 %v1973, %v2315
      %v2600 = vmul.f32 %v1974, %v2325
      %v2601 = vmul.f32 %v1975, %v2335
      %v2602 = vmul.f32 %v1976, %v2345
      %v2603 = vmul.f32 %v1977, %v2355
      %v2604 = vmul.f32 %v1978, %v2365
      %v2605 = vmul.f32 %v1979, %v2375
      %v2606 = vmul.f32 %v1980, %v2385
      %v2607 = vmul.f32 %v1981, %v2395
      %v2608 = vmul.f32 %v1982, %v2405
      %v2609 = vmul.f32 %v1983, %v2415
      %v2610 = vmul.f32 %v1984, %v2425
      %v2611 = vmul.f32 %v1985, %v2435
      %v2612 = vmul.f32 %v1986, %v2445
      %v2613 = vmul.f32 %v1987, %v2455
      %v2614 = vmul.f32 %v1988, %v2465
      %v2615 = vmul.f32 %v1989, %v2475
      %v2616 = vmul.f32 %v1990, %v2485
      %v2617 = vmul.f32 %v1991, %v2495
      %v2618 = vmul.f32 %v1992, %v2505
      %v2619 = vmul.f32 %v1993, %v2515
      %v2620 = vmul.f32 %v1994, %v2525
      %v2621 = vmul.f32 %v1995, %v2535
      %v2622 = vmul.f32 %v1996, %v2545
      %v2623 = vmul.f32 %v1997, %v2555
      %v2624 = vmul.f32 %v1998, %v2565
      %v2625 = vmul.f32 %v1999, %v2575
      %v2626 = vmul.f32 %v2000, %v2585
      %v2627 = vmul.f32 %v2001, %v2595
      %s2628 = scalar_lea.vmem %s3, 512
      %v2629 = vld [vmem:[%s2628] sm:$0xff]
      %v2630 = vld [vmem:[%s2628 + $0x8] sm:$0xff]
      %v2631 = vld [vmem:[%s2628 + $0x10] sm:$0xff]
      %v2632 = vld [vmem:[%s2628 + $0x18] sm:$0xff]
      %v2633 = vld [vmem:[%s2628 + $0x20] sm:$0xff]
      %v2634 = vld [vmem:[%s2628 + $0x28] sm:$0xff]
      %v2635 = vld [vmem:[%s2628 + $0x30] sm:$0xff]
      %v2636 = vld [vmem:[%s2628 + $0x38] sm:$0xff]
      %v2637 = vld [vmem:[%s2628 + $0x40] sm:$0xff]
      %v2638 = vld [vmem:[%s2628 + $0x48] sm:$0xff]
      %v2639 = vld [vmem:[%s2628 + $0x50] sm:$0xff]
      %v2640 = vld [vmem:[%s2628 + $0x58] sm:$0xff]
      %v2641 = vld [vmem:[%s2628 + $0x60] sm:$0xff]
      %v2642 = vld [vmem:[%s2628 + $0x68] sm:$0xff]
      %v2643 = vld [vmem:[%s2628 + $0x70] sm:$0xff]
      %v2644 = vld [vmem:[%s2628 + $0x78] sm:$0xff]
      %s2645 = scalar_lea.vmem %s3, 640
      %v2646 = vld [vmem:[%s2645] sm:$0xff]
      %v2647 = vld [vmem:[%s2645 + $0x8] sm:$0xff]
      %v2648 = vld [vmem:[%s2645 + $0x10] sm:$0xff]
      %v2649 = vld [vmem:[%s2645 + $0x18] sm:$0xff]
      %v2650 = vld [vmem:[%s2645 + $0x20] sm:$0xff]
      %v2651 = vld [vmem:[%s2645 + $0x28] sm:$0xff]
      %v2652 = vld [vmem:[%s2645 + $0x30] sm:$0xff]
      %v2653 = vld [vmem:[%s2645 + $0x38] sm:$0xff]
      %v2654 = vld [vmem:[%s2645 + $0x40] sm:$0xff]
      %v2655 = vld [vmem:[%s2645 + $0x48] sm:$0xff]
      %v2656 = vld [vmem:[%s2645 + $0x50] sm:$0xff]
      %v2657 = vld [vmem:[%s2645 + $0x58] sm:$0xff]
      %v2658 = vld [vmem:[%s2645 + $0x60] sm:$0xff]
      %v2659 = vld [vmem:[%s2645 + $0x68] sm:$0xff]
      %v2660 = vld [vmem:[%s2645 + $0x70] sm:$0xff]
      %v2661 = vld [vmem:[%s2645 + $0x78] sm:$0xff]
      %2678 = vrot.lane.b32.xlu0 %v2596, 64
      %v2679 = vpop.permute.xlu0 %2678
      %2680 = vrot.lane.b32.xlu0 %v2598, 64
      %v2681 = vpop.permute.xlu0 %2680
      %2682 = vrot.lane.b32.xlu0 %v2600, 64
      %v2683 = vpop.permute.xlu0 %2682
      %2684 = vrot.lane.b32.xlu0 %v2602, 64
      %v2685 = vpop.permute.xlu0 %2684
      %2686 = vrot.lane.b32.xlu0 %v2604, 64
      %v2687 = vpop.permute.xlu0 %2686
      %2688 = vrot.lane.b32.xlu0 %v2606, 64
      %v2689 = vpop.permute.xlu0 %2688
      %2690 = vrot.lane.b32.xlu0 %v2608, 64
      %v2691 = vpop.permute.xlu0 %2690
      %2692 = vrot.lane.b32.xlu0 %v2610, 64
      %v2693 = vpop.permute.xlu0 %2692
      %2694 = vrot.lane.b32.xlu0 %v2612, 64
      %v2695 = vpop.permute.xlu0 %2694
      %2696 = vrot.lane.b32.xlu0 %v2614, 64
      %v2697 = vpop.permute.xlu0 %2696
      %2698 = vrot.lane.b32.xlu0 %v2616, 64
      %v2699 = vpop.permute.xlu0 %2698
      %2700 = vrot.lane.b32.xlu0 %v2618, 64
      %v2701 = vpop.permute.xlu0 %2700
      %2702 = vrot.lane.b32.xlu0 %v2620, 64
      %v2703 = vpop.permute.xlu0 %2702
      %2704 = vrot.lane.b32.xlu0 %v2622, 64
      %v2705 = vpop.permute.xlu0 %2704
      %2706 = vrot.lane.b32.xlu0 %v2624, 64
      %v2707 = vpop.permute.xlu0 %2706
      %2708 = vrot.lane.b32.xlu0 %v2626, 64
      %v2709 = vpop.permute.xlu0 %2708
      %2726 = vmatpush.msra.mxu0 %v2709
      %2727 = vmatpush.msra.mxu0 %v2707
      %2728 = vmatpush.msra.mxu0 %v2705
      %2729 = vmatpush.msra.mxu0 %v2703
      %2730 = vmatpush.msra.mxu0 %v2701
      %2731 = vmatpush.msra.mxu0 %v2699
      %2732 = vmatpush.msra.mxu0 %v2697
      %2733 = vmatpush.msra.mxu0 %v2695
      %2734 = vmatpush.msra.mxu0 %v2693
      %2735 = vmatpush.msra.mxu0 %v2691
      %2736 = vmatpush.msra.mxu0 %v2689
      %2737 = vmatpush.msra.mxu0 %v2687
      %2738 = vmatpush.msra.mxu0 %v2685
      %2739 = vmatpush.msra.mxu0 %v2683
      %2740 = vmatpush.msra.mxu0 %v2681
      %2741 = vmatpush.msra.mxu0 %v2679
      %2742 = vmatmul.f32.gmra.mxu0 %v2646
      %v2743 = vpop.f32.mrf.mxu0
      %v2744 = vadd.f32 0.0, %v2743
      %2745 = vmatmul.f32.gmra.mxu0 %v2647
      %v2746 = vpop.f32.mrf.mxu0
      %v2747 = vadd.f32 0.0, %v2746
      %2748 = vmatmul.f32.gmra.mxu0 %v2648
      %v2749 = vpop.f32.mrf.mxu0
      %v2750 = vadd.f32 0.0, %v2749
      %2751 = vmatmul.f32.gmra.mxu0 %v2649
      %v2752 = vpop.f32.mrf.mxu0
      %v2753 = vadd.f32 0.0, %v2752
      %2754 = vmatmul.f32.gmra.mxu0 %v2650
      %v2755 = vpop.f32.mrf.mxu0
      %v2756 = vadd.f32 0.0, %v2755
      %2757 = vmatmul.f32.gmra.mxu0 %v2651
      %v2758 = vpop.f32.mrf.mxu0
      %v2759 = vadd.f32 0.0, %v2758
      %2760 = vmatmul.f32.gmra.mxu0 %v2652
      %v2761 = vpop.f32.mrf.mxu0
      %v2762 = vadd.f32 0.0, %v2761
      %2763 = vmatmul.f32.gmra.mxu0 %v2653
      %v2764 = vpop.f32.mrf.mxu0
      %v2765 = vadd.f32 0.0, %v2764
      %2766 = vmatmul.f32.gmra.mxu0 %v2654
      %v2767 = vpop.f32.mrf.mxu0
      %v2768 = vadd.f32 0.0, %v2767
      %2769 = vmatmul.f32.gmra.mxu0 %v2655
      %v2770 = vpop.f32.mrf.mxu0
      %v2771 = vadd.f32 0.0, %v2770
      %2772 = vmatmul.f32.gmra.mxu0 %v2656
      %v2773 = vpop.f32.mrf.mxu0
      %v2774 = vadd.f32 0.0, %v2773
      %2775 = vmatmul.f32.gmra.mxu0 %v2657
      %v2776 = vpop.f32.mrf.mxu0
      %v2777 = vadd.f32 0.0, %v2776
      %2778 = vmatmul.f32.gmra.mxu0 %v2658
      %v2779 = vpop.f32.mrf.mxu0
      %v2780 = vadd.f32 0.0, %v2779
      %2781 = vmatmul.f32.gmra.mxu0 %v2659
      %v2782 = vpop.f32.mrf.mxu0
      %v2783 = vadd.f32 0.0, %v2782
      %2784 = vmatmul.f32.gmra.mxu0 %v2660
      %v2785 = vpop.f32.mrf.mxu0
      %v2786 = vadd.f32 0.0, %v2785
      %2787 = vmatmul.f32.gmra.mxu0 %v2661
      %v2788 = vpop.f32.mrf.mxu0
      %v2789 = vadd.f32 0.0, %v2788
      %2790 = vdwg.mxu0
      %2791 = vmatpush.msra.mxu0 %v2626
      %2792 = vmatpush.msra.mxu0 %v2624
      %2793 = vmatpush.msra.mxu0 %v2622
      %2794 = vmatpush.msra.mxu0 %v2620
      %2795 = vmatpush.msra.mxu0 %v2618
      %2796 = vmatpush.msra.mxu0 %v2616
      %2797 = vmatpush.msra.mxu0 %v2614
      %2798 = vmatpush.msra.mxu0 %v2612
      %2799 = vmatpush.msra.mxu0 %v2610
      %2800 = vmatpush.msra.mxu0 %v2608
      %2801 = vmatpush.msra.mxu0 %v2606
      %2802 = vmatpush.msra.mxu0 %v2604
      %2803 = vmatpush.msra.mxu0 %v2602
      %2804 = vmatpush.msra.mxu0 %v2600
      %2805 = vmatpush.msra.mxu0 %v2598
      %2806 = vmatpush.msra.mxu0 %v2596
      %2807 = vmatmul.f32.gmra.mxu0 %v2629
      %v2808 = vpop.f32.mrf.mxu0
      %v2809 = vadd.f32 %v2744, %v2808
      %2810 = vmatmul.f32.gmra.mxu0 %v2630
      %v2811 = vpop.f32.mrf.mxu0
      %v2812 = vadd.f32 %v2747, %v2811
      %2813 = vmatmul.f32.gmra.mxu0 %v2631
      %v2814 = vpop.f32.mrf.mxu0
      %v2815 = vadd.f32 %v2750, %v2814
      %2816 = vmatmul.f32.gmra.mxu0 %v2632
      %v2817 = vpop.f32.mrf.mxu0
      %v2818 = vadd.f32 %v2753, %v2817
      %2819 = vmatmul.f32.gmra.mxu0 %v2633
      %v2820 = vpop.f32.mrf.mxu0
      %v2821 = vadd.f32 %v2756, %v2820
      %2822 = vmatmul.f32.gmra.mxu0 %v2634
      %v2823 = vpop.f32.mrf.mxu0
      %v2824 = vadd.f32 %v2759, %v2823
      %2825 = vmatmul.f32.gmra.mxu0 %v2635
      %v2826 = vpop.f32.mrf.mxu0
      %v2827 = vadd.f32 %v2762, %v2826
      %2828 = vmatmul.f32.gmra.mxu0 %v2636
      %v2829 = vpop.f32.mrf.mxu0
      %v2830 = vadd.f32 %v2765, %v2829
      %2831 = vmatmul.f32.gmra.mxu0 %v2637
      %v2832 = vpop.f32.mrf.mxu0
      %v2833 = vadd.f32 %v2768, %v2832
      %2834 = vmatmul.f32.gmra.mxu0 %v2638
      %v2835 = vpop.f32.mrf.mxu0
      %v2836 = vadd.f32 %v2771, %v2835
      %2837 = vmatmul.f32.gmra.mxu0 %v2639
      %v2838 = vpop.f32.mrf.mxu0
      %v2839 = vadd.f32 %v2774, %v2838
      %2840 = vmatmul.f32.gmra.mxu0 %v2640
      %v2841 = vpop.f32.mrf.mxu0
      %v2842 = vadd.f32 %v2777, %v2841
      %2843 = vmatmul.f32.gmra.mxu0 %v2641
      %v2844 = vpop.f32.mrf.mxu0
      %v2845 = vadd.f32 %v2780, %v2844
      %2846 = vmatmul.f32.gmra.mxu0 %v2642
      %v2847 = vpop.f32.mrf.mxu0
      %v2848 = vadd.f32 %v2783, %v2847
      %2849 = vmatmul.f32.gmra.mxu0 %v2643
      %v2850 = vpop.f32.mrf.mxu0
      %v2851 = vadd.f32 %v2786, %v2850
      %2852 = vmatmul.f32.gmra.mxu0 %v2644
      %v2853 = vpop.f32.mrf.mxu0
      %v2854 = vadd.f32 %v2789, %v2853
      %2855 = vdwg.mxu0
      %s2856 = scalar_lea.vmem %s3, 768
      %v2857 = vld [vmem:[%s2856] sm:$0xff]
      %v2858 = vld [vmem:[%s2856 + $0x8] sm:$0xff]
      %v2859 = vld [vmem:[%s2856 + $0x10] sm:$0xff]
      %v2860 = vld [vmem:[%s2856 + $0x18] sm:$0xff]
      %v2861 = vld [vmem:[%s2856 + $0x20] sm:$0xff]
      %v2862 = vld [vmem:[%s2856 + $0x28] sm:$0xff]
      %v2863 = vld [vmem:[%s2856 + $0x30] sm:$0xff]
      %v2864 = vld [vmem:[%s2856 + $0x38] sm:$0xff]
      %v2865 = vld [vmem:[%s2856 + $0x40] sm:$0xff]
      %v2866 = vld [vmem:[%s2856 + $0x48] sm:$0xff]
      %v2867 = vld [vmem:[%s2856 + $0x50] sm:$0xff]
      %v2868 = vld [vmem:[%s2856 + $0x58] sm:$0xff]
      %v2869 = vld [vmem:[%s2856 + $0x60] sm:$0xff]
      %v2870 = vld [vmem:[%s2856 + $0x68] sm:$0xff]
      %v2871 = vld [vmem:[%s2856 + $0x70] sm:$0xff]
      %v2872 = vld [vmem:[%s2856 + $0x78] sm:$0xff]
      %2873 = vmatpush.msra.mxu0 %v2627
      %2874 = vmatpush.msra.mxu0 %v2625
      %2875 = vmatpush.msra.mxu0 %v2623
      %2876 = vmatpush.msra.mxu0 %v2621
      %2877 = vmatpush.msra.mxu0 %v2619
      %2878 = vmatpush.msra.mxu0 %v2617
      %2879 = vmatpush.msra.mxu0 %v2615
      %2880 = vmatpush.msra.mxu0 %v2613
      %2881 = vmatpush.msra.mxu0 %v2611
      %2882 = vmatpush.msra.mxu0 %v2609
      %2883 = vmatpush.msra.mxu0 %v2607
      %2884 = vmatpush.msra.mxu0 %v2605
      %2885 = vmatpush.msra.mxu0 %v2603
      %2886 = vmatpush.msra.mxu0 %v2601
      %2887 = vmatpush.msra.mxu0 %v2599
      %2888 = vmatpush.msra.mxu0 %v2597
      %2889 = vmatmul.f32.gmra.mxu0 %v2857
      %v2890 = vpop.f32.mrf.mxu0
      %v2891 = vadd.f32 0.0, %v2890
      %2892 = vmatmul.f32.gmra.mxu0 %v2858
      %v2893 = vpop.f32.mrf.mxu0
      %v2894 = vadd.f32 0.0, %v2893
      %2895 = vmatmul.f32.gmra.mxu0 %v2859
      %v2896 = vpop.f32.mrf.mxu0
      %v2897 = vadd.f32 0.0, %v2896
      %2898 = vmatmul.f32.gmra.mxu0 %v2860
      %v2899 = vpop.f32.mrf.mxu0
      %v2900 = vadd.f32 0.0, %v2899
      %2901 = vmatmul.f32.gmra.mxu0 %v2861
      %v2902 = vpop.f32.mrf.mxu0
      %v2903 = vadd.f32 0.0, %v2902
      %2904 = vmatmul.f32.gmra.mxu0 %v2862
      %v2905 = vpop.f32.mrf.mxu0
      %v2906 = vadd.f32 0.0, %v2905
      %2907 = vmatmul.f32.gmra.mxu0 %v2863
      %v2908 = vpop.f32.mrf.mxu0
      %v2909 = vadd.f32 0.0, %v2908
      %2910 = vmatmul.f32.gmra.mxu0 %v2864
      %v2911 = vpop.f32.mrf.mxu0
      %v2912 = vadd.f32 0.0, %v2911
      %2913 = vmatmul.f32.gmra.mxu0 %v2865
      %v2914 = vpop.f32.mrf.mxu0
      %v2915 = vadd.f32 0.0, %v2914
      %2916 = vmatmul.f32.gmra.mxu0 %v2866
      %v2917 = vpop.f32.mrf.mxu0
      %v2918 = vadd.f32 0.0, %v2917
      %2919 = vmatmul.f32.gmra.mxu0 %v2867
      %v2920 = vpop.f32.mrf.mxu0
      %v2921 = vadd.f32 0.0, %v2920
      %2922 = vmatmul.f32.gmra.mxu0 %v2868
      %v2923 = vpop.f32.mrf.mxu0
      %v2924 = vadd.f32 0.0, %v2923
      %2925 = vmatmul.f32.gmra.mxu0 %v2869
      %v2926 = vpop.f32.mrf.mxu0
      %v2927 = vadd.f32 0.0, %v2926
      %2928 = vmatmul.f32.gmra.mxu0 %v2870
      %v2929 = vpop.f32.mrf.mxu0
      %v2930 = vadd.f32 0.0, %v2929
      %2931 = vmatmul.f32.gmra.mxu0 %v2871
      %v2932 = vpop.f32.mrf.mxu0
      %v2933 = vadd.f32 0.0, %v2932
      %2934 = vmatmul.f32.gmra.mxu0 %v2872
      %v2935 = vpop.f32.mrf.mxu0
      %v2936 = vadd.f32 0.0, %v2935
      %2937 = vdwg.mxu0
      %v2938 = vadd.f32 %v2809, %v2891
      %v2939 = vadd.f32 %v2812, %v2894
      %v2940 = vadd.f32 %v2815, %v2897
      %v2941 = vadd.f32 %v2818, %v2900
      %v2942 = vadd.f32 %v2821, %v2903
      %v2943 = vadd.f32 %v2824, %v2906
      %v2944 = vadd.f32 %v2827, %v2909
      %v2945 = vadd.f32 %v2830, %v2912
      %v2946 = vadd.f32 %v2833, %v2915
      %v2947 = vadd.f32 %v2836, %v2918
      %v2948 = vadd.f32 %v2839, %v2921
      %v2949 = vadd.f32 %v2842, %v2924
      %v2950 = vadd.f32 %v2845, %v2927
      %v2951 = vadd.f32 %v2848, %v2930
      %v2952 = vadd.f32 %v2851, %v2933
      %v2953 = vadd.f32 %v2854, %v2936
      %s2954 = scalar_lea.vmem %s3, 896
      %v2955 = vld [vmem:[%s2954] sm:$0xff]
      %v2956 = vld [vmem:[%s2954 + $0x8] sm:$0xff]
      %v2957 = vld [vmem:[%s2954 + $0x10] sm:$0xff]
      %v2958 = vld [vmem:[%s2954 + $0x18] sm:$0xff]
      %v2959 = vld [vmem:[%s2954 + $0x20] sm:$0xff]
      %v2960 = vld [vmem:[%s2954 + $0x28] sm:$0xff]
      %v2961 = vld [vmem:[%s2954 + $0x30] sm:$0xff]
      %v2962 = vld [vmem:[%s2954 + $0x38] sm:$0xff]
      %v2963 = vld [vmem:[%s2954 + $0x40] sm:$0xff]
      %v2964 = vld [vmem:[%s2954 + $0x48] sm:$0xff]
      %v2965 = vld [vmem:[%s2954 + $0x50] sm:$0xff]
      %v2966 = vld [vmem:[%s2954 + $0x58] sm:$0xff]
      %v2967 = vld [vmem:[%s2954 + $0x60] sm:$0xff]
      %v2968 = vld [vmem:[%s2954 + $0x68] sm:$0xff]
      %v2969 = vld [vmem:[%s2954 + $0x70] sm:$0xff]
      %v2970 = vld [vmem:[%s2954 + $0x78] sm:$0xff]
      %2987 = vrot.lane.b32.xlu0 %v2597, 64
      %v2988 = vpop.permute.xlu0 %2987
      %2989 = vrot.lane.b32.xlu0 %v2599, 64
      %v2990 = vpop.permute.xlu0 %2989
      %2991 = vrot.lane.b32.xlu0 %v2601, 64
      %v2992 = vpop.permute.xlu0 %2991
      %2993 = vrot.lane.b32.xlu0 %v2603, 64
      %v2994 = vpop.permute.xlu0 %2993
      %2995 = vrot.lane.b32.xlu0 %v2605, 64
      %v2996 = vpop.permute.xlu0 %2995
      %2997 = vrot.lane.b32.xlu0 %v2607, 64
      %v2998 = vpop.permute.xlu0 %2997
      %2999 = vrot.lane.b32.xlu0 %v2609, 64
      %v3000 = vpop.permute.xlu0 %2999
      %3001 = vrot.lane.b32.xlu0 %v2611, 64
      %v3002 = vpop.permute.xlu0 %3001
      %3003 = vrot.lane.b32.xlu0 %v2613, 64
      %v3004 = vpop.permute.xlu0 %3003
      %3005 = vrot.lane.b32.xlu0 %v2615, 64
      %v3006 = vpop.permute.xlu0 %3005
      %3007 = vrot.lane.b32.xlu0 %v2617, 64
      %v3008 = vpop.permute.xlu0 %3007
      %3009 = vrot.lane.b32.xlu0 %v2619, 64
      %v3010 = vpop.permute.xlu0 %3009
      %3011 = vrot.lane.b32.xlu0 %v2621, 64
      %v3012 = vpop.permute.xlu0 %3011
      %3013 = vrot.lane.b32.xlu0 %v2623, 64
      %v3014 = vpop.permute.xlu0 %3013
      %3015 = vrot.lane.b32.xlu0 %v2625, 64
      %v3016 = vpop.permute.xlu0 %3015
      %3017 = vrot.lane.b32.xlu0 %v2627, 64
      %v3018 = vpop.permute.xlu0 %3017
      %3035 = vmatpush.msra.mxu0 %v3018
      %3036 = vmatpush.msra.mxu0 %v3016
      %3037 = vmatpush.msra.mxu0 %v3014
      %3038 = vmatpush.msra.mxu0 %v3012
      %3039 = vmatpush.msra.mxu0 %v3010
      %3040 = vmatpush.msra.mxu0 %v3008
      %3041 = vmatpush.msra.mxu0 %v3006
      %3042 = vmatpush.msra.mxu0 %v3004
      %3043 = vmatpush.msra.mxu0 %v3002
      %3044 = vmatpush.msra.mxu0 %v3000
      %3045 = vmatpush.msra.mxu0 %v2998
      %3046 = vmatpush.msra.mxu0 %v2996
      %3047 = vmatpush.msra.mxu0 %v2994
      %3048 = vmatpush.msra.mxu0 %v2992
      %3049 = vmatpush.msra.mxu0 %v2990
      %3050 = vmatpush.msra.mxu0 %v2988
      %3051 = vmatmul.f32.gmra.mxu0 %v2955
      %v3052 = vpop.f32.mrf.mxu0
      %v3053 = vadd.f32 0.0, %v3052
      %3054 = vmatmul.f32.gmra.mxu0 %v2956
      %v3055 = vpop.f32.mrf.mxu0
      %v3056 = vadd.f32 0.0, %v3055
      %3057 = vmatmul.f32.gmra.mxu0 %v2957
      %v3058 = vpop.f32.mrf.mxu0
      %v3059 = vadd.f32 0.0, %v3058
      %3060 = vmatmul.f32.gmra.mxu0 %v2958
      %v3061 = vpop.f32.mrf.mxu0
      %v3062 = vadd.f32 0.0, %v3061
      %3063 = vmatmul.f32.gmra.mxu0 %v2959
      %v3064 = vpop.f32.mrf.mxu0
      %v3065 = vadd.f32 0.0, %v3064
      %3066 = vmatmul.f32.gmra.mxu0 %v2960
      %v3067 = vpop.f32.mrf.mxu0
      %v3068 = vadd.f32 0.0, %v3067
      %3069 = vmatmul.f32.gmra.mxu0 %v2961
      %v3070 = vpop.f32.mrf.mxu0
      %v3071 = vadd.f32 0.0, %v3070
      %3072 = vmatmul.f32.gmra.mxu0 %v2962
      %v3073 = vpop.f32.mrf.mxu0
      %v3074 = vadd.f32 0.0, %v3073
      %3075 = vmatmul.f32.gmra.mxu0 %v2963
      %v3076 = vpop.f32.mrf.mxu0
      %v3077 = vadd.f32 0.0, %v3076
      %3078 = vmatmul.f32.gmra.mxu0 %v2964
      %v3079 = vpop.f32.mrf.mxu0
      %v3080 = vadd.f32 0.0, %v3079
      %3081 = vmatmul.f32.gmra.mxu0 %v2965
      %v3082 = vpop.f32.mrf.mxu0
      %v3083 = vadd.f32 0.0, %v3082
      %3084 = vmatmul.f32.gmra.mxu0 %v2966
      %v3085 = vpop.f32.mrf.mxu0
      %v3086 = vadd.f32 0.0, %v3085
      %3087 = vmatmul.f32.gmra.mxu0 %v2967
      %v3088 = vpop.f32.mrf.mxu0
      %v3089 = vadd.f32 0.0, %v3088
      %3090 = vmatmul.f32.gmra.mxu0 %v2968
      %v3091 = vpop.f32.mrf.mxu0
      %v3092 = vadd.f32 0.0, %v3091
      %3093 = vmatmul.f32.gmra.mxu0 %v2969
      %v3094 = vpop.f32.mrf.mxu0
      %v3095 = vadd.f32 0.0, %v3094
      %3096 = vmatmul.f32.gmra.mxu0 %v2970
      %v3097 = vpop.f32.mrf.mxu0
      %v3098 = vadd.f32 0.0, %v3097
      %3099 = vdwg.mxu0
      %v3100 = vadd.f32 %v2938, %v3053
      %v3101 = vadd.f32 %v2939, %v3056
      %v3102 = vadd.f32 %v2940, %v3059
      %v3103 = vadd.f32 %v2941, %v3062
      %v3104 = vadd.f32 %v2942, %v3065
      %v3105 = vadd.f32 %v2943, %v3068
      %v3106 = vadd.f32 %v2944, %v3071
      %v3107 = vadd.f32 %v2945, %v3074
      %v3108 = vadd.f32 %v2946, %v3077
      %v3109 = vadd.f32 %v2947, %v3080
      %v3110 = vadd.f32 %v2948, %v3083
      %v3111 = vadd.f32 %v2949, %v3086
      %v3112 = vadd.f32 %v2950, %v3089
      %v3113 = vadd.f32 %v2951, %v3092
      %v3114 = vadd.f32 %v2952, %v3095
      %v3115 = vadd.f32 %v2953, %v3098
      %s3116 = scalar_lea.vmem %s4, 128
      %v3117 = vld [vmem:[%s3116] sm:$0xff]
      %v3118 = vld [vmem:[%s3116 + $0x8] sm:$0xff]
      %v3119 = vld [vmem:[%s3116 + $0x10] sm:$0xff]
      %v3120 = vld [vmem:[%s3116 + $0x18] sm:$0xff]
      %v3121 = vld [vmem:[%s3116 + $0x20] sm:$0xff]
      %v3122 = vld [vmem:[%s3116 + $0x28] sm:$0xff]
      %v3123 = vld [vmem:[%s3116 + $0x30] sm:$0xff]
      %v3124 = vld [vmem:[%s3116 + $0x38] sm:$0xff]
      %v3125 = vld [vmem:[%s3116 + $0x40] sm:$0xff]
      %v3126 = vld [vmem:[%s3116 + $0x48] sm:$0xff]
      %v3127 = vld [vmem:[%s3116 + $0x50] sm:$0xff]
      %v3128 = vld [vmem:[%s3116 + $0x58] sm:$0xff]
      %v3129 = vld [vmem:[%s3116 + $0x60] sm:$0xff]
      %v3130 = vld [vmem:[%s3116 + $0x68] sm:$0xff]
      %v3131 = vld [vmem:[%s3116 + $0x70] sm:$0xff]
      %v3132 = vld [vmem:[%s3116 + $0x78] sm:$0xff]
      %3134 = vset.pattern.permute.xlu0 0
      %3135 = vperm.xlu0 %3134, %v3117
      %v3136 = vpop.permute.xlu0 %3135
      %3139 = vset.pattern.permute.xlu0 0
      %3140 = vperm.xlu0 %3139, %v3118
      %v3141 = vpop.permute.xlu0 %3140
      %3144 = vset.pattern.permute.xlu0 0
      %3145 = vperm.xlu0 %3144, %v3119
      %v3146 = vpop.permute.xlu0 %3145
      %3149 = vset.pattern.permute.xlu0 0
      %3150 = vperm.xlu0 %3149, %v3120
      %v3151 = vpop.permute.xlu0 %3150
      %3154 = vset.pattern.permute.xlu0 0
      %3155 = vperm.xlu0 %3154, %v3121
      %v3156 = vpop.permute.xlu0 %3155
      %3159 = vset.pattern.permute.xlu0 0
      %3160 = vperm.xlu0 %3159, %v3122
      %v3161 = vpop.permute.xlu0 %3160
      %3164 = vset.pattern.permute.xlu0 0
      %3165 = vperm.xlu0 %3164, %v3123
      %v3166 = vpop.permute.xlu0 %3165
      %3169 = vset.pattern.permute.xlu0 0
      %3170 = vperm.xlu0 %3169, %v3124
      %v3171 = vpop.permute.xlu0 %3170
      %3174 = vset.pattern.permute.xlu0 0
      %3175 = vperm.xlu0 %3174, %v3125
      %v3176 = vpop.permute.xlu0 %3175
      %3179 = vset.pattern.permute.xlu0 0
      %3180 = vperm.xlu0 %3179, %v3126
      %v3181 = vpop.permute.xlu0 %3180
      %3184 = vset.pattern.permute.xlu0 0
      %3185 = vperm.xlu0 %3184, %v3127
      %v3186 = vpop.permute.xlu0 %3185
      %3189 = vset.pattern.permute.xlu0 0
      %3190 = vperm.xlu0 %3189, %v3128
      %v3191 = vpop.permute.xlu0 %3190
      %3194 = vset.pattern.permute.xlu0 0
      %3195 = vperm.xlu0 %3194, %v3129
      %v3196 = vpop.permute.xlu0 %3195
      %3199 = vset.pattern.permute.xlu0 0
      %3200 = vperm.xlu0 %3199, %v3130
      %v3201 = vpop.permute.xlu0 %3200
      %3204 = vset.pattern.permute.xlu0 0
      %3205 = vperm.xlu0 %3204, %v3131
      %v3206 = vpop.permute.xlu0 %3205
      %3209 = vset.pattern.permute.xlu0 0
      %3210 = vperm.xlu0 %3209, %v3132
      %v3211 = vpop.permute.xlu0 %3210
      %v3213 = vadd.f32 %v3100, %v3136
      %v3214 = vadd.f32 %v3101, %v3141
      %v3215 = vadd.f32 %v3102, %v3146
      %v3216 = vadd.f32 %v3103, %v3151
      %v3217 = vadd.f32 %v3104, %v3156
      %v3218 = vadd.f32 %v3105, %v3161
      %v3219 = vadd.f32 %v3106, %v3166
      %v3220 = vadd.f32 %v3107, %v3171
      %v3221 = vadd.f32 %v3108, %v3176
      %v3222 = vadd.f32 %v3109, %v3181
      %v3223 = vadd.f32 %v3110, %v3186
      %v3224 = vadd.f32 %v3111, %v3191
      %v3225 = vadd.f32 %v3112, %v3196
      %v3226 = vadd.f32 %v3113, %v3201
      %v3227 = vadd.f32 %v3114, %v3206
      %v3228 = vadd.f32 %v3115, %v3211
      %vm3229 = vcmp.gt.f32.partialorder %v3213, 0.0
      %vm3230 = vcmp.gt.f32.partialorder %v3214, 0.0
      %vm3231 = vcmp.gt.f32.partialorder %v3215, 0.0
      %vm3232 = vcmp.gt.f32.partialorder %v3216, 0.0
      %vm3233 = vcmp.gt.f32.partialorder %v3217, 0.0
      %vm3234 = vcmp.gt.f32.partialorder %v3218, 0.0
      %vm3235 = vcmp.gt.f32.partialorder %v3219, 0.0
      %vm3236 = vcmp.gt.f32.partialorder %v3220, 0.0
      %vm3237 = vcmp.gt.f32.partialorder %v3221, 0.0
      %vm3238 = vcmp.gt.f32.partialorder %v3222, 0.0
      %vm3239 = vcmp.gt.f32.partialorder %v3223, 0.0
      %vm3240 = vcmp.gt.f32.partialorder %v3224, 0.0
      %vm3241 = vcmp.gt.f32.partialorder %v3225, 0.0
      %vm3242 = vcmp.gt.f32.partialorder %v3226, 0.0
      %vm3243 = vcmp.gt.f32.partialorder %v3227, 0.0
      %vm3244 = vcmp.gt.f32.partialorder %v3228, 0.0
      %v3245 = vmul.f32 %v3213, 0.01
      %v3246 = vmul.f32 %v3214, 0.01
      %v3247 = vmul.f32 %v3215, 0.01
      %v3248 = vmul.f32 %v3216, 0.01
      %v3249 = vmul.f32 %v3217, 0.01
      %v3250 = vmul.f32 %v3218, 0.01
      %v3251 = vmul.f32 %v3219, 0.01
      %v3252 = vmul.f32 %v3220, 0.01
      %v3253 = vmul.f32 %v3221, 0.01
      %v3254 = vmul.f32 %v3222, 0.01
      %v3255 = vmul.f32 %v3223, 0.01
      %v3256 = vmul.f32 %v3224, 0.01
      %v3257 = vmul.f32 %v3225, 0.01
      %v3258 = vmul.f32 %v3226, 0.01
      %v3259 = vmul.f32 %v3227, 0.01
      %v3260 = vmul.f32 %v3228, 0.01
      %v3261 = vsel %vm3229, %v3213, %v3245
      %v3262 = vsel %vm3230, %v3214, %v3246
      %v3263 = vsel %vm3231, %v3215, %v3247
      %v3264 = vsel %vm3232, %v3216, %v3248
      %v3265 = vsel %vm3233, %v3217, %v3249
      %v3266 = vsel %vm3234, %v3218, %v3250
      %v3267 = vsel %vm3235, %v3219, %v3251
      %v3268 = vsel %vm3236, %v3220, %v3252
      %v3269 = vsel %vm3237, %v3221, %v3253
      %v3270 = vsel %vm3238, %v3222, %v3254
      %v3271 = vsel %vm3239, %v3223, %v3255
      %v3272 = vsel %vm3240, %v3224, %v3256
      %v3273 = vsel %vm3241, %v3225, %v3257
      %v3274 = vsel %vm3242, %v3226, %v3258
      %v3275 = vsel %vm3243, %v3227, %v3259
      %v3276 = vsel %vm3244, %v3228, %v3260
      %s3277 = scalar_lea.vmem %s5, 128
      %v3278 = vld [vmem:[%s3277] sm:$0xff]
      %v3279 = vld [vmem:[%s3277 + $0x8] sm:$0xff]
      %v3280 = vld [vmem:[%s3277 + $0x10] sm:$0xff]
      %v3281 = vld [vmem:[%s3277 + $0x18] sm:$0xff]
      %v3282 = vld [vmem:[%s3277 + $0x20] sm:$0xff]
      %v3283 = vld [vmem:[%s3277 + $0x28] sm:$0xff]
      %v3284 = vld [vmem:[%s3277 + $0x30] sm:$0xff]
      %v3285 = vld [vmem:[%s3277 + $0x38] sm:$0xff]
      %v3286 = vld [vmem:[%s3277 + $0x40] sm:$0xff]
      %v3287 = vld [vmem:[%s3277 + $0x48] sm:$0xff]
      %v3288 = vld [vmem:[%s3277 + $0x50] sm:$0xff]
      %v3289 = vld [vmem:[%s3277 + $0x58] sm:$0xff]
      %v3290 = vld [vmem:[%s3277 + $0x60] sm:$0xff]
      %v3291 = vld [vmem:[%s3277 + $0x68] sm:$0xff]
      %v3292 = vld [vmem:[%s3277 + $0x70] sm:$0xff]
      %v3293 = vld [vmem:[%s3277 + $0x78] sm:$0xff]
      %v3294 = vmul.f32 %v3261, %v3261
      %v3295 = vmul.f32 %v3262, %v3262
      %v3296 = vmul.f32 %v3263, %v3263
      %v3297 = vmul.f32 %v3264, %v3264
      %v3298 = vmul.f32 %v3265, %v3265
      %v3299 = vmul.f32 %v3266, %v3266
      %v3300 = vmul.f32 %v3267, %v3267
      %v3301 = vmul.f32 %v3268, %v3268
      %v3302 = vmul.f32 %v3269, %v3269
      %v3303 = vmul.f32 %v3270, %v3270
      %v3304 = vmul.f32 %v3271, %v3271
      %v3305 = vmul.f32 %v3272, %v3272
      %v3306 = vmul.f32 %v3273, %v3273
      %v3307 = vmul.f32 %v3274, %v3274
      %v3308 = vmul.f32 %v3275, %v3275
      %v3309 = vmul.f32 %v3276, %v3276
      %s3310 = scalar_lea.vmem %s6, 128
      %v3311 = vld [vmem:[%s3310] sm:$0xff]
      %v3312 = vld [vmem:[%s3310 + $0x8] sm:$0xff]
      %v3313 = vld [vmem:[%s3310 + $0x10] sm:$0xff]
      %v3314 = vld [vmem:[%s3310 + $0x18] sm:$0xff]
      %v3315 = vld [vmem:[%s3310 + $0x20] sm:$0xff]
      %v3316 = vld [vmem:[%s3310 + $0x28] sm:$0xff]
      %v3317 = vld [vmem:[%s3310 + $0x30] sm:$0xff]
      %v3318 = vld [vmem:[%s3310 + $0x38] sm:$0xff]
      %v3319 = vld [vmem:[%s3310 + $0x40] sm:$0xff]
      %v3320 = vld [vmem:[%s3310 + $0x48] sm:$0xff]
      %v3321 = vld [vmem:[%s3310 + $0x50] sm:$0xff]
      %v3322 = vld [vmem:[%s3310 + $0x58] sm:$0xff]
      %v3323 = vld [vmem:[%s3310 + $0x60] sm:$0xff]
      %v3324 = vld [vmem:[%s3310 + $0x68] sm:$0xff]
      %v3325 = vld [vmem:[%s3310 + $0x70] sm:$0xff]
      %v3326 = vld [vmem:[%s3310 + $0x78] sm:$0xff]
      %3328 = vset.pattern.permute.xlu0 0
      %3329 = vperm.xlu0 %3328, %v3311
      %v3330 = vpop.permute.xlu0 %3329
      %3333 = vset.pattern.permute.xlu0 0
      %3334 = vperm.xlu0 %3333, %v3312
      %v3335 = vpop.permute.xlu0 %3334
      %3338 = vset.pattern.permute.xlu0 0
      %3339 = vperm.xlu0 %3338, %v3313
      %v3340 = vpop.permute.xlu0 %3339
      %3343 = vset.pattern.permute.xlu0 0
      %3344 = vperm.xlu0 %3343, %v3314
      %v3345 = vpop.permute.xlu0 %3344
      %3348 = vset.pattern.permute.xlu0 0
      %3349 = vperm.xlu0 %3348, %v3315
      %v3350 = vpop.permute.xlu0 %3349
      %3353 = vset.pattern.permute.xlu0 0
      %3354 = vperm.xlu0 %3353, %v3316
      %v3355 = vpop.permute.xlu0 %3354
      %3358 = vset.pattern.permute.xlu0 0
      %3359 = vperm.xlu0 %3358, %v3317
      %v3360 = vpop.permute.xlu0 %3359
      %3363 = vset.pattern.permute.xlu0 0
      %3364 = vperm.xlu0 %3363, %v3318
      %v3365 = vpop.permute.xlu0 %3364
      %3368 = vset.pattern.permute.xlu0 0
      %3369 = vperm.xlu0 %3368, %v3319
      %v3370 = vpop.permute.xlu0 %3369
      %3373 = vset.pattern.permute.xlu0 0
      %3374 = vperm.xlu0 %3373, %v3320
      %v3375 = vpop.permute.xlu0 %3374
      %3378 = vset.pattern.permute.xlu0 0
      %3379 = vperm.xlu0 %3378, %v3321
      %v3380 = vpop.permute.xlu0 %3379
      %3383 = vset.pattern.permute.xlu0 0
      %3384 = vperm.xlu0 %3383, %v3322
      %v3385 = vpop.permute.xlu0 %3384
      %3388 = vset.pattern.permute.xlu0 0
      %3389 = vperm.xlu0 %3388, %v3323
      %v3390 = vpop.permute.xlu0 %3389
      %3393 = vset.pattern.permute.xlu0 0
      %3394 = vperm.xlu0 %3393, %v3324
      %v3395 = vpop.permute.xlu0 %3394
      %3398 = vset.pattern.permute.xlu0 0
      %3399 = vperm.xlu0 %3398, %v3325
      %v3400 = vpop.permute.xlu0 %3399
      %3403 = vset.pattern.permute.xlu0 0
      %3404 = vperm.xlu0 %3403, %v3326
      %v3405 = vpop.permute.xlu0 %3404
      %3407 = vmatpush.msra.mxu0 %v3309
      %3408 = vmatpush.msra.mxu0 %v3308
      %3409 = vmatpush.msra.mxu0 %v3307
      %3410 = vmatpush.msra.mxu0 %v3306
      %3411 = vmatpush.msra.mxu0 %v3305
      %3412 = vmatpush.msra.mxu0 %v3304
      %3413 = vmatpush.msra.mxu0 %v3303
      %3414 = vmatpush.msra.mxu0 %v3302
      %3415 = vmatpush.msra.mxu0 %v3301
      %3416 = vmatpush.msra.mxu0 %v3300
      %3417 = vmatpush.msra.mxu0 %v3299
      %3418 = vmatpush.msra.mxu0 %v3298
      %3419 = vmatpush.msra.mxu0 %v3297
      %3420 = vmatpush.msra.mxu0 %v3296
      %3421 = vmatpush.msra.mxu0 %v3295
      %3422 = vmatpush.msra.mxu0 %v3294
      %3423 = vmatmul.f32.gmra.mxu0 %v3278
      %v3424 = vpop.f32.mrf.mxu0
      %v3425 = vadd.f32 %v3330, %v3424
      %3426 = vmatmul.f32.gmra.mxu0 %v3279
      %v3427 = vpop.f32.mrf.mxu0
      %v3428 = vadd.f32 %v3335, %v3427
      %3429 = vmatmul.f32.gmra.mxu0 %v3280
      %v3430 = vpop.f32.mrf.mxu0
      %v3431 = vadd.f32 %v3340, %v3430
      %3432 = vmatmul.f32.gmra.mxu0 %v3281
      %v3433 = vpop.f32.mrf.mxu0
      %v3434 = vadd.f32 %v3345, %v3433
      %3435 = vmatmul.f32.gmra.mxu0 %v3282
      %v3436 = vpop.f32.mrf.mxu0
      %v3437 = vadd.f32 %v3350, %v3436
      %3438 = vmatmul.f32.gmra.mxu0 %v3283
      %v3439 = vpop.f32.mrf.mxu0
      %v3440 = vadd.f32 %v3355, %v3439
      %3441 = vmatmul.f32.gmra.mxu0 %v3284
      %v3442 = vpop.f32.mrf.mxu0
      %v3443 = vadd.f32 %v3360, %v3442
      %3444 = vmatmul.f32.gmra.mxu0 %v3285
      %v3445 = vpop.f32.mrf.mxu0
      %v3446 = vadd.f32 %v3365, %v3445
      %3447 = vmatmul.f32.gmra.mxu0 %v3286
      %v3448 = vpop.f32.mrf.mxu0
      %v3449 = vadd.f32 %v3370, %v3448
      %3450 = vmatmul.f32.gmra.mxu0 %v3287
      %v3451 = vpop.f32.mrf.mxu0
      %v3452 = vadd.f32 %v3375, %v3451
      %3453 = vmatmul.f32.gmra.mxu0 %v3288
      %v3454 = vpop.f32.mrf.mxu0
      %v3455 = vadd.f32 %v3380, %v3454
      %3456 = vmatmul.f32.gmra.mxu0 %v3289
      %v3457 = vpop.f32.mrf.mxu0
      %v3458 = vadd.f32 %v3385, %v3457
      %3459 = vmatmul.f32.gmra.mxu0 %v3290
      %v3460 = vpop.f32.mrf.mxu0
      %v3461 = vadd.f32 %v3390, %v3460
      %3462 = vmatmul.f32.gmra.mxu0 %v3291
      %v3463 = vpop.f32.mrf.mxu0
      %v3464 = vadd.f32 %v3395, %v3463
      %3465 = vmatmul.f32.gmra.mxu0 %v3292
      %v3466 = vpop.f32.mrf.mxu0
      %v3467 = vadd.f32 %v3400, %v3466
      %3468 = vmatmul.f32.gmra.mxu0 %v3293
      %v3469 = vpop.f32.mrf.mxu0
      %v3470 = vadd.f32 %v3405, %v3469
      %3471 = vdwg.mxu0
      %v3472 = vrsqrt.pop %v3425
      %v3473 = vmul.f32 %v3472, %v3425
      %v3474 = vmul.f32 %v3473, %v3472
      %v3475 = vmul.f32 0.5, %v3474
      %v3476 = vsub.f32 1.5, %v3475
      %v3477 = vmul.f32 %v3472, %v3476
      %vm3478 = vweird.f32 %v3425
      %vm3479 = vweird.f32 %v3472
      %vm3480 = vmor %vm3478, %vm3479
      %v3481 = vsel %vm3480, %v3472, %v3477
      %v3482 = vrsqrt.pop %v3428
      %v3483 = vmul.f32 %v3482, %v3428
      %v3484 = vmul.f32 %v3483, %v3482
      %v3485 = vmul.f32 0.5, %v3484
      %v3486 = vsub.f32 1.5, %v3485
      %v3487 = vmul.f32 %v3482, %v3486
      %vm3488 = vweird.f32 %v3428
      %vm3489 = vweird.f32 %v3482
      %vm3490 = vmor %vm3488, %vm3489
      %v3491 = vsel %vm3490, %v3482, %v3487
      %v3492 = vrsqrt.pop %v3431
      %v3493 = vmul.f32 %v3492, %v3431
      %v3494 = vmul.f32 %v3493, %v3492
      %v3495 = vmul.f32 0.5, %v3494
      %v3496 = vsub.f32 1.5, %v3495
      %v3497 = vmul.f32 %v3492, %v3496
      %vm3498 = vweird.f32 %v3431
      %vm3499 = vweird.f32 %v3492
      %vm3500 = vmor %vm3498, %vm3499
      %v3501 = vsel %vm3500, %v3492, %v3497
      %v3502 = vrsqrt.pop %v3434
      %v3503 = vmul.f32 %v3502, %v3434
      %v3504 = vmul.f32 %v3503, %v3502
      %v3505 = vmul.f32 0.5, %v3504
      %v3506 = vsub.f32 1.5, %v3505
      %v3507 = vmul.f32 %v3502, %v3506
      %vm3508 = vweird.f32 %v3434
      %vm3509 = vweird.f32 %v3502
      %vm3510 = vmor %vm3508, %vm3509
      %v3511 = vsel %vm3510, %v3502, %v3507
      %v3512 = vrsqrt.pop %v3437
      %v3513 = vmul.f32 %v3512, %v3437
      %v3514 = vmul.f32 %v3513, %v3512
      %v3515 = vmul.f32 0.5, %v3514
      %v3516 = vsub.f32 1.5, %v3515
      %v3517 = vmul.f32 %v3512, %v3516
      %vm3518 = vweird.f32 %v3437
      %vm3519 = vweird.f32 %v3512
      %vm3520 = vmor %vm3518, %vm3519
      %v3521 = vsel %vm3520, %v3512, %v3517
      %v3522 = vrsqrt.pop %v3440
      %v3523 = vmul.f32 %v3522, %v3440
      %v3524 = vmul.f32 %v3523, %v3522
      %v3525 = vmul.f32 0.5, %v3524
      %v3526 = vsub.f32 1.5, %v3525
      %v3527 = vmul.f32 %v3522, %v3526
      %vm3528 = vweird.f32 %v3440
      %vm3529 = vweird.f32 %v3522
      %vm3530 = vmor %vm3528, %vm3529
      %v3531 = vsel %vm3530, %v3522, %v3527
      %v3532 = vrsqrt.pop %v3443
      %v3533 = vmul.f32 %v3532, %v3443
      %v3534 = vmul.f32 %v3533, %v3532
      %v3535 = vmul.f32 0.5, %v3534
      %v3536 = vsub.f32 1.5, %v3535
      %v3537 = vmul.f32 %v3532, %v3536
      %vm3538 = vweird.f32 %v3443
      %vm3539 = vweird.f32 %v3532
      %vm3540 = vmor %vm3538, %vm3539
      %v3541 = vsel %vm3540, %v3532, %v3537
      %v3542 = vrsqrt.pop %v3446
      %v3543 = vmul.f32 %v3542, %v3446
      %v3544 = vmul.f32 %v3543, %v3542
      %v3545 = vmul.f32 0.5, %v3544
      %v3546 = vsub.f32 1.5, %v3545
      %v3547 = vmul.f32 %v3542, %v3546
      %vm3548 = vweird.f32 %v3446
      %vm3549 = vweird.f32 %v3542
      %vm3550 = vmor %vm3548, %vm3549
      %v3551 = vsel %vm3550, %v3542, %v3547
      %v3552 = vrsqrt.pop %v3449
      %v3553 = vmul.f32 %v3552, %v3449
      %v3554 = vmul.f32 %v3553, %v3552
      %v3555 = vmul.f32 0.5, %v3554
      %v3556 = vsub.f32 1.5, %v3555
      %v3557 = vmul.f32 %v3552, %v3556
      %vm3558 = vweird.f32 %v3449
      %vm3559 = vweird.f32 %v3552
      %vm3560 = vmor %vm3558, %vm3559
      %v3561 = vsel %vm3560, %v3552, %v3557
      %v3562 = vrsqrt.pop %v3452
      %v3563 = vmul.f32 %v3562, %v3452
      %v3564 = vmul.f32 %v3563, %v3562
      %v3565 = vmul.f32 0.5, %v3564
      %v3566 = vsub.f32 1.5, %v3565
      %v3567 = vmul.f32 %v3562, %v3566
      %vm3568 = vweird.f32 %v3452
      %vm3569 = vweird.f32 %v3562
      %vm3570 = vmor %vm3568, %vm3569
      %v3571 = vsel %vm3570, %v3562, %v3567
      %v3572 = vrsqrt.pop %v3455
      %v3573 = vmul.f32 %v3572, %v3455
      %v3574 = vmul.f32 %v3573, %v3572
      %v3575 = vmul.f32 0.5, %v3574
      %v3576 = vsub.f32 1.5, %v3575
      %v3577 = vmul.f32 %v3572, %v3576
      %vm3578 = vweird.f32 %v3455
      %vm3579 = vweird.f32 %v3572
      %vm3580 = vmor %vm3578, %vm3579
      %v3581 = vsel %vm3580, %v3572, %v3577
      %v3582 = vrsqrt.pop %v3458
      %v3583 = vmul.f32 %v3582, %v3458
      %v3584 = vmul.f32 %v3583, %v3582
      %v3585 = vmul.f32 0.5, %v3584
      %v3586 = vsub.f32 1.5, %v3585
      %v3587 = vmul.f32 %v3582, %v3586
      %vm3588 = vweird.f32 %v3458
      %vm3589 = vweird.f32 %v3582
      %vm3590 = vmor %vm3588, %vm3589
      %v3591 = vsel %vm3590, %v3582, %v3587
      %v3592 = vrsqrt.pop %v3461
      %v3593 = vmul.f32 %v3592, %v3461
      %v3594 = vmul.f32 %v3593, %v3592
      %v3595 = vmul.f32 0.5, %v3594
      %v3596 = vsub.f32 1.5, %v3595
      %v3597 = vmul.f32 %v3592, %v3596
      %vm3598 = vweird.f32 %v3461
      %vm3599 = vweird.f32 %v3592
      %vm3600 = vmor %vm3598, %vm3599
      %v3601 = vsel %vm3600, %v3592, %v3597
      %v3602 = vrsqrt.pop %v3464
      %v3603 = vmul.f32 %v3602, %v3464
      %v3604 = vmul.f32 %v3603, %v3602
      %v3605 = vmul.f32 0.5, %v3604
      %v3606 = vsub.f32 1.5, %v3605
      %v3607 = vmul.f32 %v3602, %v3606
      %vm3608 = vweird.f32 %v3464
      %vm3609 = vweird.f32 %v3602
      %vm3610 = vmor %vm3608, %vm3609
      %v3611 = vsel %vm3610, %v3602, %v3607
      %v3612 = vrsqrt.pop %v3467
      %v3613 = vmul.f32 %v3612, %v3467
      %v3614 = vmul.f32 %v3613, %v3612
      %v3615 = vmul.f32 0.5, %v3614
      %v3616 = vsub.f32 1.5, %v3615
      %v3617 = vmul.f32 %v3612, %v3616
      %vm3618 = vweird.f32 %v3467
      %vm3619 = vweird.f32 %v3612
      %vm3620 = vmor %vm3618, %vm3619
      %v3621 = vsel %vm3620, %v3612, %v3617
      %v3622 = vrsqrt.pop %v3470
      %v3623 = vmul.f32 %v3622, %v3470
      %v3624 = vmul.f32 %v3623, %v3622
      %v3625 = vmul.f32 0.5, %v3624
      %v3626 = vsub.f32 1.5, %v3625
      %v3627 = vmul.f32 %v3622, %v3626
      %vm3628 = vweird.f32 %v3470
      %vm3629 = vweird.f32 %v3622
      %vm3630 = vmor %vm3628, %vm3629
      %v3631 = vsel %vm3630, %v3622, %v3627
      %v3632 = vmul.f32 %v3261, %v3481
      %v3633 = vmul.f32 %v3262, %v3491
      %v3634 = vmul.f32 %v3263, %v3501
      %v3635 = vmul.f32 %v3264, %v3511
      %v3636 = vmul.f32 %v3265, %v3521
      %v3637 = vmul.f32 %v3266, %v3531
      %v3638 = vmul.f32 %v3267, %v3541
      %v3639 = vmul.f32 %v3268, %v3551
      %v3640 = vmul.f32 %v3269, %v3561
      %v3641 = vmul.f32 %v3270, %v3571
      %v3642 = vmul.f32 %v3271, %v3581
      %v3643 = vmul.f32 %v3272, %v3591
      %v3644 = vmul.f32 %v3273, %v3601
      %v3645 = vmul.f32 %v3274, %v3611
      %v3646 = vmul.f32 %v3275, %v3621
      %v3647 = vmul.f32 %v3276, %v3631
      %s3648 = scalar_lea.vmem %s3, 1024
      %v3649 = vld [vmem:[%s3648] sm:$0xff]
      %v3650 = vld [vmem:[%s3648 + $0x8] sm:$0xff]
      %v3651 = vld [vmem:[%s3648 + $0x10] sm:$0xff]
      %v3652 = vld [vmem:[%s3648 + $0x18] sm:$0xff]
      %v3653 = vld [vmem:[%s3648 + $0x20] sm:$0xff]
      %v3654 = vld [vmem:[%s3648 + $0x28] sm:$0xff]
      %v3655 = vld [vmem:[%s3648 + $0x30] sm:$0xff]
      %v3656 = vld [vmem:[%s3648 + $0x38] sm:$0xff]
      %v3657 = vld [vmem:[%s3648 + $0x40] sm:$0xff]
      %v3658 = vld [vmem:[%s3648 + $0x48] sm:$0xff]
      %v3659 = vld [vmem:[%s3648 + $0x50] sm:$0xff]
      %v3660 = vld [vmem:[%s3648 + $0x58] sm:$0xff]
      %v3661 = vld [vmem:[%s3648 + $0x60] sm:$0xff]
      %v3662 = vld [vmem:[%s3648 + $0x68] sm:$0xff]
      %v3663 = vld [vmem:[%s3648 + $0x70] sm:$0xff]
      %v3664 = vld [vmem:[%s3648 + $0x78] sm:$0xff]
      %s3665 = scalar_lea.vmem %s3, 1152
      %v3666 = vld [vmem:[%s3665] sm:$0xff]
      %v3667 = vld [vmem:[%s3665 + $0x8] sm:$0xff]
      %v3668 = vld [vmem:[%s3665 + $0x10] sm:$0xff]
      %v3669 = vld [vmem:[%s3665 + $0x18] sm:$0xff]
      %v3670 = vld [vmem:[%s3665 + $0x20] sm:$0xff]
      %v3671 = vld [vmem:[%s3665 + $0x28] sm:$0xff]
      %v3672 = vld [vmem:[%s3665 + $0x30] sm:$0xff]
      %v3673 = vld [vmem:[%s3665 + $0x38] sm:$0xff]
      %v3674 = vld [vmem:[%s3665 + $0x40] sm:$0xff]
      %v3675 = vld [vmem:[%s3665 + $0x48] sm:$0xff]
      %v3676 = vld [vmem:[%s3665 + $0x50] sm:$0xff]
      %v3677 = vld [vmem:[%s3665 + $0x58] sm:$0xff]
      %v3678 = vld [vmem:[%s3665 + $0x60] sm:$0xff]
      %v3679 = vld [vmem:[%s3665 + $0x68] sm:$0xff]
      %v3680 = vld [vmem:[%s3665 + $0x70] sm:$0xff]
      %v3681 = vld [vmem:[%s3665 + $0x78] sm:$0xff]
      %3698 = vrot.lane.b32.xlu0 %v3632, 112
      %v3699 = vpop.permute.xlu0 %3698
      %3700 = vrot.lane.b32.xlu0 %v3633, 112
      %v3701 = vpop.permute.xlu0 %3700
      %3702 = vrot.lane.b32.xlu0 %v3634, 112
      %v3703 = vpop.permute.xlu0 %3702
      %3704 = vrot.lane.b32.xlu0 %v3635, 112
      %v3705 = vpop.permute.xlu0 %3704
      %3706 = vrot.lane.b32.xlu0 %v3636, 112
      %v3707 = vpop.permute.xlu0 %3706
      %3708 = vrot.lane.b32.xlu0 %v3637, 112
      %v3709 = vpop.permute.xlu0 %3708
      %3710 = vrot.lane.b32.xlu0 %v3638, 112
      %v3711 = vpop.permute.xlu0 %3710
      %3712 = vrot.lane.b32.xlu0 %v3639, 112
      %v3713 = vpop.permute.xlu0 %3712
      %3714 = vrot.lane.b32.xlu0 %v3640, 112
      %v3715 = vpop.permute.xlu0 %3714
      %3716 = vrot.lane.b32.xlu0 %v3641, 112
      %v3717 = vpop.permute.xlu0 %3716
      %3718 = vrot.lane.b32.xlu0 %v3642, 112
      %v3719 = vpop.permute.xlu0 %3718
      %3720 = vrot.lane.b32.xlu0 %v3643, 112
      %v3721 = vpop.permute.xlu0 %3720
      %3722 = vrot.lane.b32.xlu0 %v3644, 112
      %v3723 = vpop.permute.xlu0 %3722
      %3724 = vrot.lane.b32.xlu0 %v3645, 112
      %v3725 = vpop.permute.xlu0 %3724
      %3726 = vrot.lane.b32.xlu0 %v3646, 112
      %v3727 = vpop.permute.xlu0 %3726
      %3728 = vrot.lane.b32.xlu0 %v3647, 112
      %v3729 = vpop.permute.xlu0 %3728
      %3746 = vmatpush.msra.mxu0 %v3729
      %3747 = vmatpush.msra.mxu0 %v3727
      %3748 = vmatpush.msra.mxu0 %v3725
      %3749 = vmatpush.msra.mxu0 %v3723
      %3750 = vmatpush.msra.mxu0 %v3721
      %3751 = vmatpush.msra.mxu0 %v3719
      %3752 = vmatpush.msra.mxu0 %v3717
      %3753 = vmatpush.msra.mxu0 %v3715
      %3754 = vmatpush.msra.mxu0 %v3713
      %3755 = vmatpush.msra.mxu0 %v3711
      %3756 = vmatpush.msra.mxu0 %v3709
      %3757 = vmatpush.msra.mxu0 %v3707
      %3758 = vmatpush.msra.mxu0 %v3705
      %3759 = vmatpush.msra.mxu0 %v3703
      %3760 = vmatpush.msra.mxu0 %v3701
      %3761 = vmatpush.msra.mxu0 %v3699
      %3762 = vmatmul.f32.gmra.mxu0 %v3666
      %v3763 = vpop.f32.mrf.mxu0
      %v3764 = vadd.f32 0.0, %v3763
      %3765 = vmatmul.f32.gmra.mxu0 %v3667
      %v3766 = vpop.f32.mrf.mxu0
      %v3767 = vadd.f32 0.0, %v3766
      %3768 = vmatmul.f32.gmra.mxu0 %v3668
      %v3769 = vpop.f32.mrf.mxu0
      %v3770 = vadd.f32 0.0, %v3769
      %3771 = vmatmul.f32.gmra.mxu0 %v3669
      %v3772 = vpop.f32.mrf.mxu0
      %v3773 = vadd.f32 0.0, %v3772
      %3774 = vmatmul.f32.gmra.mxu0 %v3670
      %v3775 = vpop.f32.mrf.mxu0
      %v3776 = vadd.f32 0.0, %v3775
      %3777 = vmatmul.f32.gmra.mxu0 %v3671
      %v3778 = vpop.f32.mrf.mxu0
      %v3779 = vadd.f32 0.0, %v3778
      %3780 = vmatmul.f32.gmra.mxu0 %v3672
      %v3781 = vpop.f32.mrf.mxu0
      %v3782 = vadd.f32 0.0, %v3781
      %3783 = vmatmul.f32.gmra.mxu0 %v3673
      %v3784 = vpop.f32.mrf.mxu0
      %v3785 = vadd.f32 0.0, %v3784
      %3786 = vmatmul.f32.gmra.mxu0 %v3674
      %v3787 = vpop.f32.mrf.mxu0
      %v3788 = vadd.f32 0.0, %v3787
      %3789 = vmatmul.f32.gmra.mxu0 %v3675
      %v3790 = vpop.f32.mrf.mxu0
      %v3791 = vadd.f32 0.0, %v3790
      %3792 = vmatmul.f32.gmra.mxu0 %v3676
      %v3793 = vpop.f32.mrf.mxu0
      %v3794 = vadd.f32 0.0, %v3793
      %3795 = vmatmul.f32.gmra.mxu0 %v3677
      %v3796 = vpop.f32.mrf.mxu0
      %v3797 = vadd.f32 0.0, %v3796
      %3798 = vmatmul.f32.gmra.mxu0 %v3678
      %v3799 = vpop.f32.mrf.mxu0
      %v3800 = vadd.f32 0.0, %v3799
      %3801 = vmatmul.f32.gmra.mxu0 %v3679
      %v3802 = vpop.f32.mrf.mxu0
      %v3803 = vadd.f32 0.0, %v3802
      %3804 = vmatmul.f32.gmra.mxu0 %v3680
      %v3805 = vpop.f32.mrf.mxu0
      %v3806 = vadd.f32 0.0, %v3805
      %3807 = vmatmul.f32.gmra.mxu0 %v3681
      %v3808 = vpop.f32.mrf.mxu0
      %v3809 = vadd.f32 0.0, %v3808
      %3810 = vdwg.mxu0
      %3811 = vmatpush.msra.mxu0 %v3647
      %3812 = vmatpush.msra.mxu0 %v3646
      %3813 = vmatpush.msra.mxu0 %v3645
      %3814 = vmatpush.msra.mxu0 %v3644
      %3815 = vmatpush.msra.mxu0 %v3643
      %3816 = vmatpush.msra.mxu0 %v3642
      %3817 = vmatpush.msra.mxu0 %v3641
      %3818 = vmatpush.msra.mxu0 %v3640
      %3819 = vmatpush.msra.mxu0 %v3639
      %3820 = vmatpush.msra.mxu0 %v3638
      %3821 = vmatpush.msra.mxu0 %v3637
      %3822 = vmatpush.msra.mxu0 %v3636
      %3823 = vmatpush.msra.mxu0 %v3635
      %3824 = vmatpush.msra.mxu0 %v3634
      %3825 = vmatpush.msra.mxu0 %v3633
      %3826 = vmatpush.msra.mxu0 %v3632
      %3827 = vmatmul.f32.gmra.mxu0 %v3649
      %v3828 = vpop.f32.mrf.mxu0
      %v3829 = vadd.f32 %v3764, %v3828
      %3830 = vmatmul.f32.gmra.mxu0 %v3650
      %v3831 = vpop.f32.mrf.mxu0
      %v3832 = vadd.f32 %v3767, %v3831
      %3833 = vmatmul.f32.gmra.mxu0 %v3651
      %v3834 = vpop.f32.mrf.mxu0
      %v3835 = vadd.f32 %v3770, %v3834
      %3836 = vmatmul.f32.gmra.mxu0 %v3652
      %v3837 = vpop.f32.mrf.mxu0
      %v3838 = vadd.f32 %v3773, %v3837
      %3839 = vmatmul.f32.gmra.mxu0 %v3653
      %v3840 = vpop.f32.mrf.mxu0
      %v3841 = vadd.f32 %v3776, %v3840
      %3842 = vmatmul.f32.gmra.mxu0 %v3654
      %v3843 = vpop.f32.mrf.mxu0
      %v3844 = vadd.f32 %v3779, %v3843
      %3845 = vmatmul.f32.gmra.mxu0 %v3655
      %v3846 = vpop.f32.mrf.mxu0
      %v3847 = vadd.f32 %v3782, %v3846
      %3848 = vmatmul.f32.gmra.mxu0 %v3656
      %v3849 = vpop.f32.mrf.mxu0
      %v3850 = vadd.f32 %v3785, %v3849
      %3851 = vmatmul.f32.gmra.mxu0 %v3657
      %v3852 = vpop.f32.mrf.mxu0
      %v3853 = vadd.f32 %v3788, %v3852
      %3854 = vmatmul.f32.gmra.mxu0 %v3658
      %v3855 = vpop.f32.mrf.mxu0
      %v3856 = vadd.f32 %v3791, %v3855
      %3857 = vmatmul.f32.gmra.mxu0 %v3659
      %v3858 = vpop.f32.mrf.mxu0
      %v3859 = vadd.f32 %v3794, %v3858
      %3860 = vmatmul.f32.gmra.mxu0 %v3660
      %v3861 = vpop.f32.mrf.mxu0
      %v3862 = vadd.f32 %v3797, %v3861
      %3863 = vmatmul.f32.gmra.mxu0 %v3661
      %v3864 = vpop.f32.mrf.mxu0
      %v3865 = vadd.f32 %v3800, %v3864
      %3866 = vmatmul.f32.gmra.mxu0 %v3662
      %v3867 = vpop.f32.mrf.mxu0
      %v3868 = vadd.f32 %v3803, %v3867
      %3869 = vmatmul.f32.gmra.mxu0 %v3663
      %v3870 = vpop.f32.mrf.mxu0
      %v3871 = vadd.f32 %v3806, %v3870
      %3872 = vmatmul.f32.gmra.mxu0 %v3664
      %v3873 = vpop.f32.mrf.mxu0
      %v3874 = vadd.f32 %v3809, %v3873
      %3875 = vdwg.mxu0
      %s3876 = scalar_lea.vmem %s3, 1280
      %v3877 = vld [vmem:[%s3876] sm:$0xff]
      %v3878 = vld [vmem:[%s3876 + $0x8] sm:$0xff]
      %v3879 = vld [vmem:[%s3876 + $0x10] sm:$0xff]
      %v3880 = vld [vmem:[%s3876 + $0x18] sm:$0xff]
      %v3881 = vld [vmem:[%s3876 + $0x20] sm:$0xff]
      %v3882 = vld [vmem:[%s3876 + $0x28] sm:$0xff]
      %v3883 = vld [vmem:[%s3876 + $0x30] sm:$0xff]
      %v3884 = vld [vmem:[%s3876 + $0x38] sm:$0xff]
      %v3885 = vld [vmem:[%s3876 + $0x40] sm:$0xff]
      %v3886 = vld [vmem:[%s3876 + $0x48] sm:$0xff]
      %v3887 = vld [vmem:[%s3876 + $0x50] sm:$0xff]
      %v3888 = vld [vmem:[%s3876 + $0x58] sm:$0xff]
      %v3889 = vld [vmem:[%s3876 + $0x60] sm:$0xff]
      %v3890 = vld [vmem:[%s3876 + $0x68] sm:$0xff]
      %v3891 = vld [vmem:[%s3876 + $0x70] sm:$0xff]
      %v3892 = vld [vmem:[%s3876 + $0x78] sm:$0xff]
      %3893 = vrot.lane.b32.xlu0 %v3632, 96
      %v3894 = vpop.permute.xlu0 %3893
      %3895 = vrot.lane.b32.xlu0 %v3633, 96
      %v3896 = vpop.permute.xlu0 %3895
      %3897 = vrot.lane.b32.xlu0 %v3634, 96
      %v3898 = vpop.permute.xlu0 %3897
      %3899 = vrot.lane.b32.xlu0 %v3635, 96
      %v3900 = vpop.permute.xlu0 %3899
      %3901 = vrot.lane.b32.xlu0 %v3636, 96
      %v3902 = vpop.permute.xlu0 %3901
      %3903 = vrot.lane.b32.xlu0 %v3637, 96
      %v3904 = vpop.permute.xlu0 %3903
      %3905 = vrot.lane.b32.xlu0 %v3638, 96
      %v3906 = vpop.permute.xlu0 %3905
      %3907 = vrot.lane.b32.xlu0 %v3639, 96
      %v3908 = vpop.permute.xlu0 %3907
      %3909 = vrot.lane.b32.xlu0 %v3640, 96
      %v3910 = vpop.permute.xlu0 %3909
      %3911 = vrot.lane.b32.xlu0 %v3641, 96
      %v3912 = vpop.permute.xlu0 %3911
      %3913 = vrot.lane.b32.xlu0 %v3642, 96
      %v3914 = vpop.permute.xlu0 %3913
      %3915 = vrot.lane.b32.xlu0 %v3643, 96
      %v3916 = vpop.permute.xlu0 %3915
      %3917 = vrot.lane.b32.xlu0 %v3644, 96
      %v3918 = vpop.permute.xlu0 %3917
      %3919 = vrot.lane.b32.xlu0 %v3645, 96
      %v3920 = vpop.permute.xlu0 %3919
      %3921 = vrot.lane.b32.xlu0 %v3646, 96
      %v3922 = vpop.permute.xlu0 %3921
      %3923 = vrot.lane.b32.xlu0 %v3647, 96
      %v3924 = vpop.permute.xlu0 %3923
      %3941 = vmatpush.msra.mxu0 %v3924
      %3942 = vmatpush.msra.mxu0 %v3922
      %3943 = vmatpush.msra.mxu0 %v3920
      %3944 = vmatpush.msra.mxu0 %v3918
      %3945 = vmatpush.msra.mxu0 %v3916
      %3946 = vmatpush.msra.mxu0 %v3914
      %3947 = vmatpush.msra.mxu0 %v3912
      %3948 = vmatpush.msra.mxu0 %v3910
      %3949 = vmatpush.msra.mxu0 %v3908
      %3950 = vmatpush.msra.mxu0 %v3906
      %3951 = vmatpush.msra.mxu0 %v3904
      %3952 = vmatpush.msra.mxu0 %v3902
      %3953 = vmatpush.msra.mxu0 %v3900
      %3954 = vmatpush.msra.mxu0 %v3898
      %3955 = vmatpush.msra.mxu0 %v3896
      %3956 = vmatpush.msra.mxu0 %v3894
      %3957 = vmatmul.f32.gmra.mxu0 %v3877
      %v3958 = vpop.f32.mrf.mxu0
      %v3959 = vadd.f32 0.0, %v3958
      %3960 = vmatmul.f32.gmra.mxu0 %v3878
      %v3961 = vpop.f32.mrf.mxu0
      %v3962 = vadd.f32 0.0, %v3961
      %3963 = vmatmul.f32.gmra.mxu0 %v3879
      %v3964 = vpop.f32.mrf.mxu0
      %v3965 = vadd.f32 0.0, %v3964
      %3966 = vmatmul.f32.gmra.mxu0 %v3880
      %v3967 = vpop.f32.mrf.mxu0
      %v3968 = vadd.f32 0.0, %v3967
      %3969 = vmatmul.f32.gmra.mxu0 %v3881
      %v3970 = vpop.f32.mrf.mxu0
      %v3971 = vadd.f32 0.0, %v3970
      %3972 = vmatmul.f32.gmra.mxu0 %v3882
      %v3973 = vpop.f32.mrf.mxu0
      %v3974 = vadd.f32 0.0, %v3973
      %3975 = vmatmul.f32.gmra.mxu0 %v3883
      %v3976 = vpop.f32.mrf.mxu0
      %v3977 = vadd.f32 0.0, %v3976
      %3978 = vmatmul.f32.gmra.mxu0 %v3884
      %v3979 = vpop.f32.mrf.mxu0
      %v3980 = vadd.f32 0.0, %v3979
      %3981 = vmatmul.f32.gmra.mxu0 %v3885
      %v3982 = vpop.f32.mrf.mxu0
      %v3983 = vadd.f32 0.0, %v3982
      %3984 = vmatmul.f32.gmra.mxu0 %v3886
      %v3985 = vpop.f32.mrf.mxu0
      %v3986 = vadd.f32 0.0, %v3985
      %3987 = vmatmul.f32.gmra.mxu0 %v3887
      %v3988 = vpop.f32.mrf.mxu0
      %v3989 = vadd.f32 0.0, %v3988
      %3990 = vmatmul.f32.gmra.mxu0 %v3888
      %v3991 = vpop.f32.mrf.mxu0
      %v3992 = vadd.f32 0.0, %v3991
      %3993 = vmatmul.f32.gmra.mxu0 %v3889
      %v3994 = vpop.f32.mrf.mxu0
      %v3995 = vadd.f32 0.0, %v3994
      %3996 = vmatmul.f32.gmra.mxu0 %v3890
      %v3997 = vpop.f32.mrf.mxu0
      %v3998 = vadd.f32 0.0, %v3997
      %3999 = vmatmul.f32.gmra.mxu0 %v3891
      %v4000 = vpop.f32.mrf.mxu0
      %v4001 = vadd.f32 0.0, %v4000
      %4002 = vmatmul.f32.gmra.mxu0 %v3892
      %v4003 = vpop.f32.mrf.mxu0
      %v4004 = vadd.f32 0.0, %v4003
      %4005 = vdwg.mxu0
      %v4006 = vadd.f32 %v3829, %v3959
      %v4007 = vadd.f32 %v3832, %v3962
      %v4008 = vadd.f32 %v3835, %v3965
      %v4009 = vadd.f32 %v3838, %v3968
      %v4010 = vadd.f32 %v3841, %v3971
      %v4011 = vadd.f32 %v3844, %v3974
      %v4012 = vadd.f32 %v3847, %v3977
      %v4013 = vadd.f32 %v3850, %v3980
      %v4014 = vadd.f32 %v3853, %v3983
      %v4015 = vadd.f32 %v3856, %v3986
      %v4016 = vadd.f32 %v3859, %v3989
      %v4017 = vadd.f32 %v3862, %v3992
      %v4018 = vadd.f32 %v3865, %v3995
      %v4019 = vadd.f32 %v3868, %v3998
      %v4020 = vadd.f32 %v3871, %v4001
      %v4021 = vadd.f32 %v3874, %v4004
      %s4022 = scalar_lea.vmem %s3, 1408
      %v4023 = vld [vmem:[%s4022] sm:$0xff]
      %v4024 = vld [vmem:[%s4022 + $0x8] sm:$0xff]
      %v4025 = vld [vmem:[%s4022 + $0x10] sm:$0xff]
      %v4026 = vld [vmem:[%s4022 + $0x18] sm:$0xff]
      %v4027 = vld [vmem:[%s4022 + $0x20] sm:$0xff]
      %v4028 = vld [vmem:[%s4022 + $0x28] sm:$0xff]
      %v4029 = vld [vmem:[%s4022 + $0x30] sm:$0xff]
      %v4030 = vld [vmem:[%s4022 + $0x38] sm:$0xff]
      %v4031 = vld [vmem:[%s4022 + $0x40] sm:$0xff]
      %v4032 = vld [vmem:[%s4022 + $0x48] sm:$0xff]
      %v4033 = vld [vmem:[%s4022 + $0x50] sm:$0xff]
      %v4034 = vld [vmem:[%s4022 + $0x58] sm:$0xff]
      %v4035 = vld [vmem:[%s4022 + $0x60] sm:$0xff]
      %v4036 = vld [vmem:[%s4022 + $0x68] sm:$0xff]
      %v4037 = vld [vmem:[%s4022 + $0x70] sm:$0xff]
      %v4038 = vld [vmem:[%s4022 + $0x78] sm:$0xff]
      %4039 = vrot.lane.b32.xlu0 %v3632, 80
      %v4040 = vpop.permute.xlu0 %4039
      %4041 = vrot.lane.b32.xlu0 %v3633, 80
      %v4042 = vpop.permute.xlu0 %4041
      %4043 = vrot.lane.b32.xlu0 %v3634, 80
      %v4044 = vpop.permute.xlu0 %4043
      %4045 = vrot.lane.b32.xlu0 %v3635, 80
      %v4046 = vpop.permute.xlu0 %4045
      %4047 = vrot.lane.b32.xlu0 %v3636, 80
      %v4048 = vpop.permute.xlu0 %4047
      %4049 = vrot.lane.b32.xlu0 %v3637, 80
      %v4050 = vpop.permute.xlu0 %4049
      %4051 = vrot.lane.b32.xlu0 %v3638, 80
      %v4052 = vpop.permute.xlu0 %4051
      %4053 = vrot.lane.b32.xlu0 %v3639, 80
      %v4054 = vpop.permute.xlu0 %4053
      %4055 = vrot.lane.b32.xlu0 %v3640, 80
      %v4056 = vpop.permute.xlu0 %4055
      %4057 = vrot.lane.b32.xlu0 %v3641, 80
      %v4058 = vpop.permute.xlu0 %4057
      %4059 = vrot.lane.b32.xlu0 %v3642, 80
      %v4060 = vpop.permute.xlu0 %4059
      %4061 = vrot.lane.b32.xlu0 %v3643, 80
      %v4062 = vpop.permute.xlu0 %4061
      %4063 = vrot.lane.b32.xlu0 %v3644, 80
      %v4064 = vpop.permute.xlu0 %4063
      %4065 = vrot.lane.b32.xlu0 %v3645, 80
      %v4066 = vpop.permute.xlu0 %4065
      %4067 = vrot.lane.b32.xlu0 %v3646, 80
      %v4068 = vpop.permute.xlu0 %4067
      %4069 = vrot.lane.b32.xlu0 %v3647, 80
      %v4070 = vpop.permute.xlu0 %4069
      %4087 = vmatpush.msra.mxu0 %v4070
      %4088 = vmatpush.msra.mxu0 %v4068
      %4089 = vmatpush.msra.mxu0 %v4066
      %4090 = vmatpush.msra.mxu0 %v4064
      %4091 = vmatpush.msra.mxu0 %v4062
      %4092 = vmatpush.msra.mxu0 %v4060
      %4093 = vmatpush.msra.mxu0 %v4058
      %4094 = vmatpush.msra.mxu0 %v4056
      %4095 = vmatpush.msra.mxu0 %v4054
      %4096 = vmatpush.msra.mxu0 %v4052
      %4097 = vmatpush.msra.mxu0 %v4050
      %4098 = vmatpush.msra.mxu0 %v4048
      %4099 = vmatpush.msra.mxu0 %v4046
      %4100 = vmatpush.msra.mxu0 %v4044
      %4101 = vmatpush.msra.mxu0 %v4042
      %4102 = vmatpush.msra.mxu0 %v4040
      %4103 = vmatmul.f32.gmra.mxu0 %v4023
      %v4104 = vpop.f32.mrf.mxu0
      %v4105 = vadd.f32 0.0, %v4104
      %4106 = vmatmul.f32.gmra.mxu0 %v4024
      %v4107 = vpop.f32.mrf.mxu0
      %v4108 = vadd.f32 0.0, %v4107
      %4109 = vmatmul.f32.gmra.mxu0 %v4025
      %v4110 = vpop.f32.mrf.mxu0
      %v4111 = vadd.f32 0.0, %v4110
      %4112 = vmatmul.f32.gmra.mxu0 %v4026
      %v4113 = vpop.f32.mrf.mxu0
      %v4114 = vadd.f32 0.0, %v4113
      %4115 = vmatmul.f32.gmra.mxu0 %v4027
      %v4116 = vpop.f32.mrf.mxu0
      %v4117 = vadd.f32 0.0, %v4116
      %4118 = vmatmul.f32.gmra.mxu0 %v4028
      %v4119 = vpop.f32.mrf.mxu0
      %v4120 = vadd.f32 0.0, %v4119
      %4121 = vmatmul.f32.gmra.mxu0 %v4029
      %v4122 = vpop.f32.mrf.mxu0
      %v4123 = vadd.f32 0.0, %v4122
      %4124 = vmatmul.f32.gmra.mxu0 %v4030
      %v4125 = vpop.f32.mrf.mxu0
      %v4126 = vadd.f32 0.0, %v4125
      %4127 = vmatmul.f32.gmra.mxu0 %v4031
      %v4128 = vpop.f32.mrf.mxu0
      %v4129 = vadd.f32 0.0, %v4128
      %4130 = vmatmul.f32.gmra.mxu0 %v4032
      %v4131 = vpop.f32.mrf.mxu0
      %v4132 = vadd.f32 0.0, %v4131
      %4133 = vmatmul.f32.gmra.mxu0 %v4033
      %v4134 = vpop.f32.mrf.mxu0
      %v4135 = vadd.f32 0.0, %v4134
      %4136 = vmatmul.f32.gmra.mxu0 %v4034
      %v4137 = vpop.f32.mrf.mxu0
      %v4138 = vadd.f32 0.0, %v4137
      %4139 = vmatmul.f32.gmra.mxu0 %v4035
      %v4140 = vpop.f32.mrf.mxu0
      %v4141 = vadd.f32 0.0, %v4140
      %4142 = vmatmul.f32.gmra.mxu0 %v4036
      %v4143 = vpop.f32.mrf.mxu0
      %v4144 = vadd.f32 0.0, %v4143
      %4145 = vmatmul.f32.gmra.mxu0 %v4037
      %v4146 = vpop.f32.mrf.mxu0
      %v4147 = vadd.f32 0.0, %v4146
      %4148 = vmatmul.f32.gmra.mxu0 %v4038
      %v4149 = vpop.f32.mrf.mxu0
      %v4150 = vadd.f32 0.0, %v4149
      %4151 = vdwg.mxu0
      %v4152 = vadd.f32 %v4006, %v4105
      %v4153 = vadd.f32 %v4007, %v4108
      %v4154 = vadd.f32 %v4008, %v4111
      %v4155 = vadd.f32 %v4009, %v4114
      %v4156 = vadd.f32 %v4010, %v4117
      %v4157 = vadd.f32 %v4011, %v4120
      %v4158 = vadd.f32 %v4012, %v4123
      %v4159 = vadd.f32 %v4013, %v4126
      %v4160 = vadd.f32 %v4014, %v4129
      %v4161 = vadd.f32 %v4015, %v4132
      %v4162 = vadd.f32 %v4016, %v4135
      %v4163 = vadd.f32 %v4017, %v4138
      %v4164 = vadd.f32 %v4018, %v4141
      %v4165 = vadd.f32 %v4019, %v4144
      %v4166 = vadd.f32 %v4020, %v4147
      %v4167 = vadd.f32 %v4021, %v4150
      %s4168 = scalar_lea.vmem %s4, 256
      %v4169 = vld [vmem:[%s4168] sm:$0xff]
      %v4170 = vld [vmem:[%s4168 + $0x8] sm:$0xff]
      %v4171 = vld [vmem:[%s4168 + $0x10] sm:$0xff]
      %v4172 = vld [vmem:[%s4168 + $0x18] sm:$0xff]
      %v4173 = vld [vmem:[%s4168 + $0x20] sm:$0xff]
      %v4174 = vld [vmem:[%s4168 + $0x28] sm:$0xff]
      %v4175 = vld [vmem:[%s4168 + $0x30] sm:$0xff]
      %v4176 = vld [vmem:[%s4168 + $0x38] sm:$0xff]
      %v4177 = vld [vmem:[%s4168 + $0x40] sm:$0xff]
      %v4178 = vld [vmem:[%s4168 + $0x48] sm:$0xff]
      %v4179 = vld [vmem:[%s4168 + $0x50] sm:$0xff]
      %v4180 = vld [vmem:[%s4168 + $0x58] sm:$0xff]
      %v4181 = vld [vmem:[%s4168 + $0x60] sm:$0xff]
      %v4182 = vld [vmem:[%s4168 + $0x68] sm:$0xff]
      %v4183 = vld [vmem:[%s4168 + $0x70] sm:$0xff]
      %v4184 = vld [vmem:[%s4168 + $0x78] sm:$0xff]
      %4186 = vset.pattern.permute.xlu0 0
      %4187 = vperm.xlu0 %4186, %v4169
      %v4188 = vpop.permute.xlu0 %4187
      %4191 = vset.pattern.permute.xlu0 0
      %4192 = vperm.xlu0 %4191, %v4170
      %v4193 = vpop.permute.xlu0 %4192
      %4196 = vset.pattern.permute.xlu0 0
      %4197 = vperm.xlu0 %4196, %v4171
      %v4198 = vpop.permute.xlu0 %4197
      %4201 = vset.pattern.permute.xlu0 0
      %4202 = vperm.xlu0 %4201, %v4172
      %v4203 = vpop.permute.xlu0 %4202
      %4206 = vset.pattern.permute.xlu0 0
      %4207 = vperm.xlu0 %4206, %v4173
      %v4208 = vpop.permute.xlu0 %4207
      %4211 = vset.pattern.permute.xlu0 0
      %4212 = vperm.xlu0 %4211, %v4174
      %v4213 = vpop.permute.xlu0 %4212
      %4216 = vset.pattern.permute.xlu0 0
      %4217 = vperm.xlu0 %4216, %v4175
      %v4218 = vpop.permute.xlu0 %4217
      %4221 = vset.pattern.permute.xlu0 0
      %4222 = vperm.xlu0 %4221, %v4176
      %v4223 = vpop.permute.xlu0 %4222
      %4226 = vset.pattern.permute.xlu0 0
      %4227 = vperm.xlu0 %4226, %v4177
      %v4228 = vpop.permute.xlu0 %4227
      %4231 = vset.pattern.permute.xlu0 0
      %4232 = vperm.xlu0 %4231, %v4178
      %v4233 = vpop.permute.xlu0 %4232
      %4236 = vset.pattern.permute.xlu0 0
      %4237 = vperm.xlu0 %4236, %v4179
      %v4238 = vpop.permute.xlu0 %4237
      %4241 = vset.pattern.permute.xlu0 0
      %4242 = vperm.xlu0 %4241, %v4180
      %v4243 = vpop.permute.xlu0 %4242
      %4246 = vset.pattern.permute.xlu0 0
      %4247 = vperm.xlu0 %4246, %v4181
      %v4248 = vpop.permute.xlu0 %4247
      %4251 = vset.pattern.permute.xlu0 0
      %4252 = vperm.xlu0 %4251, %v4182
      %v4253 = vpop.permute.xlu0 %4252
      %4256 = vset.pattern.permute.xlu0 0
      %4257 = vperm.xlu0 %4256, %v4183
      %v4258 = vpop.permute.xlu0 %4257
      %4261 = vset.pattern.permute.xlu0 0
      %4262 = vperm.xlu0 %4261, %v4184
      %v4263 = vpop.permute.xlu0 %4262
      %v4265 = vadd.f32 %v4152, %v4188
      %v4266 = vadd.f32 %v4153, %v4193
      %v4267 = vadd.f32 %v4154, %v4198
      %v4268 = vadd.f32 %v4155, %v4203
      %v4269 = vadd.f32 %v4156, %v4208
      %v4270 = vadd.f32 %v4157, %v4213
      %v4271 = vadd.f32 %v4158, %v4218
      %v4272 = vadd.f32 %v4159, %v4223
      %v4273 = vadd.f32 %v4160, %v4228
      %v4274 = vadd.f32 %v4161, %v4233
      %v4275 = vadd.f32 %v4162, %v4238
      %v4276 = vadd.f32 %v4163, %v4243
      %v4277 = vadd.f32 %v4164, %v4248
      %v4278 = vadd.f32 %v4165, %v4253
      %v4279 = vadd.f32 %v4166, %v4258
      %v4280 = vadd.f32 %v4167, %v4263
      %vm4281 = vcmp.gt.f32.partialorder %v4265, 0.0
      %vm4282 = vcmp.gt.f32.partialorder %v4266, 0.0
      %vm4283 = vcmp.gt.f32.partialorder %v4267, 0.0
      %vm4284 = vcmp.gt.f32.partialorder %v4268, 0.0
      %vm4285 = vcmp.gt.f32.partialorder %v4269, 0.0
      %vm4286 = vcmp.gt.f32.partialorder %v4270, 0.0
      %vm4287 = vcmp.gt.f32.partialorder %v4271, 0.0
      %vm4288 = vcmp.gt.f32.partialorder %v4272, 0.0
      %vm4289 = vcmp.gt.f32.partialorder %v4273, 0.0
      %vm4290 = vcmp.gt.f32.partialorder %v4274, 0.0
      %vm4291 = vcmp.gt.f32.partialorder %v4275, 0.0
      %vm4292 = vcmp.gt.f32.partialorder %v4276, 0.0
      %vm4293 = vcmp.gt.f32.partialorder %v4277, 0.0
      %vm4294 = vcmp.gt.f32.partialorder %v4278, 0.0
      %vm4295 = vcmp.gt.f32.partialorder %v4279, 0.0
      %vm4296 = vcmp.gt.f32.partialorder %v4280, 0.0
      %v4297 = vmul.f32 %v4265, 0.01
      %v4298 = vmul.f32 %v4266, 0.01
      %v4299 = vmul.f32 %v4267, 0.01
      %v4300 = vmul.f32 %v4268, 0.01
      %v4301 = vmul.f32 %v4269, 0.01
      %v4302 = vmul.f32 %v4270, 0.01
      %v4303 = vmul.f32 %v4271, 0.01
      %v4304 = vmul.f32 %v4272, 0.01
      %v4305 = vmul.f32 %v4273, 0.01
      %v4306 = vmul.f32 %v4274, 0.01
      %v4307 = vmul.f32 %v4275, 0.01
      %v4308 = vmul.f32 %v4276, 0.01
      %v4309 = vmul.f32 %v4277, 0.01
      %v4310 = vmul.f32 %v4278, 0.01
      %v4311 = vmul.f32 %v4279, 0.01
      %v4312 = vmul.f32 %v4280, 0.01
      %v4313 = vsel %vm4281, %v4265, %v4297
      %v4314 = vsel %vm4282, %v4266, %v4298
      %v4315 = vsel %vm4283, %v4267, %v4299
      %v4316 = vsel %vm4284, %v4268, %v4300
      %v4317 = vsel %vm4285, %v4269, %v4301
      %v4318 = vsel %vm4286, %v4270, %v4302
      %v4319 = vsel %vm4287, %v4271, %v4303
      %v4320 = vsel %vm4288, %v4272, %v4304
      %v4321 = vsel %vm4289, %v4273, %v4305
      %v4322 = vsel %vm4290, %v4274, %v4306
      %v4323 = vsel %vm4291, %v4275, %v4307
      %v4324 = vsel %vm4292, %v4276, %v4308
      %v4325 = vsel %vm4293, %v4277, %v4309
      %v4326 = vsel %vm4294, %v4278, %v4310
      %v4327 = vsel %vm4295, %v4279, %v4311
      %v4328 = vsel %vm4296, %v4280, %v4312
      %s4329 = scalar_lea.vmem %s5, 256
      %v4330 = vld [vmem:[%s4329] sm:$0xff]
      %v4331 = vld [vmem:[%s4329 + $0x8] sm:$0xff]
      %v4332 = vld [vmem:[%s4329 + $0x10] sm:$0xff]
      %v4333 = vld [vmem:[%s4329 + $0x18] sm:$0xff]
      %v4334 = vld [vmem:[%s4329 + $0x20] sm:$0xff]
      %v4335 = vld [vmem:[%s4329 + $0x28] sm:$0xff]
      %v4336 = vld [vmem:[%s4329 + $0x30] sm:$0xff]
      %v4337 = vld [vmem:[%s4329 + $0x38] sm:$0xff]
      %v4338 = vld [vmem:[%s4329 + $0x40] sm:$0xff]
      %v4339 = vld [vmem:[%s4329 + $0x48] sm:$0xff]
      %v4340 = vld [vmem:[%s4329 + $0x50] sm:$0xff]
      %v4341 = vld [vmem:[%s4329 + $0x58] sm:$0xff]
      %v4342 = vld [vmem:[%s4329 + $0x60] sm:$0xff]
      %v4343 = vld [vmem:[%s4329 + $0x68] sm:$0xff]
      %v4344 = vld [vmem:[%s4329 + $0x70] sm:$0xff]
      %v4345 = vld [vmem:[%s4329 + $0x78] sm:$0xff]
      %v4346 = vmul.f32 %v4313, %v4313
      %v4347 = vmul.f32 %v4314, %v4314
      %v4348 = vmul.f32 %v4315, %v4315
      %v4349 = vmul.f32 %v4316, %v4316
      %v4350 = vmul.f32 %v4317, %v4317
      %v4351 = vmul.f32 %v4318, %v4318
      %v4352 = vmul.f32 %v4319, %v4319
      %v4353 = vmul.f32 %v4320, %v4320
      %v4354 = vmul.f32 %v4321, %v4321
      %v4355 = vmul.f32 %v4322, %v4322
      %v4356 = vmul.f32 %v4323, %v4323
      %v4357 = vmul.f32 %v4324, %v4324
      %v4358 = vmul.f32 %v4325, %v4325
      %v4359 = vmul.f32 %v4326, %v4326
      %v4360 = vmul.f32 %v4327, %v4327
      %v4361 = vmul.f32 %v4328, %v4328
      %s4362 = scalar_lea.vmem %s6, 256
      %v4363 = vld [vmem:[%s4362] sm:$0xff]
      %v4364 = vld [vmem:[%s4362 + $0x8] sm:$0xff]
      %v4365 = vld [vmem:[%s4362 + $0x10] sm:$0xff]
      %v4366 = vld [vmem:[%s4362 + $0x18] sm:$0xff]
      %v4367 = vld [vmem:[%s4362 + $0x20] sm:$0xff]
      %v4368 = vld [vmem:[%s4362 + $0x28] sm:$0xff]
      %v4369 = vld [vmem:[%s4362 + $0x30] sm:$0xff]
      %v4370 = vld [vmem:[%s4362 + $0x38] sm:$0xff]
      %v4371 = vld [vmem:[%s4362 + $0x40] sm:$0xff]
      %v4372 = vld [vmem:[%s4362 + $0x48] sm:$0xff]
      %v4373 = vld [vmem:[%s4362 + $0x50] sm:$0xff]
      %v4374 = vld [vmem:[%s4362 + $0x58] sm:$0xff]
      %v4375 = vld [vmem:[%s4362 + $0x60] sm:$0xff]
      %v4376 = vld [vmem:[%s4362 + $0x68] sm:$0xff]
      %v4377 = vld [vmem:[%s4362 + $0x70] sm:$0xff]
      %v4378 = vld [vmem:[%s4362 + $0x78] sm:$0xff]
      %4380 = vset.pattern.permute.xlu0 0
      %4381 = vperm.xlu0 %4380, %v4363
      %v4382 = vpop.permute.xlu0 %4381
      %4385 = vset.pattern.permute.xlu0 0
      %4386 = vperm.xlu0 %4385, %v4364
      %v4387 = vpop.permute.xlu0 %4386
      %4390 = vset.pattern.permute.xlu0 0
      %4391 = vperm.xlu0 %4390, %v4365
      %v4392 = vpop.permute.xlu0 %4391
      %4395 = vset.pattern.permute.xlu0 0
      %4396 = vperm.xlu0 %4395, %v4366
      %v4397 = vpop.permute.xlu0 %4396
      %4400 = vset.pattern.permute.xlu0 0
      %4401 = vperm.xlu0 %4400, %v4367
      %v4402 = vpop.permute.xlu0 %4401
      %4405 = vset.pattern.permute.xlu0 0
      %4406 = vperm.xlu0 %4405, %v4368
      %v4407 = vpop.permute.xlu0 %4406
      %4410 = vset.pattern.permute.xlu0 0
      %4411 = vperm.xlu0 %4410, %v4369
      %v4412 = vpop.permute.xlu0 %4411
      %4415 = vset.pattern.permute.xlu0 0
      %4416 = vperm.xlu0 %4415, %v4370
      %v4417 = vpop.permute.xlu0 %4416
      %4420 = vset.pattern.permute.xlu0 0
      %4421 = vperm.xlu0 %4420, %v4371
      %v4422 = vpop.permute.xlu0 %4421
      %4425 = vset.pattern.permute.xlu0 0
      %4426 = vperm.xlu0 %4425, %v4372
      %v4427 = vpop.permute.xlu0 %4426
      %4430 = vset.pattern.permute.xlu0 0
      %4431 = vperm.xlu0 %4430, %v4373
      %v4432 = vpop.permute.xlu0 %4431
      %4435 = vset.pattern.permute.xlu0 0
      %4436 = vperm.xlu0 %4435, %v4374
      %v4437 = vpop.permute.xlu0 %4436
      %4440 = vset.pattern.permute.xlu0 0
      %4441 = vperm.xlu0 %4440, %v4375
      %v4442 = vpop.permute.xlu0 %4441
      %4445 = vset.pattern.permute.xlu0 0
      %4446 = vperm.xlu0 %4445, %v4376
      %v4447 = vpop.permute.xlu0 %4446
      %4450 = vset.pattern.permute.xlu0 0
      %4451 = vperm.xlu0 %4450, %v4377
      %v4452 = vpop.permute.xlu0 %4451
      %4455 = vset.pattern.permute.xlu0 0
      %4456 = vperm.xlu0 %4455, %v4378
      %v4457 = vpop.permute.xlu0 %4456
      %4459 = vmatpush.msra.mxu0 %v4361
      %4460 = vmatpush.msra.mxu0 %v4360
      %4461 = vmatpush.msra.mxu0 %v4359
      %4462 = vmatpush.msra.mxu0 %v4358
      %4463 = vmatpush.msra.mxu0 %v4357
      %4464 = vmatpush.msra.mxu0 %v4356
      %4465 = vmatpush.msra.mxu0 %v4355
      %4466 = vmatpush.msra.mxu0 %v4354
      %4467 = vmatpush.msra.mxu0 %v4353
      %4468 = vmatpush.msra.mxu0 %v4352
      %4469 = vmatpush.msra.mxu0 %v4351
      %4470 = vmatpush.msra.mxu0 %v4350
      %4471 = vmatpush.msra.mxu0 %v4349
      %4472 = vmatpush.msra.mxu0 %v4348
      %4473 = vmatpush.msra.mxu0 %v4347
      %4474 = vmatpush.msra.mxu0 %v4346
      %4475 = vmatmul.f32.gmra.mxu0 %v4330
      %v4476 = vpop.f32.mrf.mxu0
      %v4477 = vadd.f32 %v4382, %v4476
      %4478 = vmatmul.f32.gmra.mxu0 %v4331
      %v4479 = vpop.f32.mrf.mxu0
      %v4480 = vadd.f32 %v4387, %v4479
      %4481 = vmatmul.f32.gmra.mxu0 %v4332
      %v4482 = vpop.f32.mrf.mxu0
      %v4483 = vadd.f32 %v4392, %v4482
      %4484 = vmatmul.f32.gmra.mxu0 %v4333
      %v4485 = vpop.f32.mrf.mxu0
      %v4486 = vadd.f32 %v4397, %v4485
      %4487 = vmatmul.f32.gmra.mxu0 %v4334
      %v4488 = vpop.f32.mrf.mxu0
      %v4489 = vadd.f32 %v4402, %v4488
      %4490 = vmatmul.f32.gmra.mxu0 %v4335
      %v4491 = vpop.f32.mrf.mxu0
      %v4492 = vadd.f32 %v4407, %v4491
      %4493 = vmatmul.f32.gmra.mxu0 %v4336
      %v4494 = vpop.f32.mrf.mxu0
      %v4495 = vadd.f32 %v4412, %v4494
      %4496 = vmatmul.f32.gmra.mxu0 %v4337
      %v4497 = vpop.f32.mrf.mxu0
      %v4498 = vadd.f32 %v4417, %v4497
      %4499 = vmatmul.f32.gmra.mxu0 %v4338
      %v4500 = vpop.f32.mrf.mxu0
      %v4501 = vadd.f32 %v4422, %v4500
      %4502 = vmatmul.f32.gmra.mxu0 %v4339
      %v4503 = vpop.f32.mrf.mxu0
      %v4504 = vadd.f32 %v4427, %v4503
      %4505 = vmatmul.f32.gmra.mxu0 %v4340
      %v4506 = vpop.f32.mrf.mxu0
      %v4507 = vadd.f32 %v4432, %v4506
      %4508 = vmatmul.f32.gmra.mxu0 %v4341
      %v4509 = vpop.f32.mrf.mxu0
      %v4510 = vadd.f32 %v4437, %v4509
      %4511 = vmatmul.f32.gmra.mxu0 %v4342
      %v4512 = vpop.f32.mrf.mxu0
      %v4513 = vadd.f32 %v4442, %v4512
      %4514 = vmatmul.f32.gmra.mxu0 %v4343
      %v4515 = vpop.f32.mrf.mxu0
      %v4516 = vadd.f32 %v4447, %v4515
      %4517 = vmatmul.f32.gmra.mxu0 %v4344
      %v4518 = vpop.f32.mrf.mxu0
      %v4519 = vadd.f32 %v4452, %v4518
      %4520 = vmatmul.f32.gmra.mxu0 %v4345
      %v4521 = vpop.f32.mrf.mxu0
      %v4522 = vadd.f32 %v4457, %v4521
      %4523 = vdwg.mxu0
      %v4524 = vrsqrt.pop %v4477
      %v4525 = vmul.f32 %v4524, %v4477
      %v4526 = vmul.f32 %v4525, %v4524
      %v4527 = vmul.f32 0.5, %v4526
      %v4528 = vsub.f32 1.5, %v4527
      %v4529 = vmul.f32 %v4524, %v4528
      %vm4530 = vweird.f32 %v4477
      %vm4531 = vweird.f32 %v4524
      %vm4532 = vmor %vm4530, %vm4531
      %v4533 = vsel %vm4532, %v4524, %v4529
      %v4534 = vrsqrt.pop %v4480
      %v4535 = vmul.f32 %v4534, %v4480
      %v4536 = vmul.f32 %v4535, %v4534
      %v4537 = vmul.f32 0.5, %v4536
      %v4538 = vsub.f32 1.5, %v4537
      %v4539 = vmul.f32 %v4534, %v4538
      %vm4540 = vweird.f32 %v4480
      %vm4541 = vweird.f32 %v4534
      %vm4542 = vmor %vm4540, %vm4541
      %v4543 = vsel %vm4542, %v4534, %v4539
      %v4544 = vrsqrt.pop %v4483
      %v4545 = vmul.f32 %v4544, %v4483
      %v4546 = vmul.f32 %v4545, %v4544
      %v4547 = vmul.f32 0.5, %v4546
      %v4548 = vsub.f32 1.5, %v4547
      %v4549 = vmul.f32 %v4544, %v4548
      %vm4550 = vweird.f32 %v4483
      %vm4551 = vweird.f32 %v4544
      %vm4552 = vmor %vm4550, %vm4551
      %v4553 = vsel %vm4552, %v4544, %v4549
      %v4554 = vrsqrt.pop %v4486
      %v4555 = vmul.f32 %v4554, %v4486
      %v4556 = vmul.f32 %v4555, %v4554
      %v4557 = vmul.f32 0.5, %v4556
      %v4558 = vsub.f32 1.5, %v4557
      %v4559 = vmul.f32 %v4554, %v4558
      %vm4560 = vweird.f32 %v4486
      %vm4561 = vweird.f32 %v4554
      %vm4562 = vmor %vm4560, %vm4561
      %v4563 = vsel %vm4562, %v4554, %v4559
      %v4564 = vrsqrt.pop %v4489
      %v4565 = vmul.f32 %v4564, %v4489
      %v4566 = vmul.f32 %v4565, %v4564
      %v4567 = vmul.f32 0.5, %v4566
      %v4568 = vsub.f32 1.5, %v4567
      %v4569 = vmul.f32 %v4564, %v4568
      %vm4570 = vweird.f32 %v4489
      %vm4571 = vweird.f32 %v4564
      %vm4572 = vmor %vm4570, %vm4571
      %v4573 = vsel %vm4572, %v4564, %v4569
      %v4574 = vrsqrt.pop %v4492
      %v4575 = vmul.f32 %v4574, %v4492
      %v4576 = vmul.f32 %v4575, %v4574
      %v4577 = vmul.f32 0.5, %v4576
      %v4578 = vsub.f32 1.5, %v4577
      %v4579 = vmul.f32 %v4574, %v4578
      %vm4580 = vweird.f32 %v4492
      %vm4581 = vweird.f32 %v4574
      %vm4582 = vmor %vm4580, %vm4581
      %v4583 = vsel %vm4582, %v4574, %v4579
      %v4584 = vrsqrt.pop %v4495
      %v4585 = vmul.f32 %v4584, %v4495
      %v4586 = vmul.f32 %v4585, %v4584
      %v4587 = vmul.f32 0.5, %v4586
      %v4588 = vsub.f32 1.5, %v4587
      %v4589 = vmul.f32 %v4584, %v4588
      %vm4590 = vweird.f32 %v4495
      %vm4591 = vweird.f32 %v4584
      %vm4592 = vmor %vm4590, %vm4591
      %v4593 = vsel %vm4592, %v4584, %v4589
      %v4594 = vrsqrt.pop %v4498
      %v4595 = vmul.f32 %v4594, %v4498
      %v4596 = vmul.f32 %v4595, %v4594
      %v4597 = vmul.f32 0.5, %v4596
      %v4598 = vsub.f32 1.5, %v4597
      %v4599 = vmul.f32 %v4594, %v4598
      %vm4600 = vweird.f32 %v4498
      %vm4601 = vweird.f32 %v4594
      %vm4602 = vmor %vm4600, %vm4601
      %v4603 = vsel %vm4602, %v4594, %v4599
      %v4604 = vrsqrt.pop %v4501
      %v4605 = vmul.f32 %v4604, %v4501
      %v4606 = vmul.f32 %v4605, %v4604
      %v4607 = vmul.f32 0.5, %v4606
      %v4608 = vsub.f32 1.5, %v4607
      %v4609 = vmul.f32 %v4604, %v4608
      %vm4610 = vweird.f32 %v4501
      %vm4611 = vweird.f32 %v4604
      %vm4612 = vmor %vm4610, %vm4611
      %v4613 = vsel %vm4612, %v4604, %v4609
      %v4614 = vrsqrt.pop %v4504
      %v4615 = vmul.f32 %v4614, %v4504
      %v4616 = vmul.f32 %v4615, %v4614
      %v4617 = vmul.f32 0.5, %v4616
      %v4618 = vsub.f32 1.5, %v4617
      %v4619 = vmul.f32 %v4614, %v4618
      %vm4620 = vweird.f32 %v4504
      %vm4621 = vweird.f32 %v4614
      %vm4622 = vmor %vm4620, %vm4621
      %v4623 = vsel %vm4622, %v4614, %v4619
      %v4624 = vrsqrt.pop %v4507
      %v4625 = vmul.f32 %v4624, %v4507
      %v4626 = vmul.f32 %v4625, %v4624
      %v4627 = vmul.f32 0.5, %v4626
      %v4628 = vsub.f32 1.5, %v4627
      %v4629 = vmul.f32 %v4624, %v4628
      %vm4630 = vweird.f32 %v4507
      %vm4631 = vweird.f32 %v4624
      %vm4632 = vmor %vm4630, %vm4631
      %v4633 = vsel %vm4632, %v4624, %v4629
      %v4634 = vrsqrt.pop %v4510
      %v4635 = vmul.f32 %v4634, %v4510
      %v4636 = vmul.f32 %v4635, %v4634
      %v4637 = vmul.f32 0.5, %v4636
      %v4638 = vsub.f32 1.5, %v4637
      %v4639 = vmul.f32 %v4634, %v4638
      %vm4640 = vweird.f32 %v4510
      %vm4641 = vweird.f32 %v4634
      %vm4642 = vmor %vm4640, %vm4641
      %v4643 = vsel %vm4642, %v4634, %v4639
      %v4644 = vrsqrt.pop %v4513
      %v4645 = vmul.f32 %v4644, %v4513
      %v4646 = vmul.f32 %v4645, %v4644
      %v4647 = vmul.f32 0.5, %v4646
      %v4648 = vsub.f32 1.5, %v4647
      %v4649 = vmul.f32 %v4644, %v4648
      %vm4650 = vweird.f32 %v4513
      %vm4651 = vweird.f32 %v4644
      %vm4652 = vmor %vm4650, %vm4651
      %v4653 = vsel %vm4652, %v4644, %v4649
      %v4654 = vrsqrt.pop %v4516
      %v4655 = vmul.f32 %v4654, %v4516
      %v4656 = vmul.f32 %v4655, %v4654
      %v4657 = vmul.f32 0.5, %v4656
      %v4658 = vsub.f32 1.5, %v4657
      %v4659 = vmul.f32 %v4654, %v4658
      %vm4660 = vweird.f32 %v4516
      %vm4661 = vweird.f32 %v4654
      %vm4662 = vmor %vm4660, %vm4661
      %v4663 = vsel %vm4662, %v4654, %v4659
      %v4664 = vrsqrt.pop %v4519
      %v4665 = vmul.f32 %v4664, %v4519
      %v4666 = vmul.f32 %v4665, %v4664
      %v4667 = vmul.f32 0.5, %v4666
      %v4668 = vsub.f32 1.5, %v4667
      %v4669 = vmul.f32 %v4664, %v4668
      %vm4670 = vweird.f32 %v4519
      %vm4671 = vweird.f32 %v4664
      %vm4672 = vmor %vm4670, %vm4671
      %v4673 = vsel %vm4672, %v4664, %v4669
      %v4674 = vrsqrt.pop %v4522
      %v4675 = vmul.f32 %v4674, %v4522
      %v4676 = vmul.f32 %v4675, %v4674
      %v4677 = vmul.f32 0.5, %v4676
      %v4678 = vsub.f32 1.5, %v4677
      %v4679 = vmul.f32 %v4674, %v4678
      %vm4680 = vweird.f32 %v4522
      %vm4681 = vweird.f32 %v4674
      %vm4682 = vmor %vm4680, %vm4681
      %v4683 = vsel %vm4682, %v4674, %v4679
      %v4684 = vmul.f32 %v4313, %v4533
      %v4685 = vmul.f32 %v4314, %v4543
      %v4686 = vmul.f32 %v4315, %v4553
      %v4687 = vmul.f32 %v4316, %v4563
      %v4688 = vmul.f32 %v4317, %v4573
      %v4689 = vmul.f32 %v4318, %v4583
      %v4690 = vmul.f32 %v4319, %v4593
      %v4691 = vmul.f32 %v4320, %v4603
      %v4692 = vmul.f32 %v4321, %v4613
      %v4693 = vmul.f32 %v4322, %v4623
      %v4694 = vmul.f32 %v4323, %v4633
      %v4695 = vmul.f32 %v4324, %v4643
      %v4696 = vmul.f32 %v4325, %v4653
      %v4697 = vmul.f32 %v4326, %v4663
      %v4698 = vmul.f32 %v4327, %v4673
      %v4699 = vmul.f32 %v4328, %v4683
      %s4700 = scalar_lea.vmem %s3, 1536
      %v4701 = vld [vmem:[%s4700] sm:$0xff]
      %v4702 = vld [vmem:[%s4700 + $0x8] sm:$0xff]
      %v4703 = vld [vmem:[%s4700 + $0x10] sm:$0xff]
      %v4704 = vld [vmem:[%s4700 + $0x18] sm:$0xff]
      %v4705 = vld [vmem:[%s4700 + $0x20] sm:$0xff]
      %v4706 = vld [vmem:[%s4700 + $0x28] sm:$0xff]
      %v4707 = vld [vmem:[%s4700 + $0x30] sm:$0xff]
      %v4708 = vld [vmem:[%s4700 + $0x38] sm:$0xff]
      %v4709 = vld [vmem:[%s4700 + $0x40] sm:$0xff]
      %v4710 = vld [vmem:[%s4700 + $0x48] sm:$0xff]
      %v4711 = vld [vmem:[%s4700 + $0x50] sm:$0xff]
      %v4712 = vld [vmem:[%s4700 + $0x58] sm:$0xff]
      %v4713 = vld [vmem:[%s4700 + $0x60] sm:$0xff]
      %v4714 = vld [vmem:[%s4700 + $0x68] sm:$0xff]
      %v4715 = vld [vmem:[%s4700 + $0x70] sm:$0xff]
      %v4716 = vld [vmem:[%s4700 + $0x78] sm:$0xff]
      %s4717 = scalar_lea.vmem %s3, 1664
      %v4718 = vld [vmem:[%s4717] sm:$0xff]
      %v4719 = vld [vmem:[%s4717 + $0x8] sm:$0xff]
      %v4720 = vld [vmem:[%s4717 + $0x10] sm:$0xff]
      %v4721 = vld [vmem:[%s4717 + $0x18] sm:$0xff]
      %v4722 = vld [vmem:[%s4717 + $0x20] sm:$0xff]
      %v4723 = vld [vmem:[%s4717 + $0x28] sm:$0xff]
      %v4724 = vld [vmem:[%s4717 + $0x30] sm:$0xff]
      %v4725 = vld [vmem:[%s4717 + $0x38] sm:$0xff]
      %v4726 = vld [vmem:[%s4717 + $0x40] sm:$0xff]
      %v4727 = vld [vmem:[%s4717 + $0x48] sm:$0xff]
      %v4728 = vld [vmem:[%s4717 + $0x50] sm:$0xff]
      %v4729 = vld [vmem:[%s4717 + $0x58] sm:$0xff]
      %v4730 = vld [vmem:[%s4717 + $0x60] sm:$0xff]
      %v4731 = vld [vmem:[%s4717 + $0x68] sm:$0xff]
      %v4732 = vld [vmem:[%s4717 + $0x70] sm:$0xff]
      %v4733 = vld [vmem:[%s4717 + $0x78] sm:$0xff]
      %4750 = vrot.lane.b32.xlu0 %v4684, 124
      %v4751 = vpop.permute.xlu0 %4750
      %4752 = vrot.lane.b32.xlu0 %v4685, 124
      %v4753 = vpop.permute.xlu0 %4752
      %4754 = vrot.lane.b32.xlu0 %v4686, 124
      %v4755 = vpop.permute.xlu0 %4754
      %4756 = vrot.lane.b32.xlu0 %v4687, 124
      %v4757 = vpop.permute.xlu0 %4756
      %4758 = vrot.lane.b32.xlu0 %v4688, 124
      %v4759 = vpop.permute.xlu0 %4758
      %4760 = vrot.lane.b32.xlu0 %v4689, 124
      %v4761 = vpop.permute.xlu0 %4760
      %4762 = vrot.lane.b32.xlu0 %v4690, 124
      %v4763 = vpop.permute.xlu0 %4762
      %4764 = vrot.lane.b32.xlu0 %v4691, 124
      %v4765 = vpop.permute.xlu0 %4764
      %4766 = vrot.lane.b32.xlu0 %v4692, 124
      %v4767 = vpop.permute.xlu0 %4766
      %4768 = vrot.lane.b32.xlu0 %v4693, 124
      %v4769 = vpop.permute.xlu0 %4768
      %4770 = vrot.lane.b32.xlu0 %v4694, 124
      %v4771 = vpop.permute.xlu0 %4770
      %4772 = vrot.lane.b32.xlu0 %v4695, 124
      %v4773 = vpop.permute.xlu0 %4772
      %4774 = vrot.lane.b32.xlu0 %v4696, 124
      %v4775 = vpop.permute.xlu0 %4774
      %4776 = vrot.lane.b32.xlu0 %v4697, 124
      %v4777 = vpop.permute.xlu0 %4776
      %4778 = vrot.lane.b32.xlu0 %v4698, 124
      %v4779 = vpop.permute.xlu0 %4778
      %4780 = vrot.lane.b32.xlu0 %v4699, 124
      %v4781 = vpop.permute.xlu0 %4780
      %4798 = vmatpush.msra.mxu0 %v4781
      %4799 = vmatpush.msra.mxu0 %v4779
      %4800 = vmatpush.msra.mxu0 %v4777
      %4801 = vmatpush.msra.mxu0 %v4775
      %4802 = vmatpush.msra.mxu0 %v4773
      %4803 = vmatpush.msra.mxu0 %v4771
      %4804 = vmatpush.msra.mxu0 %v4769
      %4805 = vmatpush.msra.mxu0 %v4767
      %4806 = vmatpush.msra.mxu0 %v4765
      %4807 = vmatpush.msra.mxu0 %v4763
      %4808 = vmatpush.msra.mxu0 %v4761
      %4809 = vmatpush.msra.mxu0 %v4759
      %4810 = vmatpush.msra.mxu0 %v4757
      %4811 = vmatpush.msra.mxu0 %v4755
      %4812 = vmatpush.msra.mxu0 %v4753
      %4813 = vmatpush.msra.mxu0 %v4751
      %4814 = vmatmul.f32.gmra.mxu0 %v4718
      %v4815 = vpop.f32.mrf.mxu0
      %v4816 = vadd.f32 0.0, %v4815
      %4817 = vmatmul.f32.gmra.mxu0 %v4719
      %v4818 = vpop.f32.mrf.mxu0
      %v4819 = vadd.f32 0.0, %v4818
      %4820 = vmatmul.f32.gmra.mxu0 %v4720
      %v4821 = vpop.f32.mrf.mxu0
      %v4822 = vadd.f32 0.0, %v4821
      %4823 = vmatmul.f32.gmra.mxu0 %v4721
      %v4824 = vpop.f32.mrf.mxu0
      %v4825 = vadd.f32 0.0, %v4824
      %4826 = vmatmul.f32.gmra.mxu0 %v4722
      %v4827 = vpop.f32.mrf.mxu0
      %v4828 = vadd.f32 0.0, %v4827
      %4829 = vmatmul.f32.gmra.mxu0 %v4723
      %v4830 = vpop.f32.mrf.mxu0
      %v4831 = vadd.f32 0.0, %v4830
      %4832 = vmatmul.f32.gmra.mxu0 %v4724
      %v4833 = vpop.f32.mrf.mxu0
      %v4834 = vadd.f32 0.0, %v4833
      %4835 = vmatmul.f32.gmra.mxu0 %v4725
      %v4836 = vpop.f32.mrf.mxu0
      %v4837 = vadd.f32 0.0, %v4836
      %4838 = vmatmul.f32.gmra.mxu0 %v4726
      %v4839 = vpop.f32.mrf.mxu0
      %v4840 = vadd.f32 0.0, %v4839
      %4841 = vmatmul.f32.gmra.mxu0 %v4727
      %v4842 = vpop.f32.mrf.mxu0
      %v4843 = vadd.f32 0.0, %v4842
      %4844 = vmatmul.f32.gmra.mxu0 %v4728
      %v4845 = vpop.f32.mrf.mxu0
      %v4846 = vadd.f32 0.0, %v4845
      %4847 = vmatmul.f32.gmra.mxu0 %v4729
      %v4848 = vpop.f32.mrf.mxu0
      %v4849 = vadd.f32 0.0, %v4848
      %4850 = vmatmul.f32.gmra.mxu0 %v4730
      %v4851 = vpop.f32.mrf.mxu0
      %v4852 = vadd.f32 0.0, %v4851
      %4853 = vmatmul.f32.gmra.mxu0 %v4731
      %v4854 = vpop.f32.mrf.mxu0
      %v4855 = vadd.f32 0.0, %v4854
      %4856 = vmatmul.f32.gmra.mxu0 %v4732
      %v4857 = vpop.f32.mrf.mxu0
      %v4858 = vadd.f32 0.0, %v4857
      %4859 = vmatmul.f32.gmra.mxu0 %v4733
      %v4860 = vpop.f32.mrf.mxu0
      %v4861 = vadd.f32 0.0, %v4860
      %4862 = vdwg.mxu0
      %4863 = vmatpush.msra.mxu0 %v4699
      %4864 = vmatpush.msra.mxu0 %v4698
      %4865 = vmatpush.msra.mxu0 %v4697
      %4866 = vmatpush.msra.mxu0 %v4696
      %4867 = vmatpush.msra.mxu0 %v4695
      %4868 = vmatpush.msra.mxu0 %v4694
      %4869 = vmatpush.msra.mxu0 %v4693
      %4870 = vmatpush.msra.mxu0 %v4692
      %4871 = vmatpush.msra.mxu0 %v4691
      %4872 = vmatpush.msra.mxu0 %v4690
      %4873 = vmatpush.msra.mxu0 %v4689
      %4874 = vmatpush.msra.mxu0 %v4688
      %4875 = vmatpush.msra.mxu0 %v4687
      %4876 = vmatpush.msra.mxu0 %v4686
      %4877 = vmatpush.msra.mxu0 %v4685
      %4878 = vmatpush.msra.mxu0 %v4684
      %4879 = vmatmul.f32.gmra.mxu0 %v4701
      %v4880 = vpop.f32.mrf.mxu0
      %v4881 = vadd.f32 %v4816, %v4880
      %4882 = vmatmul.f32.gmra.mxu0 %v4702
      %v4883 = vpop.f32.mrf.mxu0
      %v4884 = vadd.f32 %v4819, %v4883
      %4885 = vmatmul.f32.gmra.mxu0 %v4703
      %v4886 = vpop.f32.mrf.mxu0
      %v4887 = vadd.f32 %v4822, %v4886
      %4888 = vmatmul.f32.gmra.mxu0 %v4704
      %v4889 = vpop.f32.mrf.mxu0
      %v4890 = vadd.f32 %v4825, %v4889
      %4891 = vmatmul.f32.gmra.mxu0 %v4705
      %v4892 = vpop.f32.mrf.mxu0
      %v4893 = vadd.f32 %v4828, %v4892
      %4894 = vmatmul.f32.gmra.mxu0 %v4706
      %v4895 = vpop.f32.mrf.mxu0
      %v4896 = vadd.f32 %v4831, %v4895
      %4897 = vmatmul.f32.gmra.mxu0 %v4707
      %v4898 = vpop.f32.mrf.mxu0
      %v4899 = vadd.f32 %v4834, %v4898
      %4900 = vmatmul.f32.gmra.mxu0 %v4708
      %v4901 = vpop.f32.mrf.mxu0
      %v4902 = vadd.f32 %v4837, %v4901
      %4903 = vmatmul.f32.gmra.mxu0 %v4709
      %v4904 = vpop.f32.mrf.mxu0
      %v4905 = vadd.f32 %v4840, %v4904
      %4906 = vmatmul.f32.gmra.mxu0 %v4710
      %v4907 = vpop.f32.mrf.mxu0
      %v4908 = vadd.f32 %v4843, %v4907
      %4909 = vmatmul.f32.gmra.mxu0 %v4711
      %v4910 = vpop.f32.mrf.mxu0
      %v4911 = vadd.f32 %v4846, %v4910
      %4912 = vmatmul.f32.gmra.mxu0 %v4712
      %v4913 = vpop.f32.mrf.mxu0
      %v4914 = vadd.f32 %v4849, %v4913
      %4915 = vmatmul.f32.gmra.mxu0 %v4713
      %v4916 = vpop.f32.mrf.mxu0
      %v4917 = vadd.f32 %v4852, %v4916
      %4918 = vmatmul.f32.gmra.mxu0 %v4714
      %v4919 = vpop.f32.mrf.mxu0
      %v4920 = vadd.f32 %v4855, %v4919
      %4921 = vmatmul.f32.gmra.mxu0 %v4715
      %v4922 = vpop.f32.mrf.mxu0
      %v4923 = vadd.f32 %v4858, %v4922
      %4924 = vmatmul.f32.gmra.mxu0 %v4716
      %v4925 = vpop.f32.mrf.mxu0
      %v4926 = vadd.f32 %v4861, %v4925
      %4927 = vdwg.mxu0
      %s4928 = scalar_lea.vmem %s3, 1792
      %v4929 = vld [vmem:[%s4928] sm:$0xff]
      %v4930 = vld [vmem:[%s4928 + $0x8] sm:$0xff]
      %v4931 = vld [vmem:[%s4928 + $0x10] sm:$0xff]
      %v4932 = vld [vmem:[%s4928 + $0x18] sm:$0xff]
      %v4933 = vld [vmem:[%s4928 + $0x20] sm:$0xff]
      %v4934 = vld [vmem:[%s4928 + $0x28] sm:$0xff]
      %v4935 = vld [vmem:[%s4928 + $0x30] sm:$0xff]
      %v4936 = vld [vmem:[%s4928 + $0x38] sm:$0xff]
      %v4937 = vld [vmem:[%s4928 + $0x40] sm:$0xff]
      %v4938 = vld [vmem:[%s4928 + $0x48] sm:$0xff]
      %v4939 = vld [vmem:[%s4928 + $0x50] sm:$0xff]
      %v4940 = vld [vmem:[%s4928 + $0x58] sm:$0xff]
      %v4941 = vld [vmem:[%s4928 + $0x60] sm:$0xff]
      %v4942 = vld [vmem:[%s4928 + $0x68] sm:$0xff]
      %v4943 = vld [vmem:[%s4928 + $0x70] sm:$0xff]
      %v4944 = vld [vmem:[%s4928 + $0x78] sm:$0xff]
      %4945 = vrot.lane.b32.xlu0 %v4684, 120
      %v4946 = vpop.permute.xlu0 %4945
      %4947 = vrot.lane.b32.xlu0 %v4685, 120
      %v4948 = vpop.permute.xlu0 %4947
      %4949 = vrot.lane.b32.xlu0 %v4686, 120
      %v4950 = vpop.permute.xlu0 %4949
      %4951 = vrot.lane.b32.xlu0 %v4687, 120
      %v4952 = vpop.permute.xlu0 %4951
      %4953 = vrot.lane.b32.xlu0 %v4688, 120
      %v4954 = vpop.permute.xlu0 %4953
      %4955 = vrot.lane.b32.xlu0 %v4689, 120
      %v4956 = vpop.permute.xlu0 %4955
      %4957 = vrot.lane.b32.xlu0 %v4690, 120
      %v4958 = vpop.permute.xlu0 %4957
      %4959 = vrot.lane.b32.xlu0 %v4691, 120
      %v4960 = vpop.permute.xlu0 %4959
      %4961 = vrot.lane.b32.xlu0 %v4692, 120
      %v4962 = vpop.permute.xlu0 %4961
      %4963 = vrot.lane.b32.xlu0 %v4693, 120
      %v4964 = vpop.permute.xlu0 %4963
      %4965 = vrot.lane.b32.xlu0 %v4694, 120
      %v4966 = vpop.permute.xlu0 %4965
      %4967 = vrot.lane.b32.xlu0 %v4695, 120
      %v4968 = vpop.permute.xlu0 %4967
      %4969 = vrot.lane.b32.xlu0 %v4696, 120
      %v4970 = vpop.permute.xlu0 %4969
      %4971 = vrot.lane.b32.xlu0 %v4697, 120
      %v4972 = vpop.permute.xlu0 %4971
      %4973 = vrot.lane.b32.xlu0 %v4698, 120
      %v4974 = vpop.permute.xlu0 %4973
      %4975 = vrot.lane.b32.xlu0 %v4699, 120
      %v4976 = vpop.permute.xlu0 %4975
      %4993 = vmatpush.msra.mxu0 %v4976
      %4994 = vmatpush.msra.mxu0 %v4974
      %4995 = vmatpush.msra.mxu0 %v4972
      %4996 = vmatpush.msra.mxu0 %v4970
      %4997 = vmatpush.msra.mxu0 %v4968
      %4998 = vmatpush.msra.mxu0 %v4966
      %4999 = vmatpush.msra.mxu0 %v4964
      %5000 = vmatpush.msra.mxu0 %v4962
      %5001 = vmatpush.msra.mxu0 %v4960
      %5002 = vmatpush.msra.mxu0 %v4958
      %5003 = vmatpush.msra.mxu0 %v4956
      %5004 = vmatpush.msra.mxu0 %v4954
      %5005 = vmatpush.msra.mxu0 %v4952
      %5006 = vmatpush.msra.mxu0 %v4950
      %5007 = vmatpush.msra.mxu0 %v4948
      %5008 = vmatpush.msra.mxu0 %v4946
      %5009 = vmatmul.f32.gmra.mxu0 %v4929
      %v5010 = vpop.f32.mrf.mxu0
      %v5011 = vadd.f32 0.0, %v5010
      %5012 = vmatmul.f32.gmra.mxu0 %v4930
      %v5013 = vpop.f32.mrf.mxu0
      %v5014 = vadd.f32 0.0, %v5013
      %5015 = vmatmul.f32.gmra.mxu0 %v4931
      %v5016 = vpop.f32.mrf.mxu0
      %v5017 = vadd.f32 0.0, %v5016
      %5018 = vmatmul.f32.gmra.mxu0 %v4932
      %v5019 = vpop.f32.mrf.mxu0
      %v5020 = vadd.f32 0.0, %v5019
      %5021 = vmatmul.f32.gmra.mxu0 %v4933
      %v5022 = vpop.f32.mrf.mxu0
      %v5023 = vadd.f32 0.0, %v5022
      %5024 = vmatmul.f32.gmra.mxu0 %v4934
      %v5025 = vpop.f32.mrf.mxu0
      %v5026 = vadd.f32 0.0, %v5025
      %5027 = vmatmul.f32.gmra.mxu0 %v4935
      %v5028 = vpop.f32.mrf.mxu0
      %v5029 = vadd.f32 0.0, %v5028
      %5030 = vmatmul.f32.gmra.mxu0 %v4936
      %v5031 = vpop.f32.mrf.mxu0
      %v5032 = vadd.f32 0.0, %v5031
      %5033 = vmatmul.f32.gmra.mxu0 %v4937
      %v5034 = vpop.f32.mrf.mxu0
      %v5035 = vadd.f32 0.0, %v5034
      %5036 = vmatmul.f32.gmra.mxu0 %v4938
      %v5037 = vpop.f32.mrf.mxu0
      %v5038 = vadd.f32 0.0, %v5037
      %5039 = vmatmul.f32.gmra.mxu0 %v4939
      %v5040 = vpop.f32.mrf.mxu0
      %v5041 = vadd.f32 0.0, %v5040
      %5042 = vmatmul.f32.gmra.mxu0 %v4940
      %v5043 = vpop.f32.mrf.mxu0
      %v5044 = vadd.f32 0.0, %v5043
      %5045 = vmatmul.f32.gmra.mxu0 %v4941
      %v5046 = vpop.f32.mrf.mxu0
      %v5047 = vadd.f32 0.0, %v5046
      %5048 = vmatmul.f32.gmra.mxu0 %v4942
      %v5049 = vpop.f32.mrf.mxu0
      %v5050 = vadd.f32 0.0, %v5049
      %5051 = vmatmul.f32.gmra.mxu0 %v4943
      %v5052 = vpop.f32.mrf.mxu0
      %v5053 = vadd.f32 0.0, %v5052
      %5054 = vmatmul.f32.gmra.mxu0 %v4944
      %v5055 = vpop.f32.mrf.mxu0
      %v5056 = vadd.f32 0.0, %v5055
      %5057 = vdwg.mxu0
      %v5058 = vadd.f32 %v4881, %v5011
      %v5059 = vadd.f32 %v4884, %v5014
      %v5060 = vadd.f32 %v4887, %v5017
      %v5061 = vadd.f32 %v4890, %v5020
      %v5062 = vadd.f32 %v4893, %v5023
      %v5063 = vadd.f32 %v4896, %v5026
      %v5064 = vadd.f32 %v4899, %v5029
      %v5065 = vadd.f32 %v4902, %v5032
      %v5066 = vadd.f32 %v4905, %v5035
      %v5067 = vadd.f32 %v4908, %v5038
      %v5068 = vadd.f32 %v4911, %v5041
      %v5069 = vadd.f32 %v4914, %v5044
      %v5070 = vadd.f32 %v4917, %v5047
      %v5071 = vadd.f32 %v4920, %v5050
      %v5072 = vadd.f32 %v4923, %v5053
      %v5073 = vadd.f32 %v4926, %v5056
      %s5074 = scalar_lea.vmem %s3, 1920
      %v5075 = vld [vmem:[%s5074] sm:$0xff]
      %v5076 = vld [vmem:[%s5074 + $0x8] sm:$0xff]
      %v5077 = vld [vmem:[%s5074 + $0x10] sm:$0xff]
      %v5078 = vld [vmem:[%s5074 + $0x18] sm:$0xff]
      %v5079 = vld [vmem:[%s5074 + $0x20] sm:$0xff]
      %v5080 = vld [vmem:[%s5074 + $0x28] sm:$0xff]
      %v5081 = vld [vmem:[%s5074 + $0x30] sm:$0xff]
      %v5082 = vld [vmem:[%s5074 + $0x38] sm:$0xff]
      %v5083 = vld [vmem:[%s5074 + $0x40] sm:$0xff]
      %v5084 = vld [vmem:[%s5074 + $0x48] sm:$0xff]
      %v5085 = vld [vmem:[%s5074 + $0x50] sm:$0xff]
      %v5086 = vld [vmem:[%s5074 + $0x58] sm:$0xff]
      %v5087 = vld [vmem:[%s5074 + $0x60] sm:$0xff]
      %v5088 = vld [vmem:[%s5074 + $0x68] sm:$0xff]
      %v5089 = vld [vmem:[%s5074 + $0x70] sm:$0xff]
      %v5090 = vld [vmem:[%s5074 + $0x78] sm:$0xff]
      %5091 = vrot.lane.b32.xlu0 %v4684, 116
      %v5092 = vpop.permute.xlu0 %5091
      %5093 = vrot.lane.b32.xlu0 %v4685, 116
      %v5094 = vpop.permute.xlu0 %5093
      %5095 = vrot.lane.b32.xlu0 %v4686, 116
      %v5096 = vpop.permute.xlu0 %5095
      %5097 = vrot.lane.b32.xlu0 %v4687, 116
      %v5098 = vpop.permute.xlu0 %5097
      %5099 = vrot.lane.b32.xlu0 %v4688, 116
      %v5100 = vpop.permute.xlu0 %5099
      %5101 = vrot.lane.b32.xlu0 %v4689, 116
      %v5102 = vpop.permute.xlu0 %5101
      %5103 = vrot.lane.b32.xlu0 %v4690, 116
      %v5104 = vpop.permute.xlu0 %5103
      %5105 = vrot.lane.b32.xlu0 %v4691, 116
      %v5106 = vpop.permute.xlu0 %5105
      %5107 = vrot.lane.b32.xlu0 %v4692, 116
      %v5108 = vpop.permute.xlu0 %5107
      %5109 = vrot.lane.b32.xlu0 %v4693, 116
      %v5110 = vpop.permute.xlu0 %5109
      %5111 = vrot.lane.b32.xlu0 %v4694, 116
      %v5112 = vpop.permute.xlu0 %5111
      %5113 = vrot.lane.b32.xlu0 %v4695, 116
      %v5114 = vpop.permute.xlu0 %5113
      %5115 = vrot.lane.b32.xlu0 %v4696, 116
      %v5116 = vpop.permute.xlu0 %5115
      %5117 = vrot.lane.b32.xlu0 %v4697, 116
      %v5118 = vpop.permute.xlu0 %5117
      %5119 = vrot.lane.b32.xlu0 %v4698, 116
      %v5120 = vpop.permute.xlu0 %5119
      %5121 = vrot.lane.b32.xlu0 %v4699, 116
      %v5122 = vpop.permute.xlu0 %5121
      %5139 = vmatpush.msra.mxu0 %v5122
      %5140 = vmatpush.msra.mxu0 %v5120
      %5141 = vmatpush.msra.mxu0 %v5118
      %5142 = vmatpush.msra.mxu0 %v5116
      %5143 = vmatpush.msra.mxu0 %v5114
      %5144 = vmatpush.msra.mxu0 %v5112
      %5145 = vmatpush.msra.mxu0 %v5110
      %5146 = vmatpush.msra.mxu0 %v5108
      %5147 = vmatpush.msra.mxu0 %v5106
      %5148 = vmatpush.msra.mxu0 %v5104
      %5149 = vmatpush.msra.mxu0 %v5102
      %5150 = vmatpush.msra.mxu0 %v5100
      %5151 = vmatpush.msra.mxu0 %v5098
      %5152 = vmatpush.msra.mxu0 %v5096
      %5153 = vmatpush.msra.mxu0 %v5094
      %5154 = vmatpush.msra.mxu0 %v5092
      %5155 = vmatmul.f32.gmra.mxu0 %v5075
      %v5156 = vpop.f32.mrf.mxu0
      %v5157 = vadd.f32 0.0, %v5156
      %5158 = vmatmul.f32.gmra.mxu0 %v5076
      %v5159 = vpop.f32.mrf.mxu0
      %v5160 = vadd.f32 0.0, %v5159
      %5161 = vmatmul.f32.gmra.mxu0 %v5077
      %v5162 = vpop.f32.mrf.mxu0
      %v5163 = vadd.f32 0.0, %v5162
      %5164 = vmatmul.f32.gmra.mxu0 %v5078
      %v5165 = vpop.f32.mrf.mxu0
      %v5166 = vadd.f32 0.0, %v5165
      %5167 = vmatmul.f32.gmra.mxu0 %v5079
      %v5168 = vpop.f32.mrf.mxu0
      %v5169 = vadd.f32 0.0, %v5168
      %5170 = vmatmul.f32.gmra.mxu0 %v5080
      %v5171 = vpop.f32.mrf.mxu0
      %v5172 = vadd.f32 0.0, %v5171
      %5173 = vmatmul.f32.gmra.mxu0 %v5081
      %v5174 = vpop.f32.mrf.mxu0
      %v5175 = vadd.f32 0.0, %v5174
      %5176 = vmatmul.f32.gmra.mxu0 %v5082
      %v5177 = vpop.f32.mrf.mxu0
      %v5178 = vadd.f32 0.0, %v5177
      %5179 = vmatmul.f32.gmra.mxu0 %v5083
      %v5180 = vpop.f32.mrf.mxu0
      %v5181 = vadd.f32 0.0, %v5180
      %5182 = vmatmul.f32.gmra.mxu0 %v5084
      %v5183 = vpop.f32.mrf.mxu0
      %v5184 = vadd.f32 0.0, %v5183
      %5185 = vmatmul.f32.gmra.mxu0 %v5085
      %v5186 = vpop.f32.mrf.mxu0
      %v5187 = vadd.f32 0.0, %v5186
      %5188 = vmatmul.f32.gmra.mxu0 %v5086
      %v5189 = vpop.f32.mrf.mxu0
      %v5190 = vadd.f32 0.0, %v5189
      %5191 = vmatmul.f32.gmra.mxu0 %v5087
      %v5192 = vpop.f32.mrf.mxu0
      %v5193 = vadd.f32 0.0, %v5192
      %5194 = vmatmul.f32.gmra.mxu0 %v5088
      %v5195 = vpop.f32.mrf.mxu0
      %v5196 = vadd.f32 0.0, %v5195
      %5197 = vmatmul.f32.gmra.mxu0 %v5089
      %v5198 = vpop.f32.mrf.mxu0
      %v5199 = vadd.f32 0.0, %v5198
      %5200 = vmatmul.f32.gmra.mxu0 %v5090
      %v5201 = vpop.f32.mrf.mxu0
      %v5202 = vadd.f32 0.0, %v5201
      %5203 = vdwg.mxu0
      %v5204 = vadd.f32 %v5058, %v5157
      %v5205 = vadd.f32 %v5059, %v5160
      %v5206 = vadd.f32 %v5060, %v5163
      %v5207 = vadd.f32 %v5061, %v5166
      %v5208 = vadd.f32 %v5062, %v5169
      %v5209 = vadd.f32 %v5063, %v5172
      %v5210 = vadd.f32 %v5064, %v5175
      %v5211 = vadd.f32 %v5065, %v5178
      %v5212 = vadd.f32 %v5066, %v5181
      %v5213 = vadd.f32 %v5067, %v5184
      %v5214 = vadd.f32 %v5068, %v5187
      %v5215 = vadd.f32 %v5069, %v5190
      %v5216 = vadd.f32 %v5070, %v5193
      %v5217 = vadd.f32 %v5071, %v5196
      %v5218 = vadd.f32 %v5072, %v5199
      %v5219 = vadd.f32 %v5073, %v5202
      %s5220 = scalar_lea.vmem %s4, 384
      %v5221 = vld [vmem:[%s5220] sm:$0xff]
      %v5222 = vld [vmem:[%s5220 + $0x8] sm:$0xff]
      %v5223 = vld [vmem:[%s5220 + $0x10] sm:$0xff]
      %v5224 = vld [vmem:[%s5220 + $0x18] sm:$0xff]
      %v5225 = vld [vmem:[%s5220 + $0x20] sm:$0xff]
      %v5226 = vld [vmem:[%s5220 + $0x28] sm:$0xff]
      %v5227 = vld [vmem:[%s5220 + $0x30] sm:$0xff]
      %v5228 = vld [vmem:[%s5220 + $0x38] sm:$0xff]
      %v5229 = vld [vmem:[%s5220 + $0x40] sm:$0xff]
      %v5230 = vld [vmem:[%s5220 + $0x48] sm:$0xff]
      %v5231 = vld [vmem:[%s5220 + $0x50] sm:$0xff]
      %v5232 = vld [vmem:[%s5220 + $0x58] sm:$0xff]
      %v5233 = vld [vmem:[%s5220 + $0x60] sm:$0xff]
      %v5234 = vld [vmem:[%s5220 + $0x68] sm:$0xff]
      %v5235 = vld [vmem:[%s5220 + $0x70] sm:$0xff]
      %v5236 = vld [vmem:[%s5220 + $0x78] sm:$0xff]
      %5238 = vset.pattern.permute.xlu0 0
      %5239 = vperm.xlu0 %5238, %v5221
      %v5240 = vpop.permute.xlu0 %5239
      %5243 = vset.pattern.permute.xlu0 0
      %5244 = vperm.xlu0 %5243, %v5222
      %v5245 = vpop.permute.xlu0 %5244
      %5248 = vset.pattern.permute.xlu0 0
      %5249 = vperm.xlu0 %5248, %v5223
      %v5250 = vpop.permute.xlu0 %5249
      %5253 = vset.pattern.permute.xlu0 0
      %5254 = vperm.xlu0 %5253, %v5224
      %v5255 = vpop.permute.xlu0 %5254
      %5258 = vset.pattern.permute.xlu0 0
      %5259 = vperm.xlu0 %5258, %v5225
      %v5260 = vpop.permute.xlu0 %5259
      %5263 = vset.pattern.permute.xlu0 0
      %5264 = vperm.xlu0 %5263, %v5226
      %v5265 = vpop.permute.xlu0 %5264
      %5268 = vset.pattern.permute.xlu0 0
      %5269 = vperm.xlu0 %5268, %v5227
      %v5270 = vpop.permute.xlu0 %5269
      %5273 = vset.pattern.permute.xlu0 0
      %5274 = vperm.xlu0 %5273, %v5228
      %v5275 = vpop.permute.xlu0 %5274
      %5278 = vset.pattern.permute.xlu0 0
      %5279 = vperm.xlu0 %5278, %v5229
      %v5280 = vpop.permute.xlu0 %5279
      %5283 = vset.pattern.permute.xlu0 0
      %5284 = vperm.xlu0 %5283, %v5230
      %v5285 = vpop.permute.xlu0 %5284
      %5288 = vset.pattern.permute.xlu0 0
      %5289 = vperm.xlu0 %5288, %v5231
      %v5290 = vpop.permute.xlu0 %5289
      %5293 = vset.pattern.permute.xlu0 0
      %5294 = vperm.xlu0 %5293, %v5232
      %v5295 = vpop.permute.xlu0 %5294
      %5298 = vset.pattern.permute.xlu0 0
      %5299 = vperm.xlu0 %5298, %v5233
      %v5300 = vpop.permute.xlu0 %5299
      %5303 = vset.pattern.permute.xlu0 0
      %5304 = vperm.xlu0 %5303, %v5234
      %v5305 = vpop.permute.xlu0 %5304
      %5308 = vset.pattern.permute.xlu0 0
      %5309 = vperm.xlu0 %5308, %v5235
      %v5310 = vpop.permute.xlu0 %5309
      %5313 = vset.pattern.permute.xlu0 0
      %5314 = vperm.xlu0 %5313, %v5236
      %v5315 = vpop.permute.xlu0 %5314
      %v5317 = vadd.f32 %v5204, %v5240
      %v5318 = vadd.f32 %v5205, %v5245
      %v5319 = vadd.f32 %v5206, %v5250
      %v5320 = vadd.f32 %v5207, %v5255
      %v5321 = vadd.f32 %v5208, %v5260
      %v5322 = vadd.f32 %v5209, %v5265
      %v5323 = vadd.f32 %v5210, %v5270
      %v5324 = vadd.f32 %v5211, %v5275
      %v5325 = vadd.f32 %v5212, %v5280
      %v5326 = vadd.f32 %v5213, %v5285
      %v5327 = vadd.f32 %v5214, %v5290
      %v5328 = vadd.f32 %v5215, %v5295
      %v5329 = vadd.f32 %v5216, %v5300
      %v5330 = vadd.f32 %v5217, %v5305
      %v5331 = vadd.f32 %v5218, %v5310
      %v5332 = vadd.f32 %v5219, %v5315
      %vm5333 = vcmp.gt.f32.partialorder %v5317, 0.0
      %vm5334 = vcmp.gt.f32.partialorder %v5318, 0.0
      %vm5335 = vcmp.gt.f32.partialorder %v5319, 0.0
      %vm5336 = vcmp.gt.f32.partialorder %v5320, 0.0
      %vm5337 = vcmp.gt.f32.partialorder %v5321, 0.0
      %vm5338 = vcmp.gt.f32.partialorder %v5322, 0.0
      %vm5339 = vcmp.gt.f32.partialorder %v5323, 0.0
      %vm5340 = vcmp.gt.f32.partialorder %v5324, 0.0
      %vm5341 = vcmp.gt.f32.partialorder %v5325, 0.0
      %vm5342 = vcmp.gt.f32.partialorder %v5326, 0.0
      %vm5343 = vcmp.gt.f32.partialorder %v5327, 0.0
      %vm5344 = vcmp.gt.f32.partialorder %v5328, 0.0
      %vm5345 = vcmp.gt.f32.partialorder %v5329, 0.0
      %vm5346 = vcmp.gt.f32.partialorder %v5330, 0.0
      %vm5347 = vcmp.gt.f32.partialorder %v5331, 0.0
      %vm5348 = vcmp.gt.f32.partialorder %v5332, 0.0
      %v5349 = vmul.f32 %v5317, 0.01
      %v5350 = vmul.f32 %v5318, 0.01
      %v5351 = vmul.f32 %v5319, 0.01
      %v5352 = vmul.f32 %v5320, 0.01
      %v5353 = vmul.f32 %v5321, 0.01
      %v5354 = vmul.f32 %v5322, 0.01
      %v5355 = vmul.f32 %v5323, 0.01
      %v5356 = vmul.f32 %v5324, 0.01
      %v5357 = vmul.f32 %v5325, 0.01
      %v5358 = vmul.f32 %v5326, 0.01
      %v5359 = vmul.f32 %v5327, 0.01
      %v5360 = vmul.f32 %v5328, 0.01
      %v5361 = vmul.f32 %v5329, 0.01
      %v5362 = vmul.f32 %v5330, 0.01
      %v5363 = vmul.f32 %v5331, 0.01
      %v5364 = vmul.f32 %v5332, 0.01
      %v5365 = vsel %vm5333, %v5317, %v5349
      %v5366 = vsel %vm5334, %v5318, %v5350
      %v5367 = vsel %vm5335, %v5319, %v5351
      %v5368 = vsel %vm5336, %v5320, %v5352
      %v5369 = vsel %vm5337, %v5321, %v5353
      %v5370 = vsel %vm5338, %v5322, %v5354
      %v5371 = vsel %vm5339, %v5323, %v5355
      %v5372 = vsel %vm5340, %v5324, %v5356
      %v5373 = vsel %vm5341, %v5325, %v5357
      %v5374 = vsel %vm5342, %v5326, %v5358
      %v5375 = vsel %vm5343, %v5327, %v5359
      %v5376 = vsel %vm5344, %v5328, %v5360
      %v5377 = vsel %vm5345, %v5329, %v5361
      %v5378 = vsel %vm5346, %v5330, %v5362
      %v5379 = vsel %vm5347, %v5331, %v5363
      %v5380 = vsel %vm5348, %v5332, %v5364
      %s5381 = scalar_lea.vmem %s5, 384
      %v5382 = vld [vmem:[%s5381] sm:$0xff]
      %v5383 = vld [vmem:[%s5381 + $0x8] sm:$0xff]
      %v5384 = vld [vmem:[%s5381 + $0x10] sm:$0xff]
      %v5385 = vld [vmem:[%s5381 + $0x18] sm:$0xff]
      %v5386 = vld [vmem:[%s5381 + $0x20] sm:$0xff]
      %v5387 = vld [vmem:[%s5381 + $0x28] sm:$0xff]
      %v5388 = vld [vmem:[%s5381 + $0x30] sm:$0xff]
      %v5389 = vld [vmem:[%s5381 + $0x38] sm:$0xff]
      %v5390 = vld [vmem:[%s5381 + $0x40] sm:$0xff]
      %v5391 = vld [vmem:[%s5381 + $0x48] sm:$0xff]
      %v5392 = vld [vmem:[%s5381 + $0x50] sm:$0xff]
      %v5393 = vld [vmem:[%s5381 + $0x58] sm:$0xff]
      %v5394 = vld [vmem:[%s5381 + $0x60] sm:$0xff]
      %v5395 = vld [vmem:[%s5381 + $0x68] sm:$0xff]
      %v5396 = vld [vmem:[%s5381 + $0x70] sm:$0xff]
      %v5397 = vld [vmem:[%s5381 + $0x78] sm:$0xff]
      %v5398 = vmul.f32 %v5365, %v5365
      %v5399 = vmul.f32 %v5366, %v5366
      %v5400 = vmul.f32 %v5367, %v5367
      %v5401 = vmul.f32 %v5368, %v5368
      %v5402 = vmul.f32 %v5369, %v5369
      %v5403 = vmul.f32 %v5370, %v5370
      %v5404 = vmul.f32 %v5371, %v5371
      %v5405 = vmul.f32 %v5372, %v5372
      %v5406 = vmul.f32 %v5373, %v5373
      %v5407 = vmul.f32 %v5374, %v5374
      %v5408 = vmul.f32 %v5375, %v5375
      %v5409 = vmul.f32 %v5376, %v5376
      %v5410 = vmul.f32 %v5377, %v5377
      %v5411 = vmul.f32 %v5378, %v5378
      %v5412 = vmul.f32 %v5379, %v5379
      %v5413 = vmul.f32 %v5380, %v5380
      %s5414 = scalar_lea.vmem %s6, 384
      %v5415 = vld [vmem:[%s5414] sm:$0xff]
      %v5416 = vld [vmem:[%s5414 + $0x8] sm:$0xff]
      %v5417 = vld [vmem:[%s5414 + $0x10] sm:$0xff]
      %v5418 = vld [vmem:[%s5414 + $0x18] sm:$0xff]
      %v5419 = vld [vmem:[%s5414 + $0x20] sm:$0xff]
      %v5420 = vld [vmem:[%s5414 + $0x28] sm:$0xff]
      %v5421 = vld [vmem:[%s5414 + $0x30] sm:$0xff]
      %v5422 = vld [vmem:[%s5414 + $0x38] sm:$0xff]
      %v5423 = vld [vmem:[%s5414 + $0x40] sm:$0xff]
      %v5424 = vld [vmem:[%s5414 + $0x48] sm:$0xff]
      %v5425 = vld [vmem:[%s5414 + $0x50] sm:$0xff]
      %v5426 = vld [vmem:[%s5414 + $0x58] sm:$0xff]
      %v5427 = vld [vmem:[%s5414 + $0x60] sm:$0xff]
      %v5428 = vld [vmem:[%s5414 + $0x68] sm:$0xff]
      %v5429 = vld [vmem:[%s5414 + $0x70] sm:$0xff]
      %v5430 = vld [vmem:[%s5414 + $0x78] sm:$0xff]
      %5432 = vset.pattern.permute.xlu0 0
      %5433 = vperm.xlu0 %5432, %v5415
      %v5434 = vpop.permute.xlu0 %5433
      %5437 = vset.pattern.permute.xlu0 0
      %5438 = vperm.xlu0 %5437, %v5416
      %v5439 = vpop.permute.xlu0 %5438
      %5442 = vset.pattern.permute.xlu0 0
      %5443 = vperm.xlu0 %5442, %v5417
      %v5444 = vpop.permute.xlu0 %5443
      %5447 = vset.pattern.permute.xlu0 0
      %5448 = vperm.xlu0 %5447, %v5418
      %v5449 = vpop.permute.xlu0 %5448
      %5452 = vset.pattern.permute.xlu0 0
      %5453 = vperm.xlu0 %5452, %v5419
      %v5454 = vpop.permute.xlu0 %5453
      %5457 = vset.pattern.permute.xlu0 0
      %5458 = vperm.xlu0 %5457, %v5420
      %v5459 = vpop.permute.xlu0 %5458
      %5462 = vset.pattern.permute.xlu0 0
      %5463 = vperm.xlu0 %5462, %v5421
      %v5464 = vpop.permute.xlu0 %5463
      %5467 = vset.pattern.permute.xlu0 0
      %5468 = vperm.xlu0 %5467, %v5422
      %v5469 = vpop.permute.xlu0 %5468
      %5472 = vset.pattern.permute.xlu0 0
      %5473 = vperm.xlu0 %5472, %v5423
      %v5474 = vpop.permute.xlu0 %5473
      %5477 = vset.pattern.permute.xlu0 0
      %5478 = vperm.xlu0 %5477, %v5424
      %v5479 = vpop.permute.xlu0 %5478
      %5482 = vset.pattern.permute.xlu0 0
      %5483 = vperm.xlu0 %5482, %v5425
      %v5484 = vpop.permute.xlu0 %5483
      %5487 = vset.pattern.permute.xlu0 0
      %5488 = vperm.xlu0 %5487, %v5426
      %v5489 = vpop.permute.xlu0 %5488
      %5492 = vset.pattern.permute.xlu0 0
      %5493 = vperm.xlu0 %5492, %v5427
      %v5494 = vpop.permute.xlu0 %5493
      %5497 = vset.pattern.permute.xlu0 0
      %5498 = vperm.xlu0 %5497, %v5428
      %v5499 = vpop.permute.xlu0 %5498
      %5502 = vset.pattern.permute.xlu0 0
      %5503 = vperm.xlu0 %5502, %v5429
      %v5504 = vpop.permute.xlu0 %5503
      %5507 = vset.pattern.permute.xlu0 0
      %5508 = vperm.xlu0 %5507, %v5430
      %v5509 = vpop.permute.xlu0 %5508
      %5511 = vmatpush.msra.mxu0 %v5413
      %5512 = vmatpush.msra.mxu0 %v5412
      %5513 = vmatpush.msra.mxu0 %v5411
      %5514 = vmatpush.msra.mxu0 %v5410
      %5515 = vmatpush.msra.mxu0 %v5409
      %5516 = vmatpush.msra.mxu0 %v5408
      %5517 = vmatpush.msra.mxu0 %v5407
      %5518 = vmatpush.msra.mxu0 %v5406
      %5519 = vmatpush.msra.mxu0 %v5405
      %5520 = vmatpush.msra.mxu0 %v5404
      %5521 = vmatpush.msra.mxu0 %v5403
      %5522 = vmatpush.msra.mxu0 %v5402
      %5523 = vmatpush.msra.mxu0 %v5401
      %5524 = vmatpush.msra.mxu0 %v5400
      %5525 = vmatpush.msra.mxu0 %v5399
      %5526 = vmatpush.msra.mxu0 %v5398
      %5527 = vmatmul.f32.gmra.mxu0 %v5382
      %v5528 = vpop.f32.mrf.mxu0
      %v5529 = vadd.f32 %v5434, %v5528
      %5530 = vmatmul.f32.gmra.mxu0 %v5383
      %v5531 = vpop.f32.mrf.mxu0
      %v5532 = vadd.f32 %v5439, %v5531
      %5533 = vmatmul.f32.gmra.mxu0 %v5384
      %v5534 = vpop.f32.mrf.mxu0
      %v5535 = vadd.f32 %v5444, %v5534
      %5536 = vmatmul.f32.gmra.mxu0 %v5385
      %v5537 = vpop.f32.mrf.mxu0
      %v5538 = vadd.f32 %v5449, %v5537
      %5539 = vmatmul.f32.gmra.mxu0 %v5386
      %v5540 = vpop.f32.mrf.mxu0
      %v5541 = vadd.f32 %v5454, %v5540
      %5542 = vmatmul.f32.gmra.mxu0 %v5387
      %v5543 = vpop.f32.mrf.mxu0
      %v5544 = vadd.f32 %v5459, %v5543
      %5545 = vmatmul.f32.gmra.mxu0 %v5388
      %v5546 = vpop.f32.mrf.mxu0
      %v5547 = vadd.f32 %v5464, %v5546
      %5548 = vmatmul.f32.gmra.mxu0 %v5389
      %v5549 = vpop.f32.mrf.mxu0
      %v5550 = vadd.f32 %v5469, %v5549
      %5551 = vmatmul.f32.gmra.mxu0 %v5390
      %v5552 = vpop.f32.mrf.mxu0
      %v5553 = vadd.f32 %v5474, %v5552
      %5554 = vmatmul.f32.gmra.mxu0 %v5391
      %v5555 = vpop.f32.mrf.mxu0
      %v5556 = vadd.f32 %v5479, %v5555
      %5557 = vmatmul.f32.gmra.mxu0 %v5392
      %v5558 = vpop.f32.mrf.mxu0
      %v5559 = vadd.f32 %v5484, %v5558
      %5560 = vmatmul.f32.gmra.mxu0 %v5393
      %v5561 = vpop.f32.mrf.mxu0
      %v5562 = vadd.f32 %v5489, %v5561
      %5563 = vmatmul.f32.gmra.mxu0 %v5394
      %v5564 = vpop.f32.mrf.mxu0
      %v5565 = vadd.f32 %v5494, %v5564
      %5566 = vmatmul.f32.gmra.mxu0 %v5395
      %v5567 = vpop.f32.mrf.mxu0
      %v5568 = vadd.f32 %v5499, %v5567
      %5569 = vmatmul.f32.gmra.mxu0 %v5396
      %v5570 = vpop.f32.mrf.mxu0
      %v5571 = vadd.f32 %v5504, %v5570
      %5572 = vmatmul.f32.gmra.mxu0 %v5397
      %v5573 = vpop.f32.mrf.mxu0
      %v5574 = vadd.f32 %v5509, %v5573
      %5575 = vdwg.mxu0
      %v5576 = vrsqrt.pop %v5529
      %v5577 = vmul.f32 %v5576, %v5529
      %v5578 = vmul.f32 %v5577, %v5576
      %v5579 = vmul.f32 0.5, %v5578
      %v5580 = vsub.f32 1.5, %v5579
      %v5581 = vmul.f32 %v5576, %v5580
      %vm5582 = vweird.f32 %v5529
      %vm5583 = vweird.f32 %v5576
      %vm5584 = vmor %vm5582, %vm5583
      %v5585 = vsel %vm5584, %v5576, %v5581
      %v5586 = vrsqrt.pop %v5532
      %v5587 = vmul.f32 %v5586, %v5532
      %v5588 = vmul.f32 %v5587, %v5586
      %v5589 = vmul.f32 0.5, %v5588
      %v5590 = vsub.f32 1.5, %v5589
      %v5591 = vmul.f32 %v5586, %v5590
      %vm5592 = vweird.f32 %v5532
      %vm5593 = vweird.f32 %v5586
      %vm5594 = vmor %vm5592, %vm5593
      %v5595 = vsel %vm5594, %v5586, %v5591
      %v5596 = vrsqrt.pop %v5535
      %v5597 = vmul.f32 %v5596, %v5535
      %v5598 = vmul.f32 %v5597, %v5596
      %v5599 = vmul.f32 0.5, %v5598
      %v5600 = vsub.f32 1.5, %v5599
      %v5601 = vmul.f32 %v5596, %v5600
      %vm5602 = vweird.f32 %v5535
      %vm5603 = vweird.f32 %v5596
      %vm5604 = vmor %vm5602, %vm5603
      %v5605 = vsel %vm5604, %v5596, %v5601
      %v5606 = vrsqrt.pop %v5538
      %v5607 = vmul.f32 %v5606, %v5538
      %v5608 = vmul.f32 %v5607, %v5606
      %v5609 = vmul.f32 0.5, %v5608
      %v5610 = vsub.f32 1.5, %v5609
      %v5611 = vmul.f32 %v5606, %v5610
      %vm5612 = vweird.f32 %v5538
      %vm5613 = vweird.f32 %v5606
      %vm5614 = vmor %vm5612, %vm5613
      %v5615 = vsel %vm5614, %v5606, %v5611
      %v5616 = vrsqrt.pop %v5541
      %v5617 = vmul.f32 %v5616, %v5541
      %v5618 = vmul.f32 %v5617, %v5616
      %v5619 = vmul.f32 0.5, %v5618
      %v5620 = vsub.f32 1.5, %v5619
      %v5621 = vmul.f32 %v5616, %v5620
      %vm5622 = vweird.f32 %v5541
      %vm5623 = vweird.f32 %v5616
      %vm5624 = vmor %vm5622, %vm5623
      %v5625 = vsel %vm5624, %v5616, %v5621
      %v5626 = vrsqrt.pop %v5544
      %v5627 = vmul.f32 %v5626, %v5544
      %v5628 = vmul.f32 %v5627, %v5626
      %v5629 = vmul.f32 0.5, %v5628
      %v5630 = vsub.f32 1.5, %v5629
      %v5631 = vmul.f32 %v5626, %v5630
      %vm5632 = vweird.f32 %v5544
      %vm5633 = vweird.f32 %v5626
      %vm5634 = vmor %vm5632, %vm5633
      %v5635 = vsel %vm5634, %v5626, %v5631
      %v5636 = vrsqrt.pop %v5547
      %v5637 = vmul.f32 %v5636, %v5547
      %v5638 = vmul.f32 %v5637, %v5636
      %v5639 = vmul.f32 0.5, %v5638
      %v5640 = vsub.f32 1.5, %v5639
      %v5641 = vmul.f32 %v5636, %v5640
      %vm5642 = vweird.f32 %v5547
      %vm5643 = vweird.f32 %v5636
      %vm5644 = vmor %vm5642, %vm5643
      %v5645 = vsel %vm5644, %v5636, %v5641
      %v5646 = vrsqrt.pop %v5550
      %v5647 = vmul.f32 %v5646, %v5550
      %v5648 = vmul.f32 %v5647, %v5646
      %v5649 = vmul.f32 0.5, %v5648
      %v5650 = vsub.f32 1.5, %v5649
      %v5651 = vmul.f32 %v5646, %v5650
      %vm5652 = vweird.f32 %v5550
      %vm5653 = vweird.f32 %v5646
      %vm5654 = vmor %vm5652, %vm5653
      %v5655 = vsel %vm5654, %v5646, %v5651
      %v5656 = vrsqrt.pop %v5553
      %v5657 = vmul.f32 %v5656, %v5553
      %v5658 = vmul.f32 %v5657, %v5656
      %v5659 = vmul.f32 0.5, %v5658
      %v5660 = vsub.f32 1.5, %v5659
      %v5661 = vmul.f32 %v5656, %v5660
      %vm5662 = vweird.f32 %v5553
      %vm5663 = vweird.f32 %v5656
      %vm5664 = vmor %vm5662, %vm5663
      %v5665 = vsel %vm5664, %v5656, %v5661
      %v5666 = vrsqrt.pop %v5556
      %v5667 = vmul.f32 %v5666, %v5556
      %v5668 = vmul.f32 %v5667, %v5666
      %v5669 = vmul.f32 0.5, %v5668
      %v5670 = vsub.f32 1.5, %v5669
      %v5671 = vmul.f32 %v5666, %v5670
      %vm5672 = vweird.f32 %v5556
      %vm5673 = vweird.f32 %v5666
      %vm5674 = vmor %vm5672, %vm5673
      %v5675 = vsel %vm5674, %v5666, %v5671
      %v5676 = vrsqrt.pop %v5559
      %v5677 = vmul.f32 %v5676, %v5559
      %v5678 = vmul.f32 %v5677, %v5676
      %v5679 = vmul.f32 0.5, %v5678
      %v5680 = vsub.f32 1.5, %v5679
      %v5681 = vmul.f32 %v5676, %v5680
      %vm5682 = vweird.f32 %v5559
      %vm5683 = vweird.f32 %v5676
      %vm5684 = vmor %vm5682, %vm5683
      %v5685 = vsel %vm5684, %v5676, %v5681
      %v5686 = vrsqrt.pop %v5562
      %v5687 = vmul.f32 %v5686, %v5562
      %v5688 = vmul.f32 %v5687, %v5686
      %v5689 = vmul.f32 0.5, %v5688
      %v5690 = vsub.f32 1.5, %v5689
      %v5691 = vmul.f32 %v5686, %v5690
      %vm5692 = vweird.f32 %v5562
      %vm5693 = vweird.f32 %v5686
      %vm5694 = vmor %vm5692, %vm5693
      %v5695 = vsel %vm5694, %v5686, %v5691
      %v5696 = vrsqrt.pop %v5565
      %v5697 = vmul.f32 %v5696, %v5565
      %v5698 = vmul.f32 %v5697, %v5696
      %v5699 = vmul.f32 0.5, %v5698
      %v5700 = vsub.f32 1.5, %v5699
      %v5701 = vmul.f32 %v5696, %v5700
      %vm5702 = vweird.f32 %v5565
      %vm5703 = vweird.f32 %v5696
      %vm5704 = vmor %vm5702, %vm5703
      %v5705 = vsel %vm5704, %v5696, %v5701
      %v5706 = vrsqrt.pop %v5568
      %v5707 = vmul.f32 %v5706, %v5568
      %v5708 = vmul.f32 %v5707, %v5706
      %v5709 = vmul.f32 0.5, %v5708
      %v5710 = vsub.f32 1.5, %v5709
      %v5711 = vmul.f32 %v5706, %v5710
      %vm5712 = vweird.f32 %v5568
      %vm5713 = vweird.f32 %v5706
      %vm5714 = vmor %vm5712, %vm5713
      %v5715 = vsel %vm5714, %v5706, %v5711
      %v5716 = vrsqrt.pop %v5571
      %v5717 = vmul.f32 %v5716, %v5571
      %v5718 = vmul.f32 %v5717, %v5716
      %v5719 = vmul.f32 0.5, %v5718
      %v5720 = vsub.f32 1.5, %v5719
      %v5721 = vmul.f32 %v5716, %v5720
      %vm5722 = vweird.f32 %v5571
      %vm5723 = vweird.f32 %v5716
      %vm5724 = vmor %vm5722, %vm5723
      %v5725 = vsel %vm5724, %v5716, %v5721
      %v5726 = vrsqrt.pop %v5574
      %v5727 = vmul.f32 %v5726, %v5574
      %v5728 = vmul.f32 %v5727, %v5726
      %v5729 = vmul.f32 0.5, %v5728
      %v5730 = vsub.f32 1.5, %v5729
      %v5731 = vmul.f32 %v5726, %v5730
      %vm5732 = vweird.f32 %v5574
      %vm5733 = vweird.f32 %v5726
      %vm5734 = vmor %vm5732, %vm5733
      %v5735 = vsel %vm5734, %v5726, %v5731
      %v5736 = vmul.f32 %v5365, %v5585
      %v5737 = vmul.f32 %v5366, %v5595
      %v5738 = vmul.f32 %v5367, %v5605
      %v5739 = vmul.f32 %v5368, %v5615
      %v5740 = vmul.f32 %v5369, %v5625
      %v5741 = vmul.f32 %v5370, %v5635
      %v5742 = vmul.f32 %v5371, %v5645
      %v5743 = vmul.f32 %v5372, %v5655
      %v5744 = vmul.f32 %v5373, %v5665
      %v5745 = vmul.f32 %v5374, %v5675
      %v5746 = vmul.f32 %v5375, %v5685
      %v5747 = vmul.f32 %v5376, %v5695
      %v5748 = vmul.f32 %v5377, %v5705
      %v5749 = vmul.f32 %v5378, %v5715
      %v5750 = vmul.f32 %v5379, %v5725
      %v5751 = vmul.f32 %v5380, %v5735
      %vm5752 = vcmask 31744
      %5753 = vst.msk [vmem:[%s275] sm:$0xff] %vm5752, %v5736
      %5754 = vst.msk [vmem:[%s275 + $0x8] sm:$0xff] %vm5752, %v5737
      %5755 = vst.msk [vmem:[%s275 + $0x10] sm:$0xff] %vm5752, %v5738
      %5756 = vst.msk [vmem:[%s275 + $0x18] sm:$0xff] %vm5752, %v5739
      %5757 = vst.msk [vmem:[%s275 + $0x20] sm:$0xff] %vm5752, %v5740
      %5758 = vst.msk [vmem:[%s275 + $0x28] sm:$0xff] %vm5752, %v5741
      %5759 = vst.msk [vmem:[%s275 + $0x30] sm:$0xff] %vm5752, %v5742
      %5760 = vst.msk [vmem:[%s275 + $0x38] sm:$0xff] %vm5752, %v5743
      %5761 = vst.msk [vmem:[%s275 + $0x40] sm:$0xff] %vm5752, %v5744
      %5762 = vst.msk [vmem:[%s275 + $0x48] sm:$0xff] %vm5752, %v5745
      %5763 = vst.msk [vmem:[%s275 + $0x50] sm:$0xff] %vm5752, %v5746
      %5764 = vst.msk [vmem:[%s275 + $0x58] sm:$0xff] %vm5752, %v5747
      %5765 = vst.msk [vmem:[%s275 + $0x60] sm:$0xff] %vm5752, %v5748
      %5766 = vst.msk [vmem:[%s275 + $0x68] sm:$0xff] %vm5752, %v5749
      %5767 = vst.msk [vmem:[%s275 + $0x70] sm:$0xff] %vm5752, %v5750
      %5768 = vst.msk [vmem:[%s275 + $0x78] sm:$0xff] %vm5752, %v5751
      %p5769 = scmp.lt.s32.totalorder %s18, 1
      %s5770 = scalar_select %p5769, %s18, 1
      %s5771 = smul.addr %s5770, 16
      %s5772 = smul.addr %s5771, 8
      %s5773 = scalar_lea.vmem %s7, %s5772
      // Predicated region
      $region49: #{encode_net_forward.1} parent=47 // pred_check
        %p5774 = pneg %p188
      $region50: #{encode_net_forward.1} parent=47 // pred_check_branch
        %5776 = sbr.rel (%p5774) target = $region52
      $region51: #{encode_net_forward.1} parent=47 // pred_region
        _
      $region52: #{encode_net_forward.1} parent=47 // pred_fallthru
        _
    $region48: #{encode_net_forward.1} parent=5 // pred_fallthru
      _
    %p5777 = scmp.le.s32.totalorder 2, %s13
    // Predicated region
    $region53: #{encode_net_forward.1} parent=5 // pred_check
      %p5778 = pneg %p5777
    $region54: #{encode_net_forward.1} parent=5 // pred_check_branch
      %5780 = sbr.rel (%p5778) target = $region56
    $region55: #{encode_net_forward.1} parent=5 // pred_region
      %s5781 = ssub.s32 %s13, 2
      // Predicated region
      $region57: #{encode_net_forward.1} parent=55 // pred_check
        %p5782 = pneg %p194
      $region58: #{encode_net_forward.1} parent=55 // pred_check_branch
        %5784 = sbr.rel (%p5782) target = $region60
      $region59: #{encode_net_forward.1} parent=55 // pred_region
        %p5785 = scmp.lt.s32.totalorder %s19, 1
        %s5786 = scalar_select %p5785, %s19, 1
        %s5787 = smul.addr %s5786, 16
        %s5788 = smul.addr %s5787, 8
        %s5789 = scalar_lea.vmem %s7, %s5788
      $region60: #{encode_net_forward.1} parent=55 // pred_fallthru
        _
    $region56: #{encode_net_forward.1} parent=5 // pred_fallthru
      _
  $region6: #{encode_net_forward.1} parent=0 // loop_footer
    %s17 = sadd.s32 1, %s13
  $region7: #{encode_net_forward.1} parent=0 // loop_footer_branch
    %12 = sbr.rel target = $region3
  $region8: #{encode_net_forward.1} parent=0 // loop_exit
    _

</llo_original>
